<compile_context>
chip_gen: v5e
topology: v5e:2x2
jax: 0.10.0
libtpu: 0.0.40
codegen_flags: <defaults>
</compile_context>

<pallas_src>
import functools

import jax
import jax.numpy as jnp
from jax import lax
from jax.experimental import pallas as pl
from jax.experimental.pallas import tpu as pltpu


# ----------------------------- Pallas kernel -------------------------------

def _panoptic_fused_kernel(x_ref, wbb_ref, bbb_ref, w1_ref, b1_ref, w2_ref, b2_ref,
                           out_ref, pred_ref, *, H, W, num_classes):
    """Fused backbone + semantic/instance heads for one image.

    x_ref   : (1, H*W, 9*Cin)  full 3x3 im2col of the (mean-padded) input, bf16
    wbb_ref : (9*Cin, F)       backbone conv weights (normalization folded), bf16
    bbb_ref : (1, F)           backbone bias (normalization folded), f32
    w1_ref  : (9*F, 3*F)       fused [sem|ctr|off] head-1 3x3 conv weights, bf16
    b1_ref  : (1, 3*F)         fused head-1 bias, f32
    w2_ref  : (3*F, nc+3)      block-diagonal fused head-2 1x1 conv weights, bf16
    b2_ref  : (1, nc+3)        fused head-2 bias, f32
    out_ref : (1, nc+3, H*W)   [sem logits | sigmoid(center) | offset], transposed, f32
    pred_ref: (1, 1, H*W)      semantic argmax, int32
    """
    hw = H * W
    f = wbb_ref.shape[-1]

    # ---- backbone 3x3 conv: single K=27 matmul + bias + ReLU; feat stays in VMEM.
    feat = jnp.dot(x_ref[0], wbb_ref[...], preferred_element_type=jnp.float32)
    feat = jnp.maximum(feat + bbb_ref[...], 0.0)                     # (hw, F) f32

    # ---- in-kernel 3x3 im2col of feat.  Flat index p = y*W + x, so a (dy, dx)
    #      neighborhood shift is a shift by dy*W + dx rows of the flat tile:
    #      out-of-image y rows read the zero pad, out-of-image x cols are masked.
    #      (Valid because the block covers full image rows; the row-blocked
    #      version needs a halo instead.)
    zpad = jnp.zeros((W + 1, f), jnp.float32)
    fpad = jnp.concatenate([zpad, feat, zpad], axis=0)               # (hw + 2W + 2, F)
    xv = lax.broadcasted_iota(jnp.int32, (hw, f), 0) % W
    pieces = []
    for dy in (-1, 0, 1):
        for dx in (-1, 0, 1):
            off = dy * W + dx
            piece = fpad[W + 1 + off: W + 1 + off + hw]              # (hw, F)
            if dx == -1:
                piece = jnp.where(xv >= 1, piece, 0.0)
            elif dx == 1:
                piece = jnp.where(xv <= W - 2, piece, 0.0)
            pieces.append(piece)
    # K-fused head-1 matmul (K = 9F).  NOTE: the lane concat may relayout; at
    # real shapes verify in the bundle (XLU slot is idle here anyway).
    col = jnp.concatenate(pieces, axis=-1).astype(jnp.bfloat16)      # (hw, 9F)

    hidden = jnp.dot(col, w1_ref[...], preferred_element_type=jnp.float32)
    hidden = jnp.maximum(hidden + b1_ref[...], 0.0).astype(jnp.bfloat16)   # (hw, 3F)

    # ---- head-2 block-diagonal 1x1 conv -> [sem (nc) | center (1) | offset (2)]
    logits = jnp.dot(hidden, w2_ref[...],
                     preferred_element_type=jnp.float32) + b2_ref[...]     # (hw, nc+3)
    cid = lax.broadcasted_iota(jnp.int32, logits.shape, 1)
    mixed = jnp.where(cid == num_classes, jax.nn.sigmoid(logits), logits)

    # lane-dense transposed store: (nc+3, hw) with hw a multiple of 128.
    out_t = jnp.transpose(mixed)                                     # (nc+3, hw) f32
    out_ref[0] = out_t

    # semantic argmax (f32, first-index tie-break), lane-dense (1, hw) store.
    sem_t = out_t[:num_classes, :]                                   # raw sem logits
    m = jnp.max(sem_t, axis=0, keepdims=True)
    ids = lax.broadcasted_iota(jnp.int32, sem_t.shape, 0)
    cand = jnp.where(sem_t == m, ids, num_classes)
    pred_ref[0] = jnp.min(cand, axis=0, keepdims=True).astype(jnp.int32)


# ----------------------------- Pallas wrapper -------------------------------

def pallas_panoptic_fused(xcol, wbb, bbb, w1, b1, w2, b2, *, H, W, num_classes):
    """xcol: (N, H*W, 9*Cin) bf16 -> ((N, nc+3, H*W) f32, (N, 1, H*W) int32)."""
    n, hw, kin = xcol.shape
    f = wbb.shape[-1]
    k1, f3 = w1.shape
    cout = w2.shape[-1]                                  # num_classes + 3
    kernel = functools.partial(_panoptic_fused_kernel, H=H, W=W,
                               num_classes=num_classes)

    flops = 2 * n * hw * (kin * f + k1 * f3 + f3 * cout)
    bytes_accessed = (2 * (xcol.size + wbb.size + w1.size + w2.size)
                      + 4 * (bbb.size + b1.size + b2.size)
                      + 4 * n * hw * (cout + 1))

    return pl.pallas_call(
        kernel,
        out_shape=(
            jax.ShapeDtypeStruct((n, cout, hw), jnp.float32),
            jax.ShapeDtypeStruct((n, 1, hw), jnp.int32),
        ),
        grid=(n,),
        in_specs=[
            pl.BlockSpec((1, hw, kin), lambda i: (i, 0, 0)),
            pl.BlockSpec((kin, f), lambda i: (0, 0)),
            pl.BlockSpec((1, f), lambda i: (0, 0)),
            pl.BlockSpec((k1, f3), lambda i: (0, 0)),
            pl.BlockSpec((1, f3), lambda i: (0, 0)),
            pl.BlockSpec((f3, cout), lambda i: (0, 0)),
            pl.BlockSpec((1, cout), lambda i: (0, 0)),
        ],
        out_specs=(
            pl.BlockSpec((1, cout, hw), lambda i: (i, 0, 0)),
            pl.BlockSpec((1, 1, hw), lambda i: (i, 0, 0)),
        ),
        compiler_params=pltpu.CompilerParams(dimension_semantics=("parallel",)),
        cost_estimate=pl.CostEstimate(flops=int(flops),
                                      transcendentals=int(n * hw),
                                      bytes_accessed=int(bytes_accessed)),
    )(xcol, wbb, bbb, w1, b1, w2, b2)


# ------------------------------- JAX glue -----------------------------------

def im2col_3x3(x_nhwc, pad_vec):
    """Full 3x3 im2col with per-channel constant padding -> (N, H*W, 9*C).

    Channel ordering is (ky, kx, c) row-major, matching w.reshape(9*C, F)."""
    n, h, w, c = x_nhwc.shape
    dt = x_nhwc.dtype
    pv = pad_vec.reshape(1, 1, 1, c).astype(dt)
    col_pad = jnp.broadcast_to(pv, (n, h, 1, c))
    xp = jnp.concatenate([col_pad, x_nhwc, col_pad], axis=2)          # (n, h, w+2, c)
    row_pad = jnp.broadcast_to(pv, (n, 1, w + 2, c))
    xp = jnp.concatenate([row_pad, xp, row_pad], axis=1)              # (n, h+2, w+2, c)
    patches = [xp[:, ky:ky + h, kx:kx + w, :] for ky in range(3) for kx in range(3)]
    return jnp.concatenate(patches, axis=-1).reshape(n, h * w, 9 * c)


def prepare_params(params, pixel_mean, pixel_std):
    """Fold normalization into the backbone conv; fuse the head convs; cast bf16."""
    mean = pixel_mean.reshape(-1).astype(jnp.float32)
    inv_std = 1.0 / pixel_std.reshape(-1).astype(jnp.float32)

    w_bb = params["backbone_w"]                                   # (3, 3, Cin, F)
    cin, f = w_bb.shape[2], w_bb.shape[3]
    w_fold = w_bb * inv_std[None, None, :, None]
    shift = jnp.einsum("yxcf,c->f", w_bb, mean * inv_std)
    bb_w = w_fold.reshape(9 * cin, f).astype(jnp.bfloat16)
    bb_b = (params["backbone_b"] - shift[None, :]).astype(jnp.float32)

    # head layer 1: fuse sem/ctr/off 3x3 convs along output channels -> (9F, 3F)
    w1 = jnp.concatenate([params["sem_w1"], params["ctr_w1"], params["off_w1"]], axis=-1)
    h1_w = w1.reshape(9 * f, 3 * f).astype(jnp.bfloat16)
    h1_b = jnp.concatenate([params["sem_b1"], params["ctr_b1"], params["off_b1"]],
                           axis=-1).astype(jnp.float32)

    # head layer 2: block-diagonal fused 1x1 conv -> [sem(nc) | center(1) | offset(2)]
    nc = params["sem_w2"].shape[-1]
    z = lambda r, c: jnp.zeros((r, c), jnp.float32)
    row_sem = jnp.concatenate([params["sem_w2"], z(f, 1), z(f, 2)], axis=1)
    row_ctr = jnp.concatenate([z(f, nc), params["ctr_w2"], z(f, 2)], axis=1)
    row_off = jnp.concatenate([z(f, nc), z(f, 1), params["off_w2"]], axis=1)
    h2_w = jnp.concatenate([row_sem, row_ctr, row_off], axis=0).astype(jnp.bfloat16)
    h2_b = jnp.concatenate([params["sem_b2"], params["ctr_b2"], params["off_b2"]],
                           axis=-1).astype(jnp.float32)
    return dict(bb_w=bb_w, bb_b=bb_b, h1_w=h1_w, h1_b=h1_b, h2_w=h2_w, h2_b=h2_b,
                num_classes=nc)


def get_panoptic_segmentation(sem_pred, center, offset, *, thing_ids, label_divisor,
                              stuff_area, threshold, nms_kernel, top_k, num_classes):
    """Simplified Panoptic-DeepLab grouping (JAX, per image; vmapped over batch).
    sem_pred: (H, W) int32; center: (1, H, W); offset: (2, H, W)."""
    h, w = sem_pred.shape
    ctr = center[0]
    pooled = lax.reduce_window(ctr, -jnp.inf, lax.max,
                               (nms_kernel, nms_kernel), (1, 1), "SAME")
    ctr_nms = jnp.where((ctr == pooled) & (ctr > threshold), ctr, 0.0)
    top_vals, top_idx = lax.top_k(ctr_nms.reshape(-1), top_k)
    valid = top_vals > 0.0
    ctr_y = (top_idx // w).astype(jnp.float32)
    ctr_x = (top_idx % w).astype(jnp.float32)

    yy, xx = jnp.meshgrid(jnp.arange(h, dtype=jnp.float32),
                          jnp.arange(w, dtype=jnp.float32), indexing="ij")
    py = yy + offset[0]
    px = xx + offset[1]
    dist = (py[..., None] - ctr_y) ** 2 + (px[..., None] - ctr_x) ** 2    # (H, W, K)
    dist = jnp.where(valid, dist, jnp.inf)
    inst_id = jnp.argmin(dist, axis=-1).astype(jnp.int32) + 1
    any_center = jnp.any(valid)

    thing_mask = jnp.isin(sem_pred, jnp.asarray(thing_ids, dtype=sem_pred.dtype))
    pan = sem_pred.astype(jnp.int32) * label_divisor
    pan = jnp.where(thing_mask & any_center, pan + inst_id, pan)

    counts = jnp.sum(jax.nn.one_hot(sem_pred, num_classes, dtype=jnp.int32), axis=(0, 1))
    area = counts[sem_pred]
    pan = jnp.where((~thing_mask) & (area < stuff_area), -1, pan)
    # TODO(synk): full get_panoptic_segmentation also voids unmatched thing pixels
    # and merges per-instance semantic votes; omitted in this synthetic version.
    return pan


def init_params(key, in_ch=3, feat_ch=32, num_classes=19):
    ks = jax.random.split(key, 8)

    def conv3x3(k, cin, cout):
        return jax.random.normal(k, (3, 3, cin, cout), jnp.float32) / jnp.sqrt(9.0 * cin)

    def conv1x1(k, cin, cout):
        return jax.random.normal(k, (cin, cout), jnp.float32) / jnp.sqrt(float(cin))

    return {
        "backbone_w": conv3x3(ks[0], in_ch, feat_ch), "backbone_b": jnp.zeros((1, feat_ch), jnp.float32),
        "sem_w1": conv3x3(ks[1], feat_ch, feat_ch), "sem_b1": jnp.zeros((1, feat_ch), jnp.float32),
        "sem_w2": conv1x1(ks[2], feat_ch, num_classes), "sem_b2": jnp.zeros((1, num_classes), jnp.float32),
        "ctr_w1": conv3x3(ks[3], feat_ch, feat_ch), "ctr_b1": jnp.zeros((1, feat_ch), jnp.float32),
        "ctr_w2": conv1x1(ks[4], feat_ch, 1), "ctr_b2": jnp.zeros((1, 1), jnp.float32),
        "off_w1": conv3x3(ks[5], feat_ch, feat_ch), "off_b1": jnp.zeros((1, feat_ch), jnp.float32),
        "off_w2": conv1x1(ks[6], feat_ch, 2), "off_b2": jnp.zeros((1, 2), jnp.float32),
    }


def panoptic_deeplab_forward(images_nchw, params, cfg):
    """Inference path of PanopticDeepLab.forward (self.training == False).
    Returns list[dict] with 'sem_seg' (C,H,W) and 'panoptic_seg' ((H,W), None)."""
    n, c, h, w = images_nchw.shape
    prep = prepare_params(params, cfg["pixel_mean"], cfg["pixel_std"])
    nc = prep["num_classes"]
    pixel_mean = cfg["pixel_mean"]

    post = functools.partial(
        get_panoptic_segmentation,
        thing_ids=tuple(cfg["thing_ids"]), label_divisor=cfg["label_divisor"],
        stuff_area=cfg["stuff_area"], threshold=cfg["threshold"],
        nms_kernel=cfg["nms_kernel"], top_k=cfg["top_k"], num_classes=nc)

    # TODO(synk): ImageList.from_tensors padding to size_divisibility and the
    # training-time losses (sem/center/offset) have no Pallas hot path here.
    @jax.jit
    def run(images, p):
        x = jnp.transpose(images, (0, 2, 3, 1)).astype(jnp.bfloat16)       # NHWC bf16
        # Normalization is folded into the backbone weights; padding with
        # pixel_mean keeps padded pixels at zero in normalized space.
        xcol = im2col_3x3(x, pad_vec=pixel_mean)                            # (N, H*W, 27)
        fused, pred = pallas_panoptic_fused(
            xcol, p["bb_w"], p["bb_b"], p["h1_w"], p["h1_b"], p["h2_w"], p["h2_b"],
            H=h, W=w, num_classes=nc)
        out4 = fused.reshape(n, nc + 3, h, w)     # already channel-major: no transpose
        sem = out4[:, :nc]
        center = out4[:, nc:nc + 1]
        offset = out4[:, nc + 1:]
        pred_hw = pred.reshape(n, h, w)
        pan = jax.vmap(post)(pred_hw, center, offset)
        return sem, pan

    sem, pan = run(images_nchw, prep)

    # 'sem_seg' carries raw logits (the original head output at inference);
    # softmax probabilities are only consumed by predict_instances (host-side).
    # TODO(synk): sem_seg_postprocess crop/resize is identity here; the
    # predict_instances host loop (np.unique, Instances/BitMasks) is not
    # Pallas-translatable.
    return [{"sem_seg": sem[i], "panoptic_seg": (pan[i], None)} for i in range(n)]


# --------------------------------- main -------------------------------------

if __name__ == "__main__":
    key = jax.random.PRNGKey(0)
    k_img, k_par = jax.random.split(key)

    N, C, H, W = 2, 3, 16, 16
    images = jax.random.uniform(k_img, (N, C, H, W), jnp.float32, 0.0, 255.0)

    cfg = {
        "pixel_mean": jnp.array([123.675, 116.28, 103.53], jnp.float32),   # (C,)
        "pixel_std": jnp.array([58.395, 57.12, 57.375], jnp.float32),      # (C,)
        "thing_ids": list(range(11, 19)),   # cityscapes thing classes (contiguous ids)
        "label_divisor": 1000,
        "stuff_area": 1,        # small value for the tiny 16x16 demo image
        "threshold": 0.1,
        "nms_kernel": 3,
        "top_k": 8,
    }
    params = init_params(k_par, in_ch=C, feat_ch=32, num_classes=19)

    results = panoptic_deeplab_forward(images, params, cfg)
    jax.block_until_ready(results)

    assert len(results) == N
    assert results[0]["sem_seg"].shape == (19, H, W)
    assert results[0]["panoptic_seg"][0].shape == (H, W)
    print("KERNEL_OK")
</pallas_src>

<mosaic_0001>
module attributes {stable_mosaic.version = 11 : i64} {
  func.func @_panoptic_fused_kernel(%arg0: i32, %arg1: memref<1x256x27xbf16, #tpu.memory_space<vmem>>, %arg2: memref<27x32xbf16, #tpu.memory_space<vmem>>, %arg3: memref<1x32xf32, #tpu.memory_space<vmem>>, %arg4: memref<288x96xbf16, #tpu.memory_space<vmem>>, %arg5: memref<1x96xf32, #tpu.memory_space<vmem>>, %arg6: memref<96x22xbf16, #tpu.memory_space<vmem>>, %arg7: memref<1x22xf32, #tpu.memory_space<vmem>>, %arg8: memref<1x22x256xf32, #tpu.memory_space<vmem>>, %arg9: memref<1x1x256xi32, #tpu.memory_space<vmem>>) attributes {dimension_semantics = [#tpu.dimension_semantics<parallel>], iteration_bounds = array<i64: 2>, scalar_prefetch = 0 : i64, scratch_operands = 0 : i64, tpu.core_type = #tpu.core_type<tc>, window_params = [{transform_indices = @transform_0, window_bounds = array<i64: 1, 256, 27>}, {pipeline_mode = #tpu.pipeline_mode<synchronous>, transform_indices = @transform_1, window_bounds = array<i64: 27, 32>}, {pipeline_mode = #tpu.pipeline_mode<synchronous>, transform_indices = @transform_2, window_bounds = array<i64: 1, 32>}, {pipeline_mode = #tpu.pipeline_mode<synchronous>, transform_indices = @transform_3, window_bounds = array<i64: 288, 96>}, {pipeline_mode = #tpu.pipeline_mode<synchronous>, transform_indices = @transform_4, window_bounds = array<i64: 1, 96>}, {pipeline_mode = #tpu.pipeline_mode<synchronous>, transform_indices = @transform_5, window_bounds = array<i64: 96, 22>}, {pipeline_mode = #tpu.pipeline_mode<synchronous>, transform_indices = @transform_6, window_bounds = array<i64: 1, 22>}, {transform_indices = @transform_7, window_bounds = array<i64: 1, 22, 256>}, {transform_indices = @transform_8, window_bounds = array<i64: 1, 1, 256>}]} {
    %c0 = arith.constant 0 : index
    %c0_0 = arith.constant 0 : index
    %c0_1 = arith.constant 0 : index
    %0 = vector.load %arg1[%c0, %c0_0, %c0_1] : memref<1x256x27xbf16, #tpu.memory_space<vmem>>, vector<1x256x27xbf16>
    %1 = vector.shape_cast %0 : vector<1x256x27xbf16> to vector<256x27xbf16>
    %c0_2 = arith.constant 0 : index
    %c0_3 = arith.constant 0 : index
    %2 = vector.load %arg2[%c0_2, %c0_3] : memref<27x32xbf16, #tpu.memory_space<vmem>>, vector<27x32xbf16>
    %cst = arith.constant dense<0.000000e+00> : vector<256x32xf32>
    %3 = tpu.matmul %1, %2, %cst {dimension_numbers = #tpu.dot_dimension_numbers<[1], [0], [0], [1], [0, 0, 1, 1], [], []>} : vector<256x27xbf16>, vector<27x32xbf16>, vector<256x32xf32> -> vector<256x32xf32>
    %c0_4 = arith.constant 0 : index
    %c0_5 = arith.constant 0 : index
    %4 = vector.load %arg3[%c0_4, %c0_5] : memref<1x32xf32, #tpu.memory_space<vmem>>, vector<1x32xf32>
    %5 = vector.broadcast %4 : vector<1x32xf32> to vector<256x32xf32>
    %6 = arith.addf %3, %5 : vector<256x32xf32>
    %cst_6 = arith.constant 0.000000e+00 : f32
    %7 = vector.broadcast %cst_6 : f32 to vector<256x32xf32>
    %8 = arith.maximumf %6, %7 : vector<256x32xf32>
    %cst_7 = arith.constant 0.000000e+00 : f32
    %9 = vector.broadcast %cst_7 : f32 to vector<17x32xf32>
    %10 = tpu.concatenate %9, %8, %9 in 0 : vector<17x32xf32>, vector<256x32xf32>, vector<17x32xf32> -> vector<290x32xf32>
    %11 = tpu.iota {dimensions = array<i32: 0>} : vector<256x32xi32>
    %c16_i32 = arith.constant 16 : i32
    %c0_i32 = arith.constant 0 : i32
    %12 = arith.cmpi eq, %c16_i32, %c0_i32 : i32
    %c1_i32 = arith.constant 1 : i32
    %13 = arith.select %12, %c1_i32, %c16_i32 : i32
    %14 = vector.broadcast %13 : i32 to vector<256x32xi32>
    %15 = arith.remsi %11, %14 : vector<256x32xi32>
    %c0_i32_8 = arith.constant 0 : i32
    %16 = vector.broadcast %c0_i32_8 : i32 to vector<256x32xi32>
    %17 = arith.cmpi ne, %15, %16 : vector<256x32xi32>
    %c0_i32_9 = arith.constant 0 : i32
    %18 = vector.broadcast %c0_i32_9 : i32 to vector<256x32xi32>
    %19 = arith.cmpi slt, %15, %18 : vector<256x32xi32>
    %c0_i32_10 = arith.constant 0 : i32
    %20 = arith.cmpi slt, %13, %c0_i32_10 : i32
    %21 = vector.broadcast %20 : i1 to vector<256x32xi1>
    %22 = vector.broadcast %21 : vector<256x32xi1> to vector<256x32xi1>
    %23 = arith.xori %19, %22 : vector<256x32xi1>
    %24 = arith.andi %23, %17 : vector<256x32xi1>
    %25 = vector.broadcast %13 : i32 to vector<256x32xi32>
    %26 = arith.addi %15, %25 : vector<256x32xi32>
    %27 = arith.select %24, %26, %15 : vector<256x32xi1>, vector<256x32xi32>
    %28 = vector.extract_strided_slice %10 {offsets = [0, 0], sizes = [256, 32], strides = [1, 1]} : vector<290x32xf32> to vector<256x32xf32>
    %c1_i32_11 = arith.constant 1 : i32
    %29 = vector.broadcast %c1_i32_11 : i32 to vector<256x32xi32>
    %30 = arith.cmpi sge, %27, %29 : vector<256x32xi32>
    %cst_12 = arith.constant 0.000000e+00 : f32
    %31 = vector.broadcast %cst_12 : f32 to vector<256x32xf32>
    %32 = arith.select %30, %28, %31 : vector<256x32xi1>, vector<256x32xf32>
    %33 = vector.extract_strided_slice %10 {offsets = [1, 0], sizes = [256, 32], strides = [1, 1]} : vector<290x32xf32> to vector<256x32xf32>
    %34 = vector.extract_strided_slice %10 {offsets = [2, 0], sizes = [256, 32], strides = [1, 1]} : vector<290x32xf32> to vector<256x32xf32>
    %c14_i32 = arith.constant 14 : i32
    %35 = vector.broadcast %c14_i32 : i32 to vector<256x32xi32>
    %36 = arith.cmpi sle, %27, %35 : vector<256x32xi32>
    %cst_13 = arith.constant 0.000000e+00 : f32
    %37 = vector.broadcast %cst_13 : f32 to vector<256x32xf32>
    %38 = arith.select %36, %34, %37 : vector<256x32xi1>, vector<256x32xf32>
    %39 = vector.extract_strided_slice %10 {offsets = [16, 0], sizes = [256, 32], strides = [1, 1]} : vector<290x32xf32> to vector<256x32xf32>
    %c1_i32_14 = arith.constant 1 : i32
    %40 = vector.broadcast %c1_i32_14 : i32 to vector<256x32xi32>
    %41 = arith.cmpi sge, %27, %40 : vector<256x32xi32>
    %cst_15 = arith.constant 0.000000e+00 : f32
    %42 = vector.broadcast %cst_15 : f32 to vector<256x32xf32>
    %43 = arith.select %41, %39, %42 : vector<256x32xi1>, vector<256x32xf32>
    %44 = vector.extract_strided_slice %10 {offsets = [17, 0], sizes = [256, 32], strides = [1, 1]} : vector<290x32xf32> to vector<256x32xf32>
    %45 = vector.extract_strided_slice %10 {offsets = [18, 0], sizes = [256, 32], strides = [1, 1]} : vector<290x32xf32> to vector<256x32xf32>
    %c14_i32_16 = arith.constant 14 : i32
    %46 = vector.broadcast %c14_i32_16 : i32 to vector<256x32xi32>
    %47 = arith.cmpi sle, %27, %46 : vector<256x32xi32>
    %cst_17 = arith.constant 0.000000e+00 : f32
    %48 = vector.broadcast %cst_17 : f32 to vector<256x32xf32>
    %49 = arith.select %47, %45, %48 : vector<256x32xi1>, vector<256x32xf32>
    %50 = vector.extract_strided_slice %10 {offsets = [32, 0], sizes = [256, 32], strides = [1, 1]} : vector<290x32xf32> to vector<256x32xf32>
    %c1_i32_18 = arith.constant 1 : i32
    %51 = vector.broadcast %c1_i32_18 : i32 to vector<256x32xi32>
    %52 = arith.cmpi sge, %27, %51 : vector<256x32xi32>
    %cst_19 = arith.constant 0.000000e+00 : f32
    %53 = vector.broadcast %cst_19 : f32 to vector<256x32xf32>
    %54 = arith.select %52, %50, %53 : vector<256x32xi1>, vector<256x32xf32>
    %55 = vector.extract_strided_slice %10 {offsets = [33, 0], sizes = [256, 32], strides = [1, 1]} : vector<290x32xf32> to vector<256x32xf32>
    %56 = vector.extract_strided_slice %10 {offsets = [34, 0], sizes = [256, 32], strides = [1, 1]} : vector<290x32xf32> to vector<256x32xf32>
    %c14_i32_20 = arith.constant 14 : i32
    %57 = vector.broadcast %c14_i32_20 : i32 to vector<256x32xi32>
    %58 = arith.cmpi sle, %27, %57 : vector<256x32xi32>
    %cst_21 = arith.constant 0.000000e+00 : f32
    %59 = vector.broadcast %cst_21 : f32 to vector<256x32xf32>
    %60 = arith.select %58, %56, %59 : vector<256x32xi1>, vector<256x32xf32>
    %61 = tpu.concatenate %32, %33, %38, %43, %44, %49, %54, %55, %60 in 1 : vector<256x32xf32>, vector<256x32xf32>, vector<256x32xf32>, vector<256x32xf32>, vector<256x32xf32>, vector<256x32xf32>, vector<256x32xf32>, vector<256x32xf32>, vector<256x32xf32> -> vector<256x288xf32>
    %62 = arith.truncf %61 : vector<256x288xf32> to vector<256x288xbf16>
    %c0_22 = arith.constant 0 : index
    %c0_23 = arith.constant 0 : index
    %63 = vector.load %arg4[%c0_22, %c0_23] : memref<288x96xbf16, #tpu.memory_space<vmem>>, vector<288x96xbf16>
    %cst_24 = arith.constant dense<0.000000e+00> : vector<256x96xf32>
    %64 = tpu.matmul %62, %63, %cst_24 {dimension_numbers = #tpu.dot_dimension_numbers<[1], [0], [0], [1], [0, 0, 1, 1], [], []>} : vector<256x288xbf16>, vector<288x96xbf16>, vector<256x96xf32> -> vector<256x96xf32>
    %c0_25 = arith.constant 0 : index
    %c0_26 = arith.constant 0 : index
    %65 = vector.load %arg5[%c0_25, %c0_26] : memref<1x96xf32, #tpu.memory_space<vmem>>, vector<1x96xf32>
    %66 = vector.broadcast %65 : vector<1x96xf32> to vector<256x96xf32>
    %67 = arith.addf %64, %66 : vector<256x96xf32>
    %cst_27 = arith.constant 0.000000e+00 : f32
    %68 = vector.broadcast %cst_27 : f32 to vector<256x96xf32>
    %69 = arith.maximumf %67, %68 : vector<256x96xf32>
    %70 = arith.truncf %69 : vector<256x96xf32> to vector<256x96xbf16>
    %c0_28 = arith.constant 0 : index
    %c0_29 = arith.constant 0 : index
    %71 = vector.load %arg6[%c0_28, %c0_29] : memref<96x22xbf16, #tpu.memory_space<vmem>>, vector<96x22xbf16>
    %cst_30 = arith.constant dense<0.000000e+00> : vector<256x22xf32>
    %72 = tpu.matmul %70, %71, %cst_30 {dimension_numbers = #tpu.dot_dimension_numbers<[1], [0], [0], [1], [0, 0, 1, 1], [], []>} : vector<256x96xbf16>, vector<96x22xbf16>, vector<256x22xf32> -> vector<256x22xf32>
    %c0_31 = arith.constant 0 : index
    %c0_32 = arith.constant 0 : index
    %73 = vector.load %arg7[%c0_31, %c0_32] : memref<1x22xf32, #tpu.memory_space<vmem>>, vector<1x22xf32>
    %74 = vector.broadcast %73 : vector<1x22xf32> to vector<256x22xf32>
    %75 = arith.addf %72, %74 : vector<256x22xf32>
    %76 = tpu.iota {dimensions = array<i32: 1>} : vector<256x22xi32>
    %c19_i32 = arith.constant 19 : i32
    %77 = vector.broadcast %c19_i32 : i32 to vector<256x22xi32>
    %78 = arith.cmpi eq, %76, %77 : vector<256x22xi32>
    %79 = arith.negf %75 : vector<256x22xf32>
    %80 = math.exp %79 : vector<256x22xf32>
    %cst_33 = arith.constant 1.000000e+00 : f32
    %81 = vector.broadcast %cst_33 : f32 to vector<256x22xf32>
    %82 = arith.addf %81, %80 : vector<256x22xf32>
    %83 = arith.divf %81, %82 : vector<256x22xf32>
    %84 = arith.select %78, %83, %75 : vector<256x22xi1>, vector<256x22xf32>
    %85 = tpu.transpose %84, [1, 0] : vector<256x22xf32> -> vector<22x256xf32>
    %c0_34 = arith.constant 0 : index
    %c0_35 = arith.constant 0 : index
    %c0_36 = arith.constant 0 : index
    %86 = vector.load %arg8[%c0_34, %c0_35, %c0_36] : memref<1x22x256xf32, #tpu.memory_space<vmem>>, vector<1x22x256xf32>
    %87 = vector.shape_cast %86 : vector<1x22x256xf32> to vector<22x256xf32>
    %88 = vector.shape_cast %85 : vector<22x256xf32> to vector<1x22x256xf32>
    tpu.vector_store %arg8[%c0_34, %c0_35, %c0_36], %88 {strides = array<i32>} : memref<1x22x256xf32, #tpu.memory_space<vmem>>, vector<1x22x256xf32>,
    %89 = vector.extract_strided_slice %85 {offsets = [0, 0], sizes = [19, 256], strides = [1, 1]} : vector<22x256xf32> to vector<19x256xf32>
    %cst_37 = arith.constant dense<0xFF800000> : vector<256xf32>
    %90 = vector.multi_reduction <maximumf>, %89, %cst_37 [0] : vector<19x256xf32> to vector<256xf32>
    %91 = vector.shape_cast %90 : vector<256xf32> to vector<1x256xf32>
    %92 = tpu.iota {dimensions = array<i32: 0>} : vector<19x256xi32>
    %93 = vector.broadcast %91 : vector<1x256xf32> to vector<19x256xf32>
    %94 = arith.cmpf oeq, %89, %93 : vector<19x256xf32>
    %c19_i32_38 = arith.constant 19 : i32
    %95 = vector.broadcast %c19_i32_38 : i32 to vector<19x256xi32>
    %96 = arith.select %94, %92, %95 : vector<19x256xi1>, vector<19x256xi32>
    %cst_39 = arith.constant dense<2147483647> : vector<256xi32>
    %97 = vector.multi_reduction <minsi>, %96, %cst_39 [0] : vector<19x256xi32> to vector<256xi32>
    %98 = vector.shape_cast %97 : vector<256xi32> to vector<1x256xi32>
    %c0_40 = arith.constant 0 : index
    %c0_41 = arith.constant 0 : index
    %c0_42 = arith.constant 0 : index
    %99 = vector.load %arg9[%c0_40, %c0_41, %c0_42] : memref<1x1x256xi32, #tpu.memory_space<vmem>>, vector<1x1x256xi32>
    %100 = vector.shape_cast %99 : vector<1x1x256xi32> to vector<1x256xi32>
    %101 = vector.shape_cast %98 : vector<1x256xi32> to vector<1x1x256xi32>
    tpu.vector_store %arg9[%c0_40, %c0_41, %c0_42], %101 {strides = array<i32>} : memref<1x1x256xi32, #tpu.memory_space<vmem>>, vector<1x1x256xi32>,
    return
  }
  func.func @transform_0(%arg0: i32) -> (i32, i32, i32) {
    %c0_i32 = arith.constant 0 : i32
    %c0_i32_0 = arith.constant 0 : i32
    %c0_i32_1 = arith.constant 0 : i32
    return %arg0, %c0_i32, %c0_i32_0 : i32, i32, i32
  }
  func.func @transform_1(%arg0: i32) -> (i32, i32) {
    %c0_i32 = arith.constant 0 : i32
    %c0_i32_0 = arith.constant 0 : i32
    %c0_i32_1 = arith.constant 0 : i32
    return %c0_i32, %c0_i32_0 : i32, i32
  }
  func.func @transform_2(%arg0: i32) -> (i32, i32) {
    %c0_i32 = arith.constant 0 : i32
    %c0_i32_0 = arith.constant 0 : i32
    %c0_i32_1 = arith.constant 0 : i32
    return %c0_i32, %c0_i32_0 : i32, i32
  }
  func.func @transform_3(%arg0: i32) -> (i32, i32) {
    %c0_i32 = arith.constant 0 : i32
    %c0_i32_0 = arith.constant 0 : i32
    %c0_i32_1 = arith.constant 0 : i32
    return %c0_i32, %c0_i32_0 : i32, i32
  }
  func.func @transform_4(%arg0: i32) -> (i32, i32) {
    %c0_i32 = arith.constant 0 : i32
    %c0_i32_0 = arith.constant 0 : i32
    %c0_i32_1 = arith.constant 0 : i32
    return %c0_i32, %c0_i32_0 : i32, i32
  }
  func.func @transform_5(%arg0: i32) -> (i32, i32) {
    %c0_i32 = arith.constant 0 : i32
    %c0_i32_0 = arith.constant 0 : i32
    %c0_i32_1 = arith.constant 0 : i32
    return %c0_i32, %c0_i32_0 : i32, i32
  }
  func.func @transform_6(%arg0: i32) -> (i32, i32) {
    %c0_i32 = arith.constant 0 : i32
    %c0_i32_0 = arith.constant 0 : i32
    %c0_i32_1 = arith.constant 0 : i32
    return %c0_i32, %c0_i32_0 : i32, i32
  }
  func.func @transform_7(%arg0: i32) -> (i32, i32, i32) {
    %c0_i32 = arith.constant 0 : i32
    %c0_i32_0 = arith.constant 0 : i32
    %c0_i32_1 = arith.constant 0 : i32
    return %arg0, %c0_i32, %c0_i32_0 : i32, i32, i32
  }
  func.func @transform_8(%arg0: i32) -> (i32, i32, i32) {
    %c0_i32 = arith.constant 0 : i32
    %c0_i32_0 = arith.constant 0 : i32
    %c0_i32_1 = arith.constant 0 : i32
    return %arg0, %c0_i32, %c0_i32_0 : i32, i32, i32
  }
}

</mosaic_0001>

<llo_original>
// kernel: eq.10
$region0: #{eq.10}
  %s0 = inlined_call_operand.vmem [shape: s32[2,256], index: 0, kind: input, shape index: {}]
  %s1 = inlined_call_operand.vmem [shape: s32[2,16,16], index: 1, kind: output, shape index: {}]
  $region1: #{eq.10} parent=0
    #allocation0 [shape = 'u8[8192]{0}', space=vmem, size = 0x2000, scoped, tag = 'scoped mem for input reshape']
    %s3 = ssub.s32 4, 1
    %s4 = scalar_lea.vmem %s0, 2
    %v5 = vld [vmem:[%s4] sm:%s3]
    %s6 = scalar_lea.vmem [#allocation0], 8
    %7 = vst [vmem:[%s6] sm:%s3] %v5
    %v8 = vld [vmem:[%s0] sm:%s3]
    %9 = vst [vmem:[#allocation0] sm:%s3] %v8
    %v10 = vld [vmem:[#allocation0] sm:$0x3]
    %vm11 = vcmask 130048
    %12 = vst.msk [vmem:[%s1] ss:$16 sm:$0x3] %vm11, %v10
    %s13 = scalar_lea.vmem [#allocation0], 8
    %v14 = vld [vmem:[%s13] sm:$0x3]
    %vm15 = vcmask 130048
    %s16 = scalar_lea.vmem %s1, 8
    %17 = vst.msk [vmem:[%s16] ss:$16 sm:$0x3] %vm15, %v14
    %v18 = vld.sshfl [vmem:[#allocation0] sm:$0xff pattern:$0x99999180]
    %19 = vrot.lane.b32.xlu0 %v18, 112
    %v20 = vpop.permute.xlu0 %19
    %vm21 = vcmask 130048
    %s22 = scalar_lea.vmem %s1, 1
    %23 = vst.msk [vmem:[%s22] ss:$8 sm:$0xf] %vm21, %v20
    %v24 = vld.sshfl [vmem:[#allocation0] sm:$0xff pattern:$0x99999180]
    %25 = vrot.lane.b32.xlu0 %v24, 96
    %v26 = vpop.permute.xlu0 %25
    %vm27 = vcmask 130048
    %s28 = scalar_lea.vmem %s1, 2
    %29 = vst.msk [vmem:[%s28] ss:$8 sm:$0xf] %vm27, %v26
    %v30 = vld.sshfl [vmem:[#allocation0] sm:$0xff pattern:$0x99999180]
    %31 = vrot.lane.b32.xlu0 %v30, 80
    %v32 = vpop.permute.xlu0 %31
    %vm33 = vcmask 130048
    %s34 = scalar_lea.vmem %s1, 3
    %35 = vst.msk [vmem:[%s34] ss:$8 sm:$0xf] %vm33, %v32
    %v36 = vld.sshfl [vmem:[#allocation0] sm:$0xff pattern:$0x99999180]
    %37 = vrot.lane.b32.xlu0 %v36, 64
    %v38 = vpop.permute.xlu0 %37
    %vm39 = vcmask 130048
    %s40 = scalar_lea.vmem %s1, 4
    %41 = vst.msk [vmem:[%s40] ss:$8 sm:$0xf] %vm39, %v38
    %v42 = vld.sshfl [vmem:[#allocation0] sm:$0xff pattern:$0x99999180]
    %43 = vrot.lane.b32.xlu0 %v42, 48
    %v44 = vpop.permute.xlu0 %43
    %vm45 = vcmask 130048
    %s46 = scalar_lea.vmem %s1, 5
    %47 = vst.msk [vmem:[%s46] ss:$8 sm:$0xf] %vm45, %v44
    %v48 = vld.sshfl [vmem:[#allocation0] sm:$0xff pattern:$0x99999180]
    %49 = vrot.lane.b32.xlu0 %v48, 32
    %v50 = vpop.permute.xlu0 %49
    %vm51 = vcmask 130048
    %s52 = scalar_lea.vmem %s1, 6
    %53 = vst.msk [vmem:[%s52] ss:$8 sm:$0xf] %vm51, %v50
    %v54 = vld.sshfl [vmem:[#allocation0] sm:$0xff pattern:$0x99999180]
    %55 = vrot.lane.b32.xlu0 %v54, 16
    %v56 = vpop.permute.xlu0 %55
    %vm57 = vcmask 130048
    %s58 = scalar_lea.vmem %s1, 7
    %59 = vst.msk [vmem:[%s58] ss:$8 sm:$0xf] %vm57, %v56

// kernel: run.1
$region0: #{run.1}
  #allocation0 [shape = 'u32[]', space=smem, size = 0x4, offset = 0x4, fixed_abs, tag = 'smem constant byte address 0x4 - core index']
  #allocation1 [shape = 'u32[72,128]{1,0:T(1,128)}', space=vmem, size = 0x9000, scoped, tag = 'internal scratch']
  %s0 = inlined_call_operand.vmem [shape: bf16[2,256,27], index: 0, kind: input, shape index: {}]
  %s1 = inlined_call_operand.vmem [shape: bf16[27,32], index: 1, kind: input, shape index: {}]
  %s2 = inlined_call_operand.vmem [shape: f32[1,32], index: 2, kind: input, shape index: {}]
  %s3 = inlined_call_operand.vmem [shape: bf16[288,96], index: 3, kind: input, shape index: {}]
  %s4 = inlined_call_operand.vmem [shape: f32[1,96], index: 4, kind: input, shape index: {}]
  %s5 = inlined_call_operand.vmem [shape: bf16[96,22], index: 5, kind: input, shape index: {}]
  %s6 = inlined_call_operand.vmem [shape: f32[1,22], index: 6, kind: input, shape index: {}]
  %s7 = inlined_call_operand.vmem [shape: f32[2,22,256], index: 7, kind: output, shape index: {0}]
  %s8 = inlined_call_operand.vmem [shape: s32[2,1,256], index: 8, kind: output, shape index: {1}]
  %9 = xla_tuple %s7, %s8
  %s10 = sld [smem:[#allocation0]]
  $region69: #{run.1} parent=0
    _
  %s12 = ssub.s32 1, %s10
  %s13 = scalar_select 0, %s12, %s10
  loop: start=0, step=1, limit=4
  $region2: #{run.1} parent=0 // loop_pre_header
    _
  $region3: #{run.1} parent=0 // loop_header
    %s15 = sphi 0, %s19
    %p16 = scmp.ge.s32.totalorder %s15, 4
    %s25 = sphi 0, %s27
    %s28 = sphi 0, %s25
    %s29 = sphi 0, %s28
    %s45 = sphi 0, %s29
    %s49 = sphi 0, %s49
    %s51 = sphi 0, %s49
    %s52 = sphi 0, %s51
    %s66 = sphi 0, %s52
    %s70 = sphi 0, %s70
    %s72 = sphi 0, %s70
    %s73 = sphi 0, %s72
    %s87 = sphi 0, %s73
    %s91 = sphi 0, %s91
    %s93 = sphi 0, %s91
    %s94 = sphi 0, %s93
    %s108 = sphi 0, %s94
    %s112 = sphi 0, %s112
    %s114 = sphi 0, %s112
    %s115 = sphi 0, %s114
    %s129 = sphi 0, %s115
    %s133 = sphi 0, %s133
    %s135 = sphi 0, %s133
    %s136 = sphi 0, %s135
    %s150 = sphi 0, %s136
    %s154 = sphi 0, %s154
    %s156 = sphi 0, %s154
    %s157 = sphi 0, %s156
    %s171 = sphi 0, %s157
    %s177 = sphi 0, %s179
    %s180 = sphi 0, %s177
    %s181 = sphi 0, %s180
    %s197 = sphi 0, %s181
    %s203 = sphi 0, %s205
    %s206 = sphi 0, %s203
    %s207 = sphi 0, %s206
    %s223 = sphi 0, %s207
  $region4: #{run.1} parent=0 // loop_header_branch
    %18 = sbr.rel (%p16) target = $region8
  $region5: #{run.1} parent=0 // loop_body
    %s20 = ssub.s32 %s15, 1
    %s21 = ssub.s32 %s15, 2
    %s22 = sadd.s32 %s15, 1
    %s23 = ssub.s32 %s15, %s22
    %p24 = scmp.eq.s32.totalorder %s23, 0
    %s26 = sadd.s32 %s25, 1
    %s27 = scalar_select %p24, %s25, %s26
    %p30 = pneg %p24
    %p31 = scmp.eq.s32.totalorder %s15, 1
    %p32 = por %p30, %p31
    %p33 = scmp.ne.s32.totalorder %s25, %s28
    %p34 = scmp.eq.s32.totalorder %s15, 0
    %p35 = por %p33, %p34
    %p36 = scmp.ne.s32.totalorder %s25, %s28
    %p37 = scmp.eq.s32.totalorder %s20, 1
    %p38 = por %p36, %p37
    %p39 = scmp.ne.s32.totalorder %s28, %s29
    %p40 = scmp.eq.s32.totalorder %s20, 0
    %p41 = por %p39, %p40
    %p42 = scmp.ne.s32.totalorder %s28, %s29
    %p43 = scmp.eq.s32.totalorder %s21, 1
    %p44 = por %p42, %p43
    %p46 = scmp.ne.s32.totalorder %s29, %s45
    %p47 = scmp.eq.s32.totalorder %s21, 0
    %p48 = por %p46, %p47
    %s50 = sadd.s32 %s49, 1
    %p53 = scmp.eq.s32.totalorder %s15, 1
    %p54 = scmp.ne.s32.totalorder %s49, %s51
    %p55 = scmp.eq.s32.totalorder %s15, 0
    %p56 = por %p54, %p55
    %p57 = scmp.ne.s32.totalorder %s49, %s51
    %p58 = scmp.eq.s32.totalorder %s20, 1
    %p59 = por %p57, %p58
    %p60 = scmp.ne.s32.totalorder %s51, %s52
    %p61 = scmp.eq.s32.totalorder %s20, 0
    %p62 = por %p60, %p61
    %p63 = scmp.ne.s32.totalorder %s51, %s52
    %p64 = scmp.eq.s32.totalorder %s21, 1
    %p65 = por %p63, %p64
    %p67 = scmp.ne.s32.totalorder %s52, %s66
    %p68 = scmp.eq.s32.totalorder %s21, 0
    %p69 = por %p67, %p68
    %s71 = sadd.s32 %s70, 1
    %p74 = scmp.eq.s32.totalorder %s15, 1
    %p75 = scmp.ne.s32.totalorder %s70, %s72
    %p76 = scmp.eq.s32.totalorder %s15, 0
    %p77 = por %p75, %p76
    %p78 = scmp.ne.s32.totalorder %s70, %s72
    %p79 = scmp.eq.s32.totalorder %s20, 1
    %p80 = por %p78, %p79
    %p81 = scmp.ne.s32.totalorder %s72, %s73
    %p82 = scmp.eq.s32.totalorder %s20, 0
    %p83 = por %p81, %p82
    %p84 = scmp.ne.s32.totalorder %s72, %s73
    %p85 = scmp.eq.s32.totalorder %s21, 1
    %p86 = por %p84, %p85
    %p88 = scmp.ne.s32.totalorder %s73, %s87
    %p89 = scmp.eq.s32.totalorder %s21, 0
    %p90 = por %p88, %p89
    %s92 = sadd.s32 %s91, 1
    %p95 = scmp.eq.s32.totalorder %s15, 1
    %p96 = scmp.ne.s32.totalorder %s91, %s93
    %p97 = scmp.eq.s32.totalorder %s15, 0
    %p98 = por %p96, %p97
    %p99 = scmp.ne.s32.totalorder %s91, %s93
    %p100 = scmp.eq.s32.totalorder %s20, 1
    %p101 = por %p99, %p100
    %p102 = scmp.ne.s32.totalorder %s93, %s94
    %p103 = scmp.eq.s32.totalorder %s20, 0
    %p104 = por %p102, %p103
    %p105 = scmp.ne.s32.totalorder %s93, %s94
    %p106 = scmp.eq.s32.totalorder %s21, 1
    %p107 = por %p105, %p106
    %p109 = scmp.ne.s32.totalorder %s94, %s108
    %p110 = scmp.eq.s32.totalorder %s21, 0
    %p111 = por %p109, %p110
    %s113 = sadd.s32 %s112, 1
    %p116 = scmp.eq.s32.totalorder %s15, 1
    %p117 = scmp.ne.s32.totalorder %s112, %s114
    %p118 = scmp.eq.s32.totalorder %s15, 0
    %p119 = por %p117, %p118
    %p120 = scmp.ne.s32.totalorder %s112, %s114
    %p121 = scmp.eq.s32.totalorder %s20, 1
    %p122 = por %p120, %p121
    %p123 = scmp.ne.s32.totalorder %s114, %s115
    %p124 = scmp.eq.s32.totalorder %s20, 0
    %p125 = por %p123, %p124
    %p126 = scmp.ne.s32.totalorder %s114, %s115
    %p127 = scmp.eq.s32.totalorder %s21, 1
    %p128 = por %p126, %p127
    %p130 = scmp.ne.s32.totalorder %s115, %s129
    %p131 = scmp.eq.s32.totalorder %s21, 0
    %p132 = por %p130, %p131
    %s134 = sadd.s32 %s133, 1
    %p137 = scmp.eq.s32.totalorder %s15, 1
    %p138 = scmp.ne.s32.totalorder %s133, %s135
    %p139 = scmp.eq.s32.totalorder %s15, 0
    %p140 = por %p138, %p139
    %p141 = scmp.ne.s32.totalorder %s133, %s135
    %p142 = scmp.eq.s32.totalorder %s20, 1
    %p143 = por %p141, %p142
    %p144 = scmp.ne.s32.totalorder %s135, %s136
    %p145 = scmp.eq.s32.totalorder %s20, 0
    %p146 = por %p144, %p145
    %p147 = scmp.ne.s32.totalorder %s135, %s136
    %p148 = scmp.eq.s32.totalorder %s21, 1
    %p149 = por %p147, %p148
    %p151 = scmp.ne.s32.totalorder %s136, %s150
    %p152 = scmp.eq.s32.totalorder %s21, 0
    %p153 = por %p151, %p152
    %s155 = sadd.s32 %s154, 1
    %p158 = scmp.eq.s32.totalorder %s15, 1
    %p159 = scmp.ne.s32.totalorder %s154, %s156
    %p160 = scmp.eq.s32.totalorder %s15, 0
    %p161 = por %p159, %p160
    %p162 = scmp.ne.s32.totalorder %s154, %s156
    %p163 = scmp.eq.s32.totalorder %s20, 1
    %p164 = por %p162, %p163
    %p165 = scmp.ne.s32.totalorder %s156, %s157
    %p166 = scmp.eq.s32.totalorder %s20, 0
    %p167 = por %p165, %p166
    %p168 = scmp.ne.s32.totalorder %s156, %s157
    %p169 = scmp.eq.s32.totalorder %s21, 1
    %p170 = por %p168, %p169
    %p172 = scmp.ne.s32.totalorder %s157, %s171
    %p173 = scmp.eq.s32.totalorder %s21, 0
    %p174 = por %p172, %p173
    %s175 = ssub.s32 %s15, %s22
    %p176 = scmp.eq.s32.totalorder %s175, 0
    %s178 = sadd.s32 %s177, 1
    %s179 = scalar_select %p176, %s177, %s178
    %p182 = pneg %p176
    %p183 = scmp.eq.s32.totalorder %s15, 1
    %p184 = por %p182, %p183
    %p185 = scmp.ne.s32.totalorder %s177, %s180
    %p186 = scmp.eq.s32.totalorder %s15, 0
    %p187 = por %p185, %p186
    %p188 = scmp.ne.s32.totalorder %s177, %s180
    %p189 = scmp.eq.s32.totalorder %s20, 1
    %p190 = por %p188, %p189
    %p191 = scmp.ne.s32.totalorder %s180, %s181
    %p192 = scmp.eq.s32.totalorder %s20, 0
    %p193 = por %p191, %p192
    %p194 = scmp.ne.s32.totalorder %s180, %s181
    %p195 = scmp.eq.s32.totalorder %s21, 1
    %p196 = por %p194, %p195
    %p198 = scmp.ne.s32.totalorder %s181, %s197
    %p199 = scmp.eq.s32.totalorder %s21, 0
    %p200 = por %p198, %p199
    %s201 = ssub.s32 %s15, %s22
    %p202 = scmp.eq.s32.totalorder %s201, 0
    %s204 = sadd.s32 %s203, 1
    %s205 = scalar_select %p202, %s203, %s204
    %p208 = pneg %p202
    %p209 = scmp.eq.s32.totalorder %s15, 1
    %p210 = por %p208, %p209
    %p211 = scmp.ne.s32.totalorder %s203, %s206
    %p212 = scmp.eq.s32.totalorder %s15, 0
    %p213 = por %p211, %p212
    %p214 = scmp.ne.s32.totalorder %s203, %s206
    %p215 = scmp.eq.s32.totalorder %s20, 1
    %p216 = por %p214, %p215
    %p217 = scmp.ne.s32.totalorder %s206, %s207
    %p218 = scmp.eq.s32.totalorder %s20, 0
    %p219 = por %p217, %p218
    %p220 = scmp.ne.s32.totalorder %s206, %s207
    %p221 = scmp.eq.s32.totalorder %s21, 1
    %p222 = por %p220, %p221
    %p224 = scmp.ne.s32.totalorder %s207, %s223
    %p225 = scmp.eq.s32.totalorder %s21, 0
    %p226 = por %p224, %p225
    %p227 = scmp.le.s32.totalorder 1, %s15
    %p228 = scmp.lt.s32.totalorder %s15, 3
    %p229 = pnand %p227, %p228
    %p230 = pneg %p229
    // Predicated region
    $region9: #{run.1} parent=5 // pred_check
      _
    $region10: #{run.1} parent=5 // pred_check_branch
      %232 = sbr.rel (%p229) target = $region12
    $region11: #{run.1} parent=5 // pred_region
      %s233 = ssub.s32 %s15, 1
      // Predicated region
      $region13: #{run.1} parent=11 // pred_check
        %p234 = pneg %p62
      $region14: #{run.1} parent=11 // pred_check_branch
        %236 = sbr.rel (%p234) target = $region16
      $region15: #{run.1} parent=11 // pred_region
        _
      $region16: #{run.1} parent=11 // pred_fallthru
        _
      // Predicated region
      $region17: #{run.1} parent=11 // pred_check
        %p237 = pneg %p83
      $region18: #{run.1} parent=11 // pred_check_branch
        %239 = sbr.rel (%p237) target = $region20
      $region19: #{run.1} parent=11 // pred_region
        _
      $region20: #{run.1} parent=11 // pred_fallthru
        _
      // Predicated region
      $region21: #{run.1} parent=11 // pred_check
        %p240 = pneg %p104
      $region22: #{run.1} parent=11 // pred_check_branch
        %242 = sbr.rel (%p240) target = $region24
      $region23: #{run.1} parent=11 // pred_region
        _
      $region24: #{run.1} parent=11 // pred_fallthru
        _
      // Predicated region
      $region25: #{run.1} parent=11 // pred_check
        %p243 = pneg %p125
      $region26: #{run.1} parent=11 // pred_check_branch
        %245 = sbr.rel (%p243) target = $region28
      $region27: #{run.1} parent=11 // pred_region
        _
      $region28: #{run.1} parent=11 // pred_fallthru
        _
      // Predicated region
      $region29: #{run.1} parent=11 // pred_check
        %p246 = pneg %p146
      $region30: #{run.1} parent=11 // pred_check_branch
        %248 = sbr.rel (%p246) target = $region32
      $region31: #{run.1} parent=11 // pred_region
        _
      $region32: #{run.1} parent=11 // pred_fallthru
        _
      // Predicated region
      $region33: #{run.1} parent=11 // pred_check
        %p249 = pneg %p167
      $region34: #{run.1} parent=11 // pred_check_branch
        %251 = sbr.rel (%p249) target = $region36
      $region35: #{run.1} parent=11 // pred_region
        _
      $region36: #{run.1} parent=11 // pred_fallthru
        _
    $region12: #{run.1} parent=5 // pred_fallthru
      _
    %p252 = scmp.lt.s32.totalorder %s15, 2
    // Predicated region
    $region37: #{run.1} parent=5 // pred_check
      %p253 = pneg %p252
    $region38: #{run.1} parent=5 // pred_check_branch
      %255 = sbr.rel (%p253) target = $region40
    $region39: #{run.1} parent=5 // pred_region
      // Predicated region
      $region41: #{run.1} parent=39 // pred_check
        %p256 = pneg %p35
      $region42: #{run.1} parent=39 // pred_check_branch
        %258 = sbr.rel (%p256) target = $region44
      $region43: #{run.1} parent=39 // pred_region
        %p259 = scmp.lt.s32.totalorder %s15, 1
        %s260 = scalar_select %p259, %s15, 1
        %s261 = smul.addr %s260, 32
        %s262 = smul.addr %s261, 4
        %s263 = scalar_lea.vmem %s0, %s262
      $region44: #{run.1} parent=39 // pred_fallthru
        _
    $region40: #{run.1} parent=5 // pred_fallthru
      _
    %p264 = scmp.le.s32.totalorder 1, %s15
    %p265 = scmp.lt.s32.totalorder %s15, 3
    %p266 = pnand %p264, %p265
    %p267 = pneg %p266
    // Predicated region
    $region45: #{run.1} parent=5 // pred_check
      _
    $region46: #{run.1} parent=5 // pred_check_branch
      %269 = sbr.rel (%p266) target = $region48
    $region47: #{run.1} parent=5 // pred_region
      %s270 = ssub.s32 %s15, 1
      %p271 = scmp.lt.s32.totalorder %s20, 1
      %s272 = scalar_select %p271, %s20, 1
      %s273 = smul.addr %s272, 32
      %s274 = smul.addr %s273, 4
      %s275 = scalar_lea.vmem %s0, %s274
      %p276 = pneg %p41
      %p277 = pneg %p38
      %p278 = pneg %p62
      %p279 = pneg %p59
      %p280 = pneg %p83
      %p281 = pneg %p80
      %p282 = pneg %p104
      %p283 = pneg %p101
      %p284 = pneg %p125
      %p285 = pneg %p122
      %p286 = pneg %p146
      %p287 = pneg %p143
      %p288 = pneg %p167
      %p289 = pneg %p164
      %p290 = pneg %p193
      %p291 = pneg %p190
      %p292 = scmp.lt.s32.totalorder %s20, 1
      %s293 = scalar_select %p292, %s20, 1
      %s294 = smul.addr %s293, 6
      %s295 = smul.addr %s294, 8
      %s296 = scalar_lea.vmem %s7, %s295
      %p297 = pneg %p219
      %p298 = pneg %p216
      %p299 = scmp.lt.s32.totalorder %s20, 1
      %s300 = scalar_select %p299, %s20, 1
      %s301 = smul.addr %s300, 2
      %s302 = scalar_lea.vmem %s8, %s301
      %p303 = scmp.lt.s32.totalorder %s20, 1
      %s304 = scalar_select %p303, %s20, 1
      %s305 = smul.addr %s304, 32
      %s306 = smul.addr %s305, 4
      %s307 = scalar_lea.vmem %s0, %s306
      %p308 = scmp.lt.s32.totalorder %s20, 1
      %s309 = scalar_select %p308, %s20, 1
      %s310 = smul.addr %s309, 6
      %s311 = smul.addr %s310, 8
      %s312 = scalar_lea.vmem %s7, %s311
      %p313 = scmp.lt.s32.totalorder %s20, 1
      %s314 = scalar_select %p313, %s20, 1
      %s315 = smul.addr %s314, 2
      %s316 = scalar_lea.vmem %s8, %s315
      %v318 = vld [vmem:[%s307] sm:$0xf]
      %v319 = vld [vmem:[%s307 + $0x4] sm:$0xf]
      %v320 = vld [vmem:[%s307 + $0x8] sm:$0xf]
      %v321 = vld [vmem:[%s307 + $0xc] sm:$0xf]
      %v322 = vld [vmem:[%s307 + $0x10] sm:$0xf]
      %v323 = vld [vmem:[%s307 + $0x14] sm:$0xf]
      %v324 = vld [vmem:[%s307 + $0x18] sm:$0xf]
      %v325 = vld [vmem:[%s307 + $0x1c] sm:$0xf]
      %v326 = vld [vmem:[%s307 + $0x20] sm:$0xf]
      %v327 = vld [vmem:[%s307 + $0x24] sm:$0xf]
      %v328 = vld [vmem:[%s307 + $0x28] sm:$0xf]
      %v329 = vld [vmem:[%s307 + $0x2c] sm:$0xf]
      %v330 = vld [vmem:[%s307 + $0x30] sm:$0xf]
      %v331 = vld [vmem:[%s307 + $0x34] sm:$0xf]
      %v332 = vld [vmem:[%s307 + $0x38] sm:$0xf]
      %v333 = vld [vmem:[%s307 + $0x3c] sm:$0xf]
      %v334 = vld [vmem:[%s307 + $0x40] sm:$0xf]
      %v335 = vld [vmem:[%s307 + $0x44] sm:$0xf]
      %v336 = vld [vmem:[%s307 + $0x48] sm:$0xf]
      %v337 = vld [vmem:[%s307 + $0x4c] sm:$0xf]
      %v338 = vld [vmem:[%s307 + $0x50] sm:$0xf]
      %v339 = vld [vmem:[%s307 + $0x54] sm:$0xf]
      %v340 = vld [vmem:[%s307 + $0x58] sm:$0xf]
      %v341 = vld [vmem:[%s307 + $0x5c] sm:$0xf]
      %v342 = vld [vmem:[%s307 + $0x60] sm:$0xf]
      %v343 = vld [vmem:[%s307 + $0x64] sm:$0xf]
      %v344 = vld [vmem:[%s307 + $0x68] sm:$0xf]
      %v345 = vld [vmem:[%s307 + $0x6c] sm:$0xf]
      %v346 = vld [vmem:[%s307 + $0x70] sm:$0xf]
      %v347 = vld [vmem:[%s307 + $0x74] sm:$0xf]
      %v348 = vld [vmem:[%s307 + $0x78] sm:$0xf]
      %v349 = vld [vmem:[%s307 + $0x7c] sm:$0xf]
      %v350 = vld [vmem:[%s1] sm:$0xf]
      %v351 = vld [vmem:[%s1 + $0x4] sm:$0xf]
      %v352 = vld [vmem:[%s1 + $0x8] sm:$0xf]
      %v353 = vld [vmem:[%s1 + $0xc] sm:$0x3]
      %v354 = vld [vmem:[%s2] sm:$0x1]
      %v356 = vperm.slane %v354, 0
      %v390 = vunpack.c.l.b16 %v318
      %v391 = vunpack.c.l.b16 %v319
      %v392 = vunpack.c.l.b16 %v320
      %v393 = vunpack.c.l.b16 %v321
      %v394 = vunpack.c.l.b16 %v322
      %v395 = vunpack.c.l.b16 %v323
      %v396 = vunpack.c.l.b16 %v324
      %v397 = vunpack.c.l.b16 %v325
      %v398 = vunpack.c.l.b16 %v326
      %v399 = vunpack.c.l.b16 %v327
      %v400 = vunpack.c.l.b16 %v328
      %v401 = vunpack.c.l.b16 %v329
      %v402 = vunpack.c.l.b16 %v330
      %v403 = vunpack.c.l.b16 %v331
      %v404 = vunpack.c.l.b16 %v332
      %v405 = vunpack.c.l.b16 %v333
      %v406 = vunpack.c.l.b16 %v334
      %v407 = vunpack.c.l.b16 %v335
      %v408 = vunpack.c.l.b16 %v336
      %v409 = vunpack.c.l.b16 %v337
      %v410 = vunpack.c.l.b16 %v338
      %v411 = vunpack.c.l.b16 %v339
      %v412 = vunpack.c.l.b16 %v340
      %v413 = vunpack.c.l.b16 %v341
      %v414 = vunpack.c.l.b16 %v342
      %v415 = vunpack.c.l.b16 %v343
      %v416 = vunpack.c.l.b16 %v344
      %v417 = vunpack.c.l.b16 %v345
      %v418 = vunpack.c.l.b16 %v346
      %v419 = vunpack.c.l.b16 %v347
      %v420 = vunpack.c.l.b16 %v348
      %v421 = vunpack.c.l.b16 %v349
      %v422 = vpack.c.b16 %v391, %v390
      %v423 = vpack.c.b16 %v393, %v392
      %v424 = vpack.c.b16 %v395, %v394
      %v425 = vpack.c.b16 %v397, %v396
      %v426 = vpack.c.b16 %v399, %v398
      %v427 = vpack.c.b16 %v401, %v400
      %v428 = vpack.c.b16 %v403, %v402
      %v429 = vpack.c.b16 %v405, %v404
      %v430 = vpack.c.b16 %v407, %v406
      %v431 = vpack.c.b16 %v409, %v408
      %v432 = vpack.c.b16 %v411, %v410
      %v433 = vpack.c.b16 %v413, %v412
      %v434 = vpack.c.b16 %v415, %v414
      %v435 = vpack.c.b16 %v417, %v416
      %v436 = vpack.c.b16 %v419, %v418
      %v437 = vpack.c.b16 %v421, %v420
      %v442 = vunpack.c.l.b16 %v350
      %v443 = vunpack.c.l.b16 %v351
      %v444 = vunpack.c.l.b16 %v352
      %v445 = vunpack.c.l.b16 %v353
      %v446 = vpack.c.b16 %v443, %v442
      %v447 = vpack.c.b16 %v445, %v444
      %vm449 = vcmask 220160
      %v451 = vsel %vm449, %v422, 0
      %v454 = vsel %vm449, %v423, 0
      %v457 = vsel %vm449, %v424, 0
      %v460 = vsel %vm449, %v425, 0
      %v463 = vsel %vm449, %v426, 0
      %v466 = vsel %vm449, %v427, 0
      %v469 = vsel %vm449, %v428, 0
      %v472 = vsel %vm449, %v429, 0
      %v475 = vsel %vm449, %v430, 0
      %v478 = vsel %vm449, %v431, 0
      %v481 = vsel %vm449, %v432, 0
      %v484 = vsel %vm449, %v433, 0
      %v487 = vsel %vm449, %v434, 0
      %v490 = vsel %vm449, %v435, 0
      %v493 = vsel %vm449, %v436, 0
      %v496 = vsel %vm449, %v437, 0
      %vm498 = vcmask 1044480
      %vm499 = vcmask 1045504
      %v500 = vsel %vm498, 4294967295, 65535
      %v501 = vsel %vm499, %v500, 0
      %v503 = vand.u32 %v447, %v501
      %505 = vmatpush.bf16.msra.mxu0 0
      %506 = vmatpush.bf16.msra.mxu0 0
      %507 = vmatpush.bf16.msra.mxu0 0
      %508 = vmatpush.bf16.msra.mxu0 0
      %509 = vmatpush.bf16.msra.mxu0 0
      %510 = vmatpush.bf16.msra.mxu0 0
      %511 = vmatpush.bf16.msra.mxu0 %v503
      %512 = vmatpush.bf16.msra.mxu0 %v446
      %513 = vmatmul.bf16.gmra.mxu0 %v451
      %v514 = vpop.f32.mrf.mxu0
      %v515 = vadd.f32 %v356, %v514
      %v516 = vpop.f32.mrf.mxu0
      %v517 = vadd.f32 %v356, %v516
      %518 = vmatmul.bf16.gmra.mxu0 %v454
      %v519 = vpop.f32.mrf.mxu0
      %v520 = vadd.f32 %v356, %v519
      %v521 = vpop.f32.mrf.mxu0
      %v522 = vadd.f32 %v356, %v521
      %523 = vmatmul.bf16.gmra.mxu0 %v457
      %v524 = vpop.f32.mrf.mxu0
      %v525 = vadd.f32 %v356, %v524
      %v526 = vpop.f32.mrf.mxu0
      %v527 = vadd.f32 %v356, %v526
      %528 = vmatmul.bf16.gmra.mxu0 %v460
      %v529 = vpop.f32.mrf.mxu0
      %v530 = vadd.f32 %v356, %v529
      %v531 = vpop.f32.mrf.mxu0
      %v532 = vadd.f32 %v356, %v531
      %533 = vmatmul.bf16.gmra.mxu0 %v463
      %v534 = vpop.f32.mrf.mxu0
      %v535 = vadd.f32 %v356, %v534
      %v536 = vpop.f32.mrf.mxu0
      %v537 = vadd.f32 %v356, %v536
      %538 = vmatmul.bf16.gmra.mxu0 %v466
      %v539 = vpop.f32.mrf.mxu0
      %v540 = vadd.f32 %v356, %v539
      %v541 = vpop.f32.mrf.mxu0
      %v542 = vadd.f32 %v356, %v541
      %543 = vmatmul.bf16.gmra.mxu0 %v469
      %v544 = vpop.f32.mrf.mxu0
      %v545 = vadd.f32 %v356, %v544
      %v546 = vpop.f32.mrf.mxu0
      %v547 = vadd.f32 %v356, %v546
      %548 = vmatmul.bf16.gmra.mxu0 %v472
      %v549 = vpop.f32.mrf.mxu0
      %v550 = vadd.f32 %v356, %v549
      %v551 = vpop.f32.mrf.mxu0
      %v552 = vadd.f32 %v356, %v551
      %553 = vmatmul.bf16.gmra.mxu0 %v475
      %v554 = vpop.f32.mrf.mxu0
      %v555 = vadd.f32 %v356, %v554
      %v556 = vpop.f32.mrf.mxu0
      %v557 = vadd.f32 %v356, %v556
      %558 = vmatmul.bf16.gmra.mxu0 %v478
      %v559 = vpop.f32.mrf.mxu0
      %v560 = vadd.f32 %v356, %v559
      %v561 = vpop.f32.mrf.mxu0
      %v562 = vadd.f32 %v356, %v561
      %563 = vmatmul.bf16.gmra.mxu0 %v481
      %v564 = vpop.f32.mrf.mxu0
      %v565 = vadd.f32 %v356, %v564
      %v566 = vpop.f32.mrf.mxu0
      %v567 = vadd.f32 %v356, %v566
      %568 = vmatmul.bf16.gmra.mxu0 %v484
      %v569 = vpop.f32.mrf.mxu0
      %v570 = vadd.f32 %v356, %v569
      %v571 = vpop.f32.mrf.mxu0
      %v572 = vadd.f32 %v356, %v571
      %573 = vmatmul.bf16.gmra.mxu0 %v487
      %v574 = vpop.f32.mrf.mxu0
      %v575 = vadd.f32 %v356, %v574
      %v576 = vpop.f32.mrf.mxu0
      %v577 = vadd.f32 %v356, %v576
      %578 = vmatmul.bf16.gmra.mxu0 %v490
      %v579 = vpop.f32.mrf.mxu0
      %v580 = vadd.f32 %v356, %v579
      %v581 = vpop.f32.mrf.mxu0
      %v582 = vadd.f32 %v356, %v581
      %583 = vmatmul.bf16.gmra.mxu0 %v493
      %v584 = vpop.f32.mrf.mxu0
      %v585 = vadd.f32 %v356, %v584
      %v586 = vpop.f32.mrf.mxu0
      %v587 = vadd.f32 %v356, %v586
      %588 = vmatmul.bf16.gmra.mxu0 %v496
      %v589 = vpop.f32.mrf.mxu0
      %v590 = vadd.f32 %v356, %v589
      %v591 = vpop.f32.mrf.mxu0
      %v592 = vadd.f32 %v356, %v591
      %593 = vdwg.mxu0
      %v594 = vmax.f32 %v515, 0.0
      %v595 = vmax.f32 %v517, 0.0
      %v596 = vmax.f32 %v520, 0.0
      %v597 = vmax.f32 %v522, 0.0
      %v598 = vmax.f32 %v525, 0.0
      %v599 = vmax.f32 %v527, 0.0
      %v600 = vmax.f32 %v530, 0.0
      %v601 = vmax.f32 %v532, 0.0
      %v602 = vmax.f32 %v535, 0.0
      %v603 = vmax.f32 %v537, 0.0
      %v604 = vmax.f32 %v540, 0.0
      %v605 = vmax.f32 %v542, 0.0
      %v606 = vmax.f32 %v545, 0.0
      %v607 = vmax.f32 %v547, 0.0
      %v608 = vmax.f32 %v550, 0.0
      %v609 = vmax.f32 %v552, 0.0
      %v610 = vmax.f32 %v555, 0.0
      %v611 = vmax.f32 %v557, 0.0
      %v612 = vmax.f32 %v560, 0.0
      %v613 = vmax.f32 %v562, 0.0
      %v614 = vmax.f32 %v565, 0.0
      %v615 = vmax.f32 %v567, 0.0
      %v616 = vmax.f32 %v570, 0.0
      %v617 = vmax.f32 %v572, 0.0
      %v618 = vmax.f32 %v575, 0.0
      %v619 = vmax.f32 %v577, 0.0
      %v620 = vmax.f32 %v580, 0.0
      %v621 = vmax.f32 %v582, 0.0
      %v622 = vmax.f32 %v585, 0.0
      %v623 = vmax.f32 %v587, 0.0
      %v624 = vmax.f32 %v590, 0.0
      %v625 = vmax.f32 %v592, 0.0
      %vm658 = vcmask 1040384
      %v659 = vrot.slane %v594, 7
      %v660 = vrot.slane %v595, 7
      %v661 = vsel %vm658, %v659, %v660
      %v662 = vrot.slane %v596, 7
      %v663 = vsel %vm658, %v660, %v662
      %v664 = vrot.slane %v597, 7
      %v665 = vsel %vm658, %v662, %v664
      %v666 = vrot.slane %v598, 7
      %v667 = vsel %vm658, %v664, %v666
      %v668 = vrot.slane %v599, 7
      %v669 = vsel %vm658, %v666, %v668
      %v670 = vrot.slane %v600, 7
      %v671 = vsel %vm658, %v668, %v670
      %v672 = vrot.slane %v601, 7
      %v673 = vsel %vm658, %v670, %v672
      %v674 = vrot.slane %v602, 7
      %v675 = vsel %vm658, %v672, %v674
      %v676 = vrot.slane %v603, 7
      %v677 = vsel %vm658, %v674, %v676
      %v678 = vrot.slane %v604, 7
      %v679 = vsel %vm658, %v676, %v678
      %v680 = vrot.slane %v605, 7
      %v681 = vsel %vm658, %v678, %v680
      %v682 = vrot.slane %v606, 7
      %v683 = vsel %vm658, %v680, %v682
      %v684 = vrot.slane %v607, 7
      %v685 = vsel %vm658, %v682, %v684
      %v686 = vrot.slane %v608, 7
      %v687 = vsel %vm658, %v684, %v686
      %v688 = vrot.slane %v609, 7
      %v689 = vsel %vm658, %v686, %v688
      %v690 = vrot.slane %v610, 7
      %v691 = vsel %vm658, %v688, %v690
      %v692 = vrot.slane %v611, 7
      %v693 = vsel %vm658, %v690, %v692
      %v694 = vrot.slane %v612, 7
      %v695 = vsel %vm658, %v692, %v694
      %v696 = vrot.slane %v613, 7
      %v697 = vsel %vm658, %v694, %v696
      %v698 = vrot.slane %v614, 7
      %v699 = vsel %vm658, %v696, %v698
      %v700 = vrot.slane %v615, 7
      %v701 = vsel %vm658, %v698, %v700
      %v702 = vrot.slane %v616, 7
      %v703 = vsel %vm658, %v700, %v702
      %v704 = vrot.slane %v617, 7
      %v705 = vsel %vm658, %v702, %v704
      %v706 = vrot.slane %v618, 7
      %v707 = vsel %vm658, %v704, %v706
      %v708 = vrot.slane %v619, 7
      %v709 = vsel %vm658, %v706, %v708
      %v710 = vrot.slane %v620, 7
      %v711 = vsel %vm658, %v708, %v710
      %v712 = vrot.slane %v621, 7
      %v713 = vsel %vm658, %v710, %v712
      %v714 = vrot.slane %v622, 7
      %v715 = vsel %vm658, %v712, %v714
      %v716 = vrot.slane %v623, 7
      %v717 = vsel %vm658, %v714, %v716
      %v718 = vrot.slane %v624, 7
      %v719 = vsel %vm658, %v716, %v718
      %v720 = vrot.slane %v625, 7
      %v721 = vsel %vm658, %v718, %v720
      %v755 = vsel %vm658, 0.0, %v659
      %v756 = vsel %vm658, %v720, 0.0
      %v757 = vlaneseq
      %v758 = vshrl.u32 %v757, 7
      %v759 = vadd.s32 %v758, 8
      %v760 = vadd.s32 %v758, 16
      %v761 = vadd.s32 %v758, 24
      %v762 = vadd.s32 %v758, 32
      %v763 = vadd.s32 %v758, 40
      %v764 = vadd.s32 %v758, 48
      %v765 = vadd.s32 %v758, 56
      %v766 = vadd.s32 %v758, 64
      %v767 = vadd.s32 %v758, 72
      %v768 = vadd.s32 %v758, 80
      %v769 = vadd.s32 %v758, 88
      %v770 = vadd.s32 %v758, 96
      %v771 = vadd.s32 %v758, 104
      %v772 = vadd.s32 %v758, 112
      %v773 = vadd.s32 %v758, 120
      %v774 = vadd.s32 %v758, 128
      %v775 = vadd.s32 %v758, 136
      %v776 = vadd.s32 %v758, 144
      %v777 = vadd.s32 %v758, 152
      %v778 = vadd.s32 %v758, 160
      %v779 = vadd.s32 %v758, 168
      %v780 = vadd.s32 %v758, 176
      %v781 = vadd.s32 %v758, 184
      %v782 = vadd.s32 %v758, 192
      %v783 = vadd.s32 %v758, 200
      %v784 = vadd.s32 %v758, 208
      %v785 = vadd.s32 %v758, 216
      %v786 = vadd.s32 %v758, 224
      %v787 = vadd.s32 %v758, 232
      %v788 = vadd.s32 %v758, 240
      %v789 = vadd.s32 %v758, 248
      %vm790 = vcmp.lt.s32.totalorder %v758, 0
      %v791 = vsub.s32 0, %v758
      %v792 = vsel %vm790, %v791, %v758
      %v793 = vshrl.u32 %v792, 4
      %v794 = vand.u32 %v792, 15
      %v795 = vsub.s32 0, %v794
      %v796 = vsel %vm790, %v795, %v794
      %vm797 = vcmp.lt.s32.totalorder %v759, 0
      %v798 = vsub.s32 0, %v759
      %v799 = vsel %vm797, %v798, %v759
      %v800 = vshrl.u32 %v799, 4
      %v801 = vand.u32 %v799, 15
      %v802 = vsub.s32 0, %v801
      %v803 = vsel %vm797, %v802, %v801
      %vm804 = vcmp.lt.s32.totalorder %v760, 0
      %v805 = vsub.s32 0, %v760
      %v806 = vsel %vm804, %v805, %v760
      %v807 = vshrl.u32 %v806, 4
      %v808 = vand.u32 %v806, 15
      %v809 = vsub.s32 0, %v808
      %v810 = vsel %vm804, %v809, %v808
      %vm811 = vcmp.lt.s32.totalorder %v761, 0
      %v812 = vsub.s32 0, %v761
      %v813 = vsel %vm811, %v812, %v761
      %v814 = vshrl.u32 %v813, 4
      %v815 = vand.u32 %v813, 15
      %v816 = vsub.s32 0, %v815
      %v817 = vsel %vm811, %v816, %v815
      %vm818 = vcmp.lt.s32.totalorder %v762, 0
      %v819 = vsub.s32 0, %v762
      %v820 = vsel %vm818, %v819, %v762
      %v821 = vshrl.u32 %v820, 4
      %v822 = vand.u32 %v820, 15
      %v823 = vsub.s32 0, %v822
      %v824 = vsel %vm818, %v823, %v822
      %vm825 = vcmp.lt.s32.totalorder %v763, 0
      %v826 = vsub.s32 0, %v763
      %v827 = vsel %vm825, %v826, %v763
      %v828 = vshrl.u32 %v827, 4
      %v829 = vand.u32 %v827, 15
      %v830 = vsub.s32 0, %v829
      %v831 = vsel %vm825, %v830, %v829
      %vm832 = vcmp.lt.s32.totalorder %v764, 0
      %v833 = vsub.s32 0, %v764
      %v834 = vsel %vm832, %v833, %v764
      %v835 = vshrl.u32 %v834, 4
      %v836 = vand.u32 %v834, 15
      %v837 = vsub.s32 0, %v836
      %v838 = vsel %vm832, %v837, %v836
      %vm839 = vcmp.lt.s32.totalorder %v765, 0
      %v840 = vsub.s32 0, %v765
      %v841 = vsel %vm839, %v840, %v765
      %v842 = vshrl.u32 %v841, 4
      %v843 = vand.u32 %v841, 15
      %v844 = vsub.s32 0, %v843
      %v845 = vsel %vm839, %v844, %v843
      %vm846 = vcmp.lt.s32.totalorder %v766, 0
      %v847 = vsub.s32 0, %v766
      %v848 = vsel %vm846, %v847, %v766
      %v849 = vshrl.u32 %v848, 4
      %v850 = vand.u32 %v848, 15
      %v851 = vsub.s32 0, %v850
      %v852 = vsel %vm846, %v851, %v850
      %vm853 = vcmp.lt.s32.totalorder %v767, 0
      %v854 = vsub.s32 0, %v767
      %v855 = vsel %vm853, %v854, %v767
      %v856 = vshrl.u32 %v855, 4
      %v857 = vand.u32 %v855, 15
      %v858 = vsub.s32 0, %v857
      %v859 = vsel %vm853, %v858, %v857
      %vm860 = vcmp.lt.s32.totalorder %v768, 0
      %v861 = vsub.s32 0, %v768
      %v862 = vsel %vm860, %v861, %v768
      %v863 = vshrl.u32 %v862, 4
      %v864 = vand.u32 %v862, 15
      %v865 = vsub.s32 0, %v864
      %v866 = vsel %vm860, %v865, %v864
      %vm867 = vcmp.lt.s32.totalorder %v769, 0
      %v868 = vsub.s32 0, %v769
      %v869 = vsel %vm867, %v868, %v769
      %v870 = vshrl.u32 %v869, 4
      %v871 = vand.u32 %v869, 15
      %v872 = vsub.s32 0, %v871
      %v873 = vsel %vm867, %v872, %v871
      %vm874 = vcmp.lt.s32.totalorder %v770, 0
      %v875 = vsub.s32 0, %v770
      %v876 = vsel %vm874, %v875, %v770
      %v877 = vshrl.u32 %v876, 4
      %v878 = vand.u32 %v876, 15
      %v879 = vsub.s32 0, %v878
      %v880 = vsel %vm874, %v879, %v878
      %vm881 = vcmp.lt.s32.totalorder %v771, 0
      %v882 = vsub.s32 0, %v771
      %v883 = vsel %vm881, %v882, %v771
      %v884 = vshrl.u32 %v883, 4
      %v885 = vand.u32 %v883, 15
      %v886 = vsub.s32 0, %v885
      %v887 = vsel %vm881, %v886, %v885
      %vm888 = vcmp.lt.s32.totalorder %v772, 0
      %v889 = vsub.s32 0, %v772
      %v890 = vsel %vm888, %v889, %v772
      %v891 = vshrl.u32 %v890, 4
      %v892 = vand.u32 %v890, 15
      %v893 = vsub.s32 0, %v892
      %v894 = vsel %vm888, %v893, %v892
      %vm895 = vcmp.lt.s32.totalorder %v773, 0
      %v896 = vsub.s32 0, %v773
      %v897 = vsel %vm895, %v896, %v773
      %v898 = vshrl.u32 %v897, 4
      %v899 = vand.u32 %v897, 15
      %v900 = vsub.s32 0, %v899
      %v901 = vsel %vm895, %v900, %v899
      %vm902 = vcmp.lt.s32.totalorder %v774, 0
      %v903 = vsub.s32 0, %v774
      %v904 = vsel %vm902, %v903, %v774
      %v905 = vshrl.u32 %v904, 4
      %v906 = vand.u32 %v904, 15
      %v907 = vsub.s32 0, %v906
      %v908 = vsel %vm902, %v907, %v906
      %vm909 = vcmp.lt.s32.totalorder %v775, 0
      %v910 = vsub.s32 0, %v775
      %v911 = vsel %vm909, %v910, %v775
      %v912 = vshrl.u32 %v911, 4
      %v913 = vand.u32 %v911, 15
      %v914 = vsub.s32 0, %v913
      %v915 = vsel %vm909, %v914, %v913
      %vm916 = vcmp.lt.s32.totalorder %v776, 0
      %v917 = vsub.s32 0, %v776
      %v918 = vsel %vm916, %v917, %v776
      %v919 = vshrl.u32 %v918, 4
      %v920 = vand.u32 %v918, 15
      %v921 = vsub.s32 0, %v920
      %v922 = vsel %vm916, %v921, %v920
      %vm923 = vcmp.lt.s32.totalorder %v777, 0
      %v924 = vsub.s32 0, %v777
      %v925 = vsel %vm923, %v924, %v777
      %v926 = vshrl.u32 %v925, 4
      %v927 = vand.u32 %v925, 15
      %v928 = vsub.s32 0, %v927
      %v929 = vsel %vm923, %v928, %v927
      %vm930 = vcmp.lt.s32.totalorder %v778, 0
      %v931 = vsub.s32 0, %v778
      %v932 = vsel %vm930, %v931, %v778
      %v933 = vshrl.u32 %v932, 4
      %v934 = vand.u32 %v932, 15
      %v935 = vsub.s32 0, %v934
      %v936 = vsel %vm930, %v935, %v934
      %vm937 = vcmp.lt.s32.totalorder %v779, 0
      %v938 = vsub.s32 0, %v779
      %v939 = vsel %vm937, %v938, %v779
      %v940 = vshrl.u32 %v939, 4
      %v941 = vand.u32 %v939, 15
      %v942 = vsub.s32 0, %v941
      %v943 = vsel %vm937, %v942, %v941
      %vm944 = vcmp.lt.s32.totalorder %v780, 0
      %v945 = vsub.s32 0, %v780
      %v946 = vsel %vm944, %v945, %v780
      %v947 = vshrl.u32 %v946, 4
      %v948 = vand.u32 %v946, 15
      %v949 = vsub.s32 0, %v948
      %v950 = vsel %vm944, %v949, %v948
      %vm951 = vcmp.lt.s32.totalorder %v781, 0
      %v952 = vsub.s32 0, %v781
      %v953 = vsel %vm951, %v952, %v781
      %v954 = vshrl.u32 %v953, 4
      %v955 = vand.u32 %v953, 15
      %v956 = vsub.s32 0, %v955
      %v957 = vsel %vm951, %v956, %v955
      %vm958 = vcmp.lt.s32.totalorder %v782, 0
      %v959 = vsub.s32 0, %v782
      %v960 = vsel %vm958, %v959, %v782
      %v961 = vshrl.u32 %v960, 4
      %v962 = vand.u32 %v960, 15
      %v963 = vsub.s32 0, %v962
      %v964 = vsel %vm958, %v963, %v962
      %vm965 = vcmp.lt.s32.totalorder %v783, 0
      %v966 = vsub.s32 0, %v783
      %v967 = vsel %vm965, %v966, %v783
      %v968 = vshrl.u32 %v967, 4
      %v969 = vand.u32 %v967, 15
      %v970 = vsub.s32 0, %v969
      %v971 = vsel %vm965, %v970, %v969
      %vm972 = vcmp.lt.s32.totalorder %v784, 0
      %v973 = vsub.s32 0, %v784
      %v974 = vsel %vm972, %v973, %v784
      %v975 = vshrl.u32 %v974, 4
      %v976 = vand.u32 %v974, 15
      %v977 = vsub.s32 0, %v976
      %v978 = vsel %vm972, %v977, %v976
      %vm979 = vcmp.lt.s32.totalorder %v785, 0
      %v980 = vsub.s32 0, %v785
      %v981 = vsel %vm979, %v980, %v785
      %v982 = vshrl.u32 %v981, 4
      %v983 = vand.u32 %v981, 15
      %v984 = vsub.s32 0, %v983
      %v985 = vsel %vm979, %v984, %v983
      %vm986 = vcmp.lt.s32.totalorder %v786, 0
      %v987 = vsub.s32 0, %v786
      %v988 = vsel %vm986, %v987, %v786
      %v989 = vshrl.u32 %v988, 4
      %v990 = vand.u32 %v988, 15
      %v991 = vsub.s32 0, %v990
      %v992 = vsel %vm986, %v991, %v990
      %vm993 = vcmp.lt.s32.totalorder %v787, 0
      %v994 = vsub.s32 0, %v787
      %v995 = vsel %vm993, %v994, %v787
      %v996 = vshrl.u32 %v995, 4
      %v997 = vand.u32 %v995, 15
      %v998 = vsub.s32 0, %v997
      %v999 = vsel %vm993, %v998, %v997
      %vm1000 = vcmp.lt.s32.totalorder %v788, 0
      %v1001 = vsub.s32 0, %v788
      %v1002 = vsel %vm1000, %v1001, %v788
      %v1003 = vshrl.u32 %v1002, 4
      %v1004 = vand.u32 %v1002, 15
      %v1005 = vsub.s32 0, %v1004
      %v1006 = vsel %vm1000, %v1005, %v1004
      %vm1007 = vcmp.lt.s32.totalorder %v789, 0
      %v1008 = vsub.s32 0, %v789
      %v1009 = vsel %vm1007, %v1008, %v789
      %v1010 = vshrl.u32 %v1009, 4
      %v1011 = vand.u32 %v1009, 15
      %v1012 = vsub.s32 0, %v1011
      %v1013 = vsel %vm1007, %v1012, %v1011
      %vm1014 = vcmp.ne.s32.totalorder %v796, 0
      %vm1015 = vcmp.ne.s32.totalorder %v803, 0
      %vm1016 = vcmp.ne.s32.totalorder %v810, 0
      %vm1017 = vcmp.ne.s32.totalorder %v817, 0
      %vm1018 = vcmp.ne.s32.totalorder %v824, 0
      %vm1019 = vcmp.ne.s32.totalorder %v831, 0
      %vm1020 = vcmp.ne.s32.totalorder %v838, 0
      %vm1021 = vcmp.ne.s32.totalorder %v845, 0
      %vm1022 = vcmp.ne.s32.totalorder %v852, 0
      %vm1023 = vcmp.ne.s32.totalorder %v859, 0
      %vm1024 = vcmp.ne.s32.totalorder %v866, 0
      %vm1025 = vcmp.ne.s32.totalorder %v873, 0
      %vm1026 = vcmp.ne.s32.totalorder %v880, 0
      %vm1027 = vcmp.ne.s32.totalorder %v887, 0
      %vm1028 = vcmp.ne.s32.totalorder %v894, 0
      %vm1029 = vcmp.ne.s32.totalorder %v901, 0
      %vm1030 = vcmp.ne.s32.totalorder %v908, 0
      %vm1031 = vcmp.ne.s32.totalorder %v915, 0
      %vm1032 = vcmp.ne.s32.totalorder %v922, 0
      %vm1033 = vcmp.ne.s32.totalorder %v929, 0
      %vm1034 = vcmp.ne.s32.totalorder %v936, 0
      %vm1035 = vcmp.ne.s32.totalorder %v943, 0
      %vm1036 = vcmp.ne.s32.totalorder %v950, 0
      %vm1037 = vcmp.ne.s32.totalorder %v957, 0
      %vm1038 = vcmp.ne.s32.totalorder %v964, 0
      %vm1039 = vcmp.ne.s32.totalorder %v971, 0
      %vm1040 = vcmp.ne.s32.totalorder %v978, 0
      %vm1041 = vcmp.ne.s32.totalorder %v985, 0
      %vm1042 = vcmp.ne.s32.totalorder %v992, 0
      %vm1043 = vcmp.ne.s32.totalorder %v999, 0
      %vm1044 = vcmp.ne.s32.totalorder %v1006, 0
      %vm1045 = vcmp.ne.s32.totalorder %v1013, 0
      %vm1046 = vcmp.lt.s32.totalorder %v796, 0
      %vm1047 = vcmp.lt.s32.totalorder %v803, 0
      %vm1048 = vcmp.lt.s32.totalorder %v810, 0
      %vm1049 = vcmp.lt.s32.totalorder %v817, 0
      %vm1050 = vcmp.lt.s32.totalorder %v824, 0
      %vm1051 = vcmp.lt.s32.totalorder %v831, 0
      %vm1052 = vcmp.lt.s32.totalorder %v838, 0
      %vm1053 = vcmp.lt.s32.totalorder %v845, 0
      %vm1054 = vcmp.lt.s32.totalorder %v852, 0
      %vm1055 = vcmp.lt.s32.totalorder %v859, 0
      %vm1056 = vcmp.lt.s32.totalorder %v866, 0
      %vm1057 = vcmp.lt.s32.totalorder %v873, 0
      %vm1058 = vcmp.lt.s32.totalorder %v880, 0
      %vm1059 = vcmp.lt.s32.totalorder %v887, 0
      %vm1060 = vcmp.lt.s32.totalorder %v894, 0
      %vm1061 = vcmp.lt.s32.totalorder %v901, 0
      %vm1062 = vcmp.lt.s32.totalorder %v908, 0
      %vm1063 = vcmp.lt.s32.totalorder %v915, 0
      %vm1064 = vcmp.lt.s32.totalorder %v922, 0
      %vm1065 = vcmp.lt.s32.totalorder %v929, 0
      %vm1066 = vcmp.lt.s32.totalorder %v936, 0
      %vm1067 = vcmp.lt.s32.totalorder %v943, 0
      %vm1068 = vcmp.lt.s32.totalorder %v950, 0
      %vm1069 = vcmp.lt.s32.totalorder %v957, 0
      %vm1070 = vcmp.lt.s32.totalorder %v964, 0
      %vm1071 = vcmp.lt.s32.totalorder %v971, 0
      %vm1072 = vcmp.lt.s32.totalorder %v978, 0
      %vm1073 = vcmp.lt.s32.totalorder %v985, 0
      %vm1074 = vcmp.lt.s32.totalorder %v992, 0
      %vm1075 = vcmp.lt.s32.totalorder %v999, 0
      %vm1076 = vcmp.lt.s32.totalorder %v1006, 0
      %vm1077 = vcmp.lt.s32.totalorder %v1013, 0
      %vm1078 = vmand %vm1046, %vm1014
      %vm1079 = vmand %vm1047, %vm1015
      %vm1080 = vmand %vm1048, %vm1016
      %vm1081 = vmand %vm1049, %vm1017
      %vm1082 = vmand %vm1050, %vm1018
      %vm1083 = vmand %vm1051, %vm1019
      %vm1084 = vmand %vm1052, %vm1020
      %vm1085 = vmand %vm1053, %vm1021
      %vm1086 = vmand %vm1054, %vm1022
      %vm1087 = vmand %vm1055, %vm1023
      %vm1088 = vmand %vm1056, %vm1024
      %vm1089 = vmand %vm1057, %vm1025
      %vm1090 = vmand %vm1058, %vm1026
      %vm1091 = vmand %vm1059, %vm1027
      %vm1092 = vmand %vm1060, %vm1028
      %vm1093 = vmand %vm1061, %vm1029
      %vm1094 = vmand %vm1062, %vm1030
      %vm1095 = vmand %vm1063, %vm1031
      %vm1096 = vmand %vm1064, %vm1032
      %vm1097 = vmand %vm1065, %vm1033
      %vm1098 = vmand %vm1066, %vm1034
      %vm1099 = vmand %vm1067, %vm1035
      %vm1100 = vmand %vm1068, %vm1036
      %vm1101 = vmand %vm1069, %vm1037
      %vm1102 = vmand %vm1070, %vm1038
      %vm1103 = vmand %vm1071, %vm1039
      %vm1104 = vmand %vm1072, %vm1040
      %vm1105 = vmand %vm1073, %vm1041
      %vm1106 = vmand %vm1074, %vm1042
      %vm1107 = vmand %vm1075, %vm1043
      %vm1108 = vmand %vm1076, %vm1044
      %vm1109 = vmand %vm1077, %vm1045
      %v1110 = vadd.s32 %v796, 16
      %v1111 = vadd.s32 %v803, 16
      %v1112 = vadd.s32 %v810, 16
      %v1113 = vadd.s32 %v817, 16
      %v1114 = vadd.s32 %v824, 16
      %v1115 = vadd.s32 %v831, 16
      %v1116 = vadd.s32 %v838, 16
      %v1117 = vadd.s32 %v845, 16
      %v1118 = vadd.s32 %v852, 16
      %v1119 = vadd.s32 %v859, 16
      %v1120 = vadd.s32 %v866, 16
      %v1121 = vadd.s32 %v873, 16
      %v1122 = vadd.s32 %v880, 16
      %v1123 = vadd.s32 %v887, 16
      %v1124 = vadd.s32 %v894, 16
      %v1125 = vadd.s32 %v901, 16
      %v1126 = vadd.s32 %v908, 16
      %v1127 = vadd.s32 %v915, 16
      %v1128 = vadd.s32 %v922, 16
      %v1129 = vadd.s32 %v929, 16
      %v1130 = vadd.s32 %v936, 16
      %v1131 = vadd.s32 %v943, 16
      %v1132 = vadd.s32 %v950, 16
      %v1133 = vadd.s32 %v957, 16
      %v1134 = vadd.s32 %v964, 16
      %v1135 = vadd.s32 %v971, 16
      %v1136 = vadd.s32 %v978, 16
      %v1137 = vadd.s32 %v985, 16
      %v1138 = vadd.s32 %v992, 16
      %v1139 = vadd.s32 %v999, 16
      %v1140 = vadd.s32 %v1006, 16
      %v1141 = vadd.s32 %v1013, 16
      %v1142 = vsel %vm1078, %v1110, %v796
      %v1143 = vsel %vm1079, %v1111, %v803
      %v1144 = vsel %vm1080, %v1112, %v810
      %v1145 = vsel %vm1081, %v1113, %v817
      %v1146 = vsel %vm1082, %v1114, %v824
      %v1147 = vsel %vm1083, %v1115, %v831
      %v1148 = vsel %vm1084, %v1116, %v838
      %v1149 = vsel %vm1085, %v1117, %v845
      %v1150 = vsel %vm1086, %v1118, %v852
      %v1151 = vsel %vm1087, %v1119, %v859
      %v1152 = vsel %vm1088, %v1120, %v866
      %v1153 = vsel %vm1089, %v1121, %v873
      %v1154 = vsel %vm1090, %v1122, %v880
      %v1155 = vsel %vm1091, %v1123, %v887
      %v1156 = vsel %vm1092, %v1124, %v894
      %v1157 = vsel %vm1093, %v1125, %v901
      %v1158 = vsel %vm1094, %v1126, %v908
      %v1159 = vsel %vm1095, %v1127, %v915
      %v1160 = vsel %vm1096, %v1128, %v922
      %v1161 = vsel %vm1097, %v1129, %v929
      %v1162 = vsel %vm1098, %v1130, %v936
      %v1163 = vsel %vm1099, %v1131, %v943
      %v1164 = vsel %vm1100, %v1132, %v950
      %v1165 = vsel %vm1101, %v1133, %v957
      %v1166 = vsel %vm1102, %v1134, %v964
      %v1167 = vsel %vm1103, %v1135, %v971
      %v1168 = vsel %vm1104, %v1136, %v978
      %v1169 = vsel %vm1105, %v1137, %v985
      %v1170 = vsel %vm1106, %v1138, %v992
      %v1171 = vsel %vm1107, %v1139, %v999
      %v1172 = vsel %vm1108, %v1140, %v1006
      %v1173 = vsel %vm1109, %v1141, %v1013
      %vm1174 = vcmp.ge.s32.totalorder %v1142, 1
      %vm1175 = vcmp.ge.s32.totalorder %v1143, 1
      %vm1176 = vcmp.ge.s32.totalorder %v1144, 1
      %vm1177 = vcmp.ge.s32.totalorder %v1145, 1
      %vm1178 = vcmp.ge.s32.totalorder %v1146, 1
      %vm1179 = vcmp.ge.s32.totalorder %v1147, 1
      %vm1180 = vcmp.ge.s32.totalorder %v1148, 1
      %vm1181 = vcmp.ge.s32.totalorder %v1149, 1
      %vm1182 = vcmp.ge.s32.totalorder %v1150, 1
      %vm1183 = vcmp.ge.s32.totalorder %v1151, 1
      %vm1184 = vcmp.ge.s32.totalorder %v1152, 1
      %vm1185 = vcmp.ge.s32.totalorder %v1153, 1
      %vm1186 = vcmp.ge.s32.totalorder %v1154, 1
      %vm1187 = vcmp.ge.s32.totalorder %v1155, 1
      %vm1188 = vcmp.ge.s32.totalorder %v1156, 1
      %vm1189 = vcmp.ge.s32.totalorder %v1157, 1
      %vm1190 = vcmp.ge.s32.totalorder %v1158, 1
      %vm1191 = vcmp.ge.s32.totalorder %v1159, 1
      %vm1192 = vcmp.ge.s32.totalorder %v1160, 1
      %vm1193 = vcmp.ge.s32.totalorder %v1161, 1
      %vm1194 = vcmp.ge.s32.totalorder %v1162, 1
      %vm1195 = vcmp.ge.s32.totalorder %v1163, 1
      %vm1196 = vcmp.ge.s32.totalorder %v1164, 1
      %vm1197 = vcmp.ge.s32.totalorder %v1165, 1
      %vm1198 = vcmp.ge.s32.totalorder %v1166, 1
      %vm1199 = vcmp.ge.s32.totalorder %v1167, 1
      %vm1200 = vcmp.ge.s32.totalorder %v1168, 1
      %vm1201 = vcmp.ge.s32.totalorder %v1169, 1
      %vm1202 = vcmp.ge.s32.totalorder %v1170, 1
      %vm1203 = vcmp.ge.s32.totalorder %v1171, 1
      %vm1204 = vcmp.ge.s32.totalorder %v1172, 1
      %vm1205 = vcmp.ge.s32.totalorder %v1173, 1
      %v1206 = vsel %vm1176, %v755, 0.0
      %v1207 = vsel %vm1177, %v661, 0.0
      %v1208 = vsel %vm1178, %v663, 0.0
      %v1209 = vsel %vm1179, %v665, 0.0
      %v1210 = vsel %vm1180, %v667, 0.0
      %v1211 = vsel %vm1181, %v669, 0.0
      %v1212 = vsel %vm1182, %v671, 0.0
      %v1213 = vsel %vm1183, %v673, 0.0
      %v1214 = vsel %vm1184, %v675, 0.0
      %v1215 = vsel %vm1185, %v677, 0.0
      %v1216 = vsel %vm1186, %v679, 0.0
      %v1217 = vsel %vm1187, %v681, 0.0
      %v1218 = vsel %vm1188, %v683, 0.0
      %v1219 = vsel %vm1189, %v685, 0.0
      %v1220 = vsel %vm1190, %v687, 0.0
      %v1221 = vsel %vm1191, %v689, 0.0
      %v1222 = vsel %vm1192, %v691, 0.0
      %v1223 = vsel %vm1193, %v693, 0.0
      %v1224 = vsel %vm1194, %v695, 0.0
      %v1225 = vsel %vm1195, %v697, 0.0
      %v1226 = vsel %vm1196, %v699, 0.0
      %v1227 = vsel %vm1197, %v701, 0.0
      %v1228 = vsel %vm1198, %v703, 0.0
      %v1229 = vsel %vm1199, %v705, 0.0
      %v1230 = vsel %vm1200, %v707, 0.0
      %v1231 = vsel %vm1201, %v709, 0.0
      %v1232 = vsel %vm1202, %v711, 0.0
      %v1233 = vsel %vm1203, %v713, 0.0
      %v1234 = vsel %vm1204, %v715, 0.0
      %v1235 = vsel %vm1205, %v717, 0.0
      %vm1236 = vcmp.le.s32.totalorder %v1142, 14
      %vm1237 = vcmp.le.s32.totalorder %v1143, 14
      %vm1238 = vcmp.le.s32.totalorder %v1144, 14
      %vm1239 = vcmp.le.s32.totalorder %v1145, 14
      %vm1240 = vcmp.le.s32.totalorder %v1146, 14
      %vm1241 = vcmp.le.s32.totalorder %v1147, 14
      %vm1242 = vcmp.le.s32.totalorder %v1148, 14
      %vm1243 = vcmp.le.s32.totalorder %v1149, 14
      %vm1244 = vcmp.le.s32.totalorder %v1150, 14
      %vm1245 = vcmp.le.s32.totalorder %v1151, 14
      %vm1246 = vcmp.le.s32.totalorder %v1152, 14
      %vm1247 = vcmp.le.s32.totalorder %v1153, 14
      %vm1248 = vcmp.le.s32.totalorder %v1154, 14
      %vm1249 = vcmp.le.s32.totalorder %v1155, 14
      %vm1250 = vcmp.le.s32.totalorder %v1156, 14
      %vm1251 = vcmp.le.s32.totalorder %v1157, 14
      %vm1252 = vcmp.le.s32.totalorder %v1158, 14
      %vm1253 = vcmp.le.s32.totalorder %v1159, 14
      %vm1254 = vcmp.le.s32.totalorder %v1160, 14
      %vm1255 = vcmp.le.s32.totalorder %v1161, 14
      %vm1256 = vcmp.le.s32.totalorder %v1162, 14
      %vm1257 = vcmp.le.s32.totalorder %v1163, 14
      %vm1258 = vcmp.le.s32.totalorder %v1164, 14
      %vm1259 = vcmp.le.s32.totalorder %v1165, 14
      %vm1260 = vcmp.le.s32.totalorder %v1166, 14
      %vm1261 = vcmp.le.s32.totalorder %v1167, 14
      %vm1262 = vcmp.le.s32.totalorder %v1168, 14
      %vm1263 = vcmp.le.s32.totalorder %v1169, 14
      %vm1264 = vcmp.le.s32.totalorder %v1170, 14
      %vm1265 = vcmp.le.s32.totalorder %v1171, 14
      %vm1266 = vcmp.le.s32.totalorder %v1172, 14
      %vm1267 = vcmp.le.s32.totalorder %v1173, 14
      %v1270 = vrot.slane 0.0, 2
      %v1271 = vsel %vm499, %v1270, %v1270
      %v1272 = vrot.slane %v755, 2
      %v1273 = vsel %vm499, %v1270, %v1272
      %v1274 = vrot.slane %v661, 2
      %v1275 = vsel %vm499, %v1272, %v1274
      %v1276 = vrot.slane %v663, 2
      %v1277 = vsel %vm499, %v1274, %v1276
      %v1278 = vrot.slane %v665, 2
      %v1279 = vsel %vm499, %v1276, %v1278
      %v1280 = vrot.slane %v667, 2
      %v1281 = vsel %vm499, %v1278, %v1280
      %v1282 = vrot.slane %v669, 2
      %v1283 = vsel %vm499, %v1280, %v1282
      %v1284 = vrot.slane %v671, 2
      %v1285 = vsel %vm499, %v1282, %v1284
      %v1286 = vrot.slane %v673, 2
      %v1287 = vsel %vm499, %v1284, %v1286
      %v1288 = vrot.slane %v675, 2
      %v1289 = vsel %vm499, %v1286, %v1288
      %v1290 = vrot.slane %v677, 2
      %v1291 = vsel %vm499, %v1288, %v1290
      %v1292 = vrot.slane %v679, 2
      %v1293 = vsel %vm499, %v1290, %v1292
      %v1294 = vrot.slane %v681, 2
      %v1295 = vsel %vm499, %v1292, %v1294
      %v1296 = vrot.slane %v683, 2
      %v1297 = vsel %vm499, %v1294, %v1296
      %v1298 = vrot.slane %v685, 2
      %v1299 = vsel %vm499, %v1296, %v1298
      %v1300 = vrot.slane %v687, 2
      %v1301 = vsel %vm499, %v1298, %v1300
      %v1302 = vrot.slane %v689, 2
      %v1303 = vsel %vm499, %v1300, %v1302
      %v1304 = vrot.slane %v691, 2
      %v1305 = vsel %vm499, %v1302, %v1304
      %v1306 = vrot.slane %v693, 2
      %v1307 = vsel %vm499, %v1304, %v1306
      %v1308 = vrot.slane %v695, 2
      %v1309 = vsel %vm499, %v1306, %v1308
      %v1310 = vrot.slane %v697, 2
      %v1311 = vsel %vm499, %v1308, %v1310
      %v1312 = vrot.slane %v699, 2
      %v1313 = vsel %vm499, %v1310, %v1312
      %v1314 = vrot.slane %v701, 2
      %v1315 = vsel %vm499, %v1312, %v1314
      %v1316 = vrot.slane %v703, 2
      %v1317 = vsel %vm499, %v1314, %v1316
      %v1318 = vrot.slane %v705, 2
      %v1319 = vsel %vm499, %v1316, %v1318
      %v1320 = vrot.slane %v707, 2
      %v1321 = vsel %vm499, %v1318, %v1320
      %v1322 = vrot.slane %v709, 2
      %v1323 = vsel %vm499, %v1320, %v1322
      %v1324 = vrot.slane %v711, 2
      %v1325 = vsel %vm499, %v1322, %v1324
      %v1326 = vrot.slane %v713, 2
      %v1327 = vsel %vm499, %v1324, %v1326
      %v1328 = vrot.slane %v715, 2
      %v1329 = vsel %vm499, %v1326, %v1328
      %v1330 = vrot.slane %v717, 2
      %v1331 = vsel %vm499, %v1328, %v1330
      %v1332 = vrot.slane %v719, 2
      %v1333 = vsel %vm499, %v1330, %v1332
      %v1366 = vsel %vm1236, %v1271, 0.0
      %v1367 = vsel %vm1237, %v1273, 0.0
      %v1368 = vsel %vm1238, %v1275, 0.0
      %v1369 = vsel %vm1239, %v1277, 0.0
      %v1370 = vsel %vm1240, %v1279, 0.0
      %v1371 = vsel %vm1241, %v1281, 0.0
      %v1372 = vsel %vm1242, %v1283, 0.0
      %v1373 = vsel %vm1243, %v1285, 0.0
      %v1374 = vsel %vm1244, %v1287, 0.0
      %v1375 = vsel %vm1245, %v1289, 0.0
      %v1376 = vsel %vm1246, %v1291, 0.0
      %v1377 = vsel %vm1247, %v1293, 0.0
      %v1378 = vsel %vm1248, %v1295, 0.0
      %v1379 = vsel %vm1249, %v1297, 0.0
      %v1380 = vsel %vm1250, %v1299, 0.0
      %v1381 = vsel %vm1251, %v1301, 0.0
      %v1382 = vsel %vm1252, %v1303, 0.0
      %v1383 = vsel %vm1253, %v1305, 0.0
      %v1384 = vsel %vm1254, %v1307, 0.0
      %v1385 = vsel %vm1255, %v1309, 0.0
      %v1386 = vsel %vm1256, %v1311, 0.0
      %v1387 = vsel %vm1257, %v1313, 0.0
      %v1388 = vsel %vm1258, %v1315, 0.0
      %v1389 = vsel %vm1259, %v1317, 0.0
      %v1390 = vsel %vm1260, %v1319, 0.0
      %v1391 = vsel %vm1261, %v1321, 0.0
      %v1392 = vsel %vm1262, %v1323, 0.0
      %v1393 = vsel %vm1263, %v1325, 0.0
      %v1394 = vsel %vm1264, %v1327, 0.0
      %v1395 = vsel %vm1265, %v1329, 0.0
      %v1396 = vsel %vm1266, %v1331, 0.0
      %v1397 = vsel %vm1267, %v1333, 0.0
      %v1398 = vsel %vm1174, %v755, 0.0
      %v1399 = vsel %vm1175, %v661, 0.0
      %v1400 = vsel %vm1176, %v663, 0.0
      %v1401 = vsel %vm1177, %v665, 0.0
      %v1402 = vsel %vm1178, %v667, 0.0
      %v1403 = vsel %vm1179, %v669, 0.0
      %v1404 = vsel %vm1180, %v671, 0.0
      %v1405 = vsel %vm1181, %v673, 0.0
      %v1406 = vsel %vm1182, %v675, 0.0
      %v1407 = vsel %vm1183, %v677, 0.0
      %v1408 = vsel %vm1184, %v679, 0.0
      %v1409 = vsel %vm1185, %v681, 0.0
      %v1410 = vsel %vm1186, %v683, 0.0
      %v1411 = vsel %vm1187, %v685, 0.0
      %v1412 = vsel %vm1188, %v687, 0.0
      %v1413 = vsel %vm1189, %v689, 0.0
      %v1414 = vsel %vm1190, %v691, 0.0
      %v1415 = vsel %vm1191, %v693, 0.0
      %v1416 = vsel %vm1192, %v695, 0.0
      %v1417 = vsel %vm1193, %v697, 0.0
      %v1418 = vsel %vm1194, %v699, 0.0
      %v1419 = vsel %vm1195, %v701, 0.0
      %v1420 = vsel %vm1196, %v703, 0.0
      %v1421 = vsel %vm1197, %v705, 0.0
      %v1422 = vsel %vm1198, %v707, 0.0
      %v1423 = vsel %vm1199, %v709, 0.0
      %v1424 = vsel %vm1200, %v711, 0.0
      %v1425 = vsel %vm1201, %v713, 0.0
      %v1426 = vsel %vm1202, %v715, 0.0
      %v1427 = vsel %vm1203, %v717, 0.0
      %v1428 = vsel %vm1204, %v719, 0.0
      %v1429 = vsel %vm1205, %v721, 0.0
      %v1431 = vrot.slane %v721, 2
      %v1432 = vsel %vm499, %v1332, %v1431
      %v1433 = vrot.slane %v756, 2
      %v1434 = vsel %vm499, %v1431, %v1433
      %v1437 = vsel %vm1236, %v1275, 0.0
      %v1438 = vsel %vm1237, %v1277, 0.0
      %v1439 = vsel %vm1238, %v1279, 0.0
      %v1440 = vsel %vm1239, %v1281, 0.0
      %v1441 = vsel %vm1240, %v1283, 0.0
      %v1442 = vsel %vm1241, %v1285, 0.0
      %v1443 = vsel %vm1242, %v1287, 0.0
      %v1444 = vsel %vm1243, %v1289, 0.0
      %v1445 = vsel %vm1244, %v1291, 0.0
      %v1446 = vsel %vm1245, %v1293, 0.0
      %v1447 = vsel %vm1246, %v1295, 0.0
      %v1448 = vsel %vm1247, %v1297, 0.0
      %v1449 = vsel %vm1248, %v1299, 0.0
      %v1450 = vsel %vm1249, %v1301, 0.0
      %v1451 = vsel %vm1250, %v1303, 0.0
      %v1452 = vsel %vm1251, %v1305, 0.0
      %v1453 = vsel %vm1252, %v1307, 0.0
      %v1454 = vsel %vm1253, %v1309, 0.0
      %v1455 = vsel %vm1254, %v1311, 0.0
      %v1456 = vsel %vm1255, %v1313, 0.0
      %v1457 = vsel %vm1256, %v1315, 0.0
      %v1458 = vsel %vm1257, %v1317, 0.0
      %v1459 = vsel %vm1258, %v1319, 0.0
      %v1460 = vsel %vm1259, %v1321, 0.0
      %v1461 = vsel %vm1260, %v1323, 0.0
      %v1462 = vsel %vm1261, %v1325, 0.0
      %v1463 = vsel %vm1262, %v1327, 0.0
      %v1464 = vsel %vm1263, %v1329, 0.0
      %v1465 = vsel %vm1264, %v1331, 0.0
      %v1466 = vsel %vm1265, %v1333, 0.0
      %v1467 = vsel %vm1266, %v1432, 0.0
      %v1468 = vsel %vm1267, %v1434, 0.0
      %v1469 = vsel %vm1174, %v663, 0.0
      %v1470 = vsel %vm1175, %v665, 0.0
      %v1471 = vsel %vm1176, %v667, 0.0
      %v1472 = vsel %vm1177, %v669, 0.0
      %v1473 = vsel %vm1178, %v671, 0.0
      %v1474 = vsel %vm1179, %v673, 0.0
      %v1475 = vsel %vm1180, %v675, 0.0
      %v1476 = vsel %vm1181, %v677, 0.0
      %v1477 = vsel %vm1182, %v679, 0.0
      %v1478 = vsel %vm1183, %v681, 0.0
      %v1479 = vsel %vm1184, %v683, 0.0
      %v1480 = vsel %vm1185, %v685, 0.0
      %v1481 = vsel %vm1186, %v687, 0.0
      %v1482 = vsel %vm1187, %v689, 0.0
      %v1483 = vsel %vm1188, %v691, 0.0
      %v1484 = vsel %vm1189, %v693, 0.0
      %v1485 = vsel %vm1190, %v695, 0.0
      %v1486 = vsel %vm1191, %v697, 0.0
      %v1487 = vsel %vm1192, %v699, 0.0
      %v1488 = vsel %vm1193, %v701, 0.0
      %v1489 = vsel %vm1194, %v703, 0.0
      %v1490 = vsel %vm1195, %v705, 0.0
      %v1491 = vsel %vm1196, %v707, 0.0
      %v1492 = vsel %vm1197, %v709, 0.0
      %v1493 = vsel %vm1198, %v711, 0.0
      %v1494 = vsel %vm1199, %v713, 0.0
      %v1495 = vsel %vm1200, %v715, 0.0
      %v1496 = vsel %vm1201, %v717, 0.0
      %v1497 = vsel %vm1202, %v719, 0.0
      %v1498 = vsel %vm1203, %v721, 0.0
      %v1499 = vsel %vm1204, %v756, 0.0
      %v1500 = vsel %vm499, %v1433, %v1270
      %v1502 = vsel %vm1236, %v1279, 0.0
      %v1503 = vsel %vm1237, %v1281, 0.0
      %v1504 = vsel %vm1238, %v1283, 0.0
      %v1505 = vsel %vm1239, %v1285, 0.0
      %v1506 = vsel %vm1240, %v1287, 0.0
      %v1507 = vsel %vm1241, %v1289, 0.0
      %v1508 = vsel %vm1242, %v1291, 0.0
      %v1509 = vsel %vm1243, %v1293, 0.0
      %v1510 = vsel %vm1244, %v1295, 0.0
      %v1511 = vsel %vm1245, %v1297, 0.0
      %v1512 = vsel %vm1246, %v1299, 0.0
      %v1513 = vsel %vm1247, %v1301, 0.0
      %v1514 = vsel %vm1248, %v1303, 0.0
      %v1515 = vsel %vm1249, %v1305, 0.0
      %v1516 = vsel %vm1250, %v1307, 0.0
      %v1517 = vsel %vm1251, %v1309, 0.0
      %v1518 = vsel %vm1252, %v1311, 0.0
      %v1519 = vsel %vm1253, %v1313, 0.0
      %v1520 = vsel %vm1254, %v1315, 0.0
      %v1521 = vsel %vm1255, %v1317, 0.0
      %v1522 = vsel %vm1256, %v1319, 0.0
      %v1523 = vsel %vm1257, %v1321, 0.0
      %v1524 = vsel %vm1258, %v1323, 0.0
      %v1525 = vsel %vm1259, %v1325, 0.0
      %v1526 = vsel %vm1260, %v1327, 0.0
      %v1527 = vsel %vm1261, %v1329, 0.0
      %v1528 = vsel %vm1262, %v1331, 0.0
      %v1529 = vsel %vm1263, %v1333, 0.0
      %v1530 = vsel %vm1264, %v1432, 0.0
      %v1531 = vsel %vm1265, %v1434, 0.0
      %v1532 = vsel %vm1266, %v1500, 0.0
      %v1533 = vsel %vm1267, %v1271, 0.0
      %vm1534 = vcmask 1046528
      %v1535 = vrot.slane 0.0, 1
      %v1536 = vsel %vm1534, %v1535, %v1535
      %v1537 = vrot.slane %v755, 1
      %v1538 = vsel %vm1534, %v1535, %v1537
      %v1539 = vrot.slane %v661, 1
      %v1540 = vsel %vm1534, %v1537, %v1539
      %v1541 = vrot.slane %v663, 1
      %v1542 = vsel %vm1534, %v1539, %v1541
      %v1543 = vrot.slane %v665, 1
      %v1544 = vsel %vm1534, %v1541, %v1543
      %v1545 = vrot.slane %v667, 1
      %v1546 = vsel %vm1534, %v1543, %v1545
      %v1547 = vrot.slane %v669, 1
      %v1548 = vsel %vm1534, %v1545, %v1547
      %v1549 = vrot.slane %v671, 1
      %v1550 = vsel %vm1534, %v1547, %v1549
      %v1551 = vrot.slane %v673, 1
      %v1552 = vsel %vm1534, %v1549, %v1551
      %v1553 = vrot.slane %v675, 1
      %v1554 = vsel %vm1534, %v1551, %v1553
      %v1555 = vrot.slane %v677, 1
      %v1556 = vsel %vm1534, %v1553, %v1555
      %v1557 = vrot.slane %v679, 1
      %v1558 = vsel %vm1534, %v1555, %v1557
      %v1559 = vrot.slane %v681, 1
      %v1560 = vsel %vm1534, %v1557, %v1559
      %v1561 = vrot.slane %v683, 1
      %v1562 = vsel %vm1534, %v1559, %v1561
      %v1563 = vrot.slane %v685, 1
      %v1564 = vsel %vm1534, %v1561, %v1563
      %v1565 = vrot.slane %v687, 1
      %v1566 = vsel %vm1534, %v1563, %v1565
      %v1567 = vrot.slane %v689, 1
      %v1568 = vsel %vm1534, %v1565, %v1567
      %v1569 = vrot.slane %v691, 1
      %v1570 = vsel %vm1534, %v1567, %v1569
      %v1571 = vrot.slane %v693, 1
      %v1572 = vsel %vm1534, %v1569, %v1571
      %v1573 = vrot.slane %v695, 1
      %v1574 = vsel %vm1534, %v1571, %v1573
      %v1575 = vrot.slane %v697, 1
      %v1576 = vsel %vm1534, %v1573, %v1575
      %v1577 = vrot.slane %v699, 1
      %v1578 = vsel %vm1534, %v1575, %v1577
      %v1579 = vrot.slane %v701, 1
      %v1580 = vsel %vm1534, %v1577, %v1579
      %v1581 = vrot.slane %v703, 1
      %v1582 = vsel %vm1534, %v1579, %v1581
      %v1583 = vrot.slane %v705, 1
      %v1584 = vsel %vm1534, %v1581, %v1583
      %v1585 = vrot.slane %v707, 1
      %v1586 = vsel %vm1534, %v1583, %v1585
      %v1587 = vrot.slane %v709, 1
      %v1588 = vsel %vm1534, %v1585, %v1587
      %v1589 = vrot.slane %v711, 1
      %v1590 = vsel %vm1534, %v1587, %v1589
      %v1591 = vrot.slane %v713, 1
      %v1592 = vsel %vm1534, %v1589, %v1591
      %v1593 = vrot.slane %v715, 1
      %v1594 = vsel %vm1534, %v1591, %v1593
      %v1595 = vrot.slane %v717, 1
      %v1596 = vsel %vm1534, %v1593, %v1595
      %v1597 = vrot.slane %v719, 1
      %v1598 = vsel %vm1534, %v1595, %v1597
      %1599 = vrot.lane.b32.xlu0 %v1536, 32
      %v1600 = vpop.permute.xlu0 %1599
      %1601 = vrot.lane.b32.xlu0 %v1538, 32
      %v1602 = vpop.permute.xlu0 %1601
      %1603 = vrot.lane.b32.xlu0 %v1540, 32
      %v1604 = vpop.permute.xlu0 %1603
      %1605 = vrot.lane.b32.xlu0 %v1542, 32
      %v1606 = vpop.permute.xlu0 %1605
      %1607 = vrot.lane.b32.xlu0 %v1544, 32
      %v1608 = vpop.permute.xlu0 %1607
      %1609 = vrot.lane.b32.xlu0 %v1546, 32
      %v1610 = vpop.permute.xlu0 %1609
      %1611 = vrot.lane.b32.xlu0 %v1548, 32
      %v1612 = vpop.permute.xlu0 %1611
      %1613 = vrot.lane.b32.xlu0 %v1550, 32
      %v1614 = vpop.permute.xlu0 %1613
      %1615 = vrot.lane.b32.xlu0 %v1552, 32
      %v1616 = vpop.permute.xlu0 %1615
      %1617 = vrot.lane.b32.xlu0 %v1554, 32
      %v1618 = vpop.permute.xlu0 %1617
      %1619 = vrot.lane.b32.xlu0 %v1556, 32
      %v1620 = vpop.permute.xlu0 %1619
      %1621 = vrot.lane.b32.xlu0 %v1558, 32
      %v1622 = vpop.permute.xlu0 %1621
      %1623 = vrot.lane.b32.xlu0 %v1560, 32
      %v1624 = vpop.permute.xlu0 %1623
      %1625 = vrot.lane.b32.xlu0 %v1562, 32
      %v1626 = vpop.permute.xlu0 %1625
      %1627 = vrot.lane.b32.xlu0 %v1564, 32
      %v1628 = vpop.permute.xlu0 %1627
      %1629 = vrot.lane.b32.xlu0 %v1566, 32
      %v1630 = vpop.permute.xlu0 %1629
      %1631 = vrot.lane.b32.xlu0 %v1568, 32
      %v1632 = vpop.permute.xlu0 %1631
      %1633 = vrot.lane.b32.xlu0 %v1570, 32
      %v1634 = vpop.permute.xlu0 %1633
      %1635 = vrot.lane.b32.xlu0 %v1572, 32
      %v1636 = vpop.permute.xlu0 %1635
      %1637 = vrot.lane.b32.xlu0 %v1574, 32
      %v1638 = vpop.permute.xlu0 %1637
      %1639 = vrot.lane.b32.xlu0 %v1576, 32
      %v1640 = vpop.permute.xlu0 %1639
      %1641 = vrot.lane.b32.xlu0 %v1578, 32
      %v1642 = vpop.permute.xlu0 %1641
      %1643 = vrot.lane.b32.xlu0 %v1580, 32
      %v1644 = vpop.permute.xlu0 %1643
      %1645 = vrot.lane.b32.xlu0 %v1582, 32
      %v1646 = vpop.permute.xlu0 %1645
      %1647 = vrot.lane.b32.xlu0 %v1584, 32
      %v1648 = vpop.permute.xlu0 %1647
      %1649 = vrot.lane.b32.xlu0 %v1586, 32
      %v1650 = vpop.permute.xlu0 %1649
      %1651 = vrot.lane.b32.xlu0 %v1588, 32
      %v1652 = vpop.permute.xlu0 %1651
      %1653 = vrot.lane.b32.xlu0 %v1590, 32
      %v1654 = vpop.permute.xlu0 %1653
      %1655 = vrot.lane.b32.xlu0 %v1592, 32
      %v1656 = vpop.permute.xlu0 %1655
      %1657 = vrot.lane.b32.xlu0 %v1594, 32
      %v1658 = vpop.permute.xlu0 %1657
      %1659 = vrot.lane.b32.xlu0 %v1596, 32
      %v1660 = vpop.permute.xlu0 %1659
      %1661 = vrot.lane.b32.xlu0 %v1598, 32
      %v1662 = vpop.permute.xlu0 %1661
      %1727 = vrot.lane.b32.xlu0 %v1366, 64
      %v1728 = vpop.permute.xlu0 %1727
      %1729 = vrot.lane.b32.xlu0 %v1367, 64
      %v1730 = vpop.permute.xlu0 %1729
      %1731 = vrot.lane.b32.xlu0 %v1368, 64
      %v1732 = vpop.permute.xlu0 %1731
      %1733 = vrot.lane.b32.xlu0 %v1369, 64
      %v1734 = vpop.permute.xlu0 %1733
      %1735 = vrot.lane.b32.xlu0 %v1370, 64
      %v1736 = vpop.permute.xlu0 %1735
      %1737 = vrot.lane.b32.xlu0 %v1371, 64
      %v1738 = vpop.permute.xlu0 %1737
      %1739 = vrot.lane.b32.xlu0 %v1372, 64
      %v1740 = vpop.permute.xlu0 %1739
      %1741 = vrot.lane.b32.xlu0 %v1373, 64
      %v1742 = vpop.permute.xlu0 %1741
      %1743 = vrot.lane.b32.xlu0 %v1374, 64
      %v1744 = vpop.permute.xlu0 %1743
      %1745 = vrot.lane.b32.xlu0 %v1375, 64
      %v1746 = vpop.permute.xlu0 %1745
      %1747 = vrot.lane.b32.xlu0 %v1376, 64
      %v1748 = vpop.permute.xlu0 %1747
      %1749 = vrot.lane.b32.xlu0 %v1377, 64
      %v1750 = vpop.permute.xlu0 %1749
      %1751 = vrot.lane.b32.xlu0 %v1378, 64
      %v1752 = vpop.permute.xlu0 %1751
      %1753 = vrot.lane.b32.xlu0 %v1379, 64
      %v1754 = vpop.permute.xlu0 %1753
      %1755 = vrot.lane.b32.xlu0 %v1380, 64
      %v1756 = vpop.permute.xlu0 %1755
      %1757 = vrot.lane.b32.xlu0 %v1381, 64
      %v1758 = vpop.permute.xlu0 %1757
      %1759 = vrot.lane.b32.xlu0 %v1382, 64
      %v1760 = vpop.permute.xlu0 %1759
      %1761 = vrot.lane.b32.xlu0 %v1383, 64
      %v1762 = vpop.permute.xlu0 %1761
      %1763 = vrot.lane.b32.xlu0 %v1384, 64
      %v1764 = vpop.permute.xlu0 %1763
      %1765 = vrot.lane.b32.xlu0 %v1385, 64
      %v1766 = vpop.permute.xlu0 %1765
      %1767 = vrot.lane.b32.xlu0 %v1386, 64
      %v1768 = vpop.permute.xlu0 %1767
      %1769 = vrot.lane.b32.xlu0 %v1387, 64
      %v1770 = vpop.permute.xlu0 %1769
      %1771 = vrot.lane.b32.xlu0 %v1388, 64
      %v1772 = vpop.permute.xlu0 %1771
      %1773 = vrot.lane.b32.xlu0 %v1389, 64
      %v1774 = vpop.permute.xlu0 %1773
      %1775 = vrot.lane.b32.xlu0 %v1390, 64
      %v1776 = vpop.permute.xlu0 %1775
      %1777 = vrot.lane.b32.xlu0 %v1391, 64
      %v1778 = vpop.permute.xlu0 %1777
      %1779 = vrot.lane.b32.xlu0 %v1392, 64
      %v1780 = vpop.permute.xlu0 %1779
      %1781 = vrot.lane.b32.xlu0 %v1393, 64
      %v1782 = vpop.permute.xlu0 %1781
      %1783 = vrot.lane.b32.xlu0 %v1394, 64
      %v1784 = vpop.permute.xlu0 %1783
      %1785 = vrot.lane.b32.xlu0 %v1395, 64
      %v1786 = vpop.permute.xlu0 %1785
      %1787 = vrot.lane.b32.xlu0 %v1396, 64
      %v1788 = vpop.permute.xlu0 %1787
      %1789 = vrot.lane.b32.xlu0 %v1397, 64
      %v1790 = vpop.permute.xlu0 %1789
      %1855 = vrot.lane.b32.xlu0 %v1398, 96
      %v1856 = vpop.permute.xlu0 %1855
      %1857 = vrot.lane.b32.xlu0 %v1399, 96
      %v1858 = vpop.permute.xlu0 %1857
      %1859 = vrot.lane.b32.xlu0 %v1400, 96
      %v1860 = vpop.permute.xlu0 %1859
      %1861 = vrot.lane.b32.xlu0 %v1401, 96
      %v1862 = vpop.permute.xlu0 %1861
      %1863 = vrot.lane.b32.xlu0 %v1402, 96
      %v1864 = vpop.permute.xlu0 %1863
      %1865 = vrot.lane.b32.xlu0 %v1403, 96
      %v1866 = vpop.permute.xlu0 %1865
      %1867 = vrot.lane.b32.xlu0 %v1404, 96
      %v1868 = vpop.permute.xlu0 %1867
      %1869 = vrot.lane.b32.xlu0 %v1405, 96
      %v1870 = vpop.permute.xlu0 %1869
      %1871 = vrot.lane.b32.xlu0 %v1406, 96
      %v1872 = vpop.permute.xlu0 %1871
      %1873 = vrot.lane.b32.xlu0 %v1407, 96
      %v1874 = vpop.permute.xlu0 %1873
      %1875 = vrot.lane.b32.xlu0 %v1408, 96
      %v1876 = vpop.permute.xlu0 %1875
      %1877 = vrot.lane.b32.xlu0 %v1409, 96
      %v1878 = vpop.permute.xlu0 %1877
      %1879 = vrot.lane.b32.xlu0 %v1410, 96
      %v1880 = vpop.permute.xlu0 %1879
      %1881 = vrot.lane.b32.xlu0 %v1411, 96
      %v1882 = vpop.permute.xlu0 %1881
      %1883 = vrot.lane.b32.xlu0 %v1412, 96
      %v1884 = vpop.permute.xlu0 %1883
      %1885 = vrot.lane.b32.xlu0 %v1413, 96
      %v1886 = vpop.permute.xlu0 %1885
      %1887 = vrot.lane.b32.xlu0 %v1414, 96
      %v1888 = vpop.permute.xlu0 %1887
      %1889 = vrot.lane.b32.xlu0 %v1415, 96
      %v1890 = vpop.permute.xlu0 %1889
      %1891 = vrot.lane.b32.xlu0 %v1416, 96
      %v1892 = vpop.permute.xlu0 %1891
      %1893 = vrot.lane.b32.xlu0 %v1417, 96
      %v1894 = vpop.permute.xlu0 %1893
      %1895 = vrot.lane.b32.xlu0 %v1418, 96
      %v1896 = vpop.permute.xlu0 %1895
      %1897 = vrot.lane.b32.xlu0 %v1419, 96
      %v1898 = vpop.permute.xlu0 %1897
      %1899 = vrot.lane.b32.xlu0 %v1420, 96
      %v1900 = vpop.permute.xlu0 %1899
      %1901 = vrot.lane.b32.xlu0 %v1421, 96
      %v1902 = vpop.permute.xlu0 %1901
      %1903 = vrot.lane.b32.xlu0 %v1422, 96
      %v1904 = vpop.permute.xlu0 %1903
      %1905 = vrot.lane.b32.xlu0 %v1423, 96
      %v1906 = vpop.permute.xlu0 %1905
      %1907 = vrot.lane.b32.xlu0 %v1424, 96
      %v1908 = vpop.permute.xlu0 %1907
      %1909 = vrot.lane.b32.xlu0 %v1425, 96
      %v1910 = vpop.permute.xlu0 %1909
      %1911 = vrot.lane.b32.xlu0 %v1426, 96
      %v1912 = vpop.permute.xlu0 %1911
      %1913 = vrot.lane.b32.xlu0 %v1427, 96
      %v1914 = vpop.permute.xlu0 %1913
      %1915 = vrot.lane.b32.xlu0 %v1428, 96
      %v1916 = vpop.permute.xlu0 %1915
      %1917 = vrot.lane.b32.xlu0 %v1429, 96
      %v1918 = vpop.permute.xlu0 %1917
      %v1951 = vrot.slane %v721, 1
      %v1952 = vsel %vm1534, %v1597, %v1951
      %v1953 = vrot.slane %v756, 1
      %v1954 = vsel %vm1534, %v1951, %v1953
      %2019 = vrot.lane.b32.xlu0 %v1437, 32
      %v2020 = vpop.permute.xlu0 %2019
      %2021 = vrot.lane.b32.xlu0 %v1438, 32
      %v2022 = vpop.permute.xlu0 %2021
      %2023 = vrot.lane.b32.xlu0 %v1439, 32
      %v2024 = vpop.permute.xlu0 %2023
      %2025 = vrot.lane.b32.xlu0 %v1440, 32
      %v2026 = vpop.permute.xlu0 %2025
      %2027 = vrot.lane.b32.xlu0 %v1441, 32
      %v2028 = vpop.permute.xlu0 %2027
      %2029 = vrot.lane.b32.xlu0 %v1442, 32
      %v2030 = vpop.permute.xlu0 %2029
      %2031 = vrot.lane.b32.xlu0 %v1443, 32
      %v2032 = vpop.permute.xlu0 %2031
      %2033 = vrot.lane.b32.xlu0 %v1444, 32
      %v2034 = vpop.permute.xlu0 %2033
      %2035 = vrot.lane.b32.xlu0 %v1445, 32
      %v2036 = vpop.permute.xlu0 %2035
      %2037 = vrot.lane.b32.xlu0 %v1446, 32
      %v2038 = vpop.permute.xlu0 %2037
      %2039 = vrot.lane.b32.xlu0 %v1447, 32
      %v2040 = vpop.permute.xlu0 %2039
      %2041 = vrot.lane.b32.xlu0 %v1448, 32
      %v2042 = vpop.permute.xlu0 %2041
      %2043 = vrot.lane.b32.xlu0 %v1449, 32
      %v2044 = vpop.permute.xlu0 %2043
      %2045 = vrot.lane.b32.xlu0 %v1450, 32
      %v2046 = vpop.permute.xlu0 %2045
      %2047 = vrot.lane.b32.xlu0 %v1451, 32
      %v2048 = vpop.permute.xlu0 %2047
      %2049 = vrot.lane.b32.xlu0 %v1452, 32
      %v2050 = vpop.permute.xlu0 %2049
      %2051 = vrot.lane.b32.xlu0 %v1453, 32
      %v2052 = vpop.permute.xlu0 %2051
      %2053 = vrot.lane.b32.xlu0 %v1454, 32
      %v2054 = vpop.permute.xlu0 %2053
      %2055 = vrot.lane.b32.xlu0 %v1455, 32
      %v2056 = vpop.permute.xlu0 %2055
      %2057 = vrot.lane.b32.xlu0 %v1456, 32
      %v2058 = vpop.permute.xlu0 %2057
      %2059 = vrot.lane.b32.xlu0 %v1457, 32
      %v2060 = vpop.permute.xlu0 %2059
      %2061 = vrot.lane.b32.xlu0 %v1458, 32
      %v2062 = vpop.permute.xlu0 %2061
      %2063 = vrot.lane.b32.xlu0 %v1459, 32
      %v2064 = vpop.permute.xlu0 %2063
      %2065 = vrot.lane.b32.xlu0 %v1460, 32
      %v2066 = vpop.permute.xlu0 %2065
      %2067 = vrot.lane.b32.xlu0 %v1461, 32
      %v2068 = vpop.permute.xlu0 %2067
      %2069 = vrot.lane.b32.xlu0 %v1462, 32
      %v2070 = vpop.permute.xlu0 %2069
      %2071 = vrot.lane.b32.xlu0 %v1463, 32
      %v2072 = vpop.permute.xlu0 %2071
      %2073 = vrot.lane.b32.xlu0 %v1464, 32
      %v2074 = vpop.permute.xlu0 %2073
      %2075 = vrot.lane.b32.xlu0 %v1465, 32
      %v2076 = vpop.permute.xlu0 %2075
      %2077 = vrot.lane.b32.xlu0 %v1466, 32
      %v2078 = vpop.permute.xlu0 %2077
      %2079 = vrot.lane.b32.xlu0 %v1467, 32
      %v2080 = vpop.permute.xlu0 %2079
      %2081 = vrot.lane.b32.xlu0 %v1468, 32
      %v2082 = vpop.permute.xlu0 %2081
      %2146 = vrot.lane.b32.xlu0 %v1469, 64
      %v2147 = vpop.permute.xlu0 %2146
      %2148 = vrot.lane.b32.xlu0 %v1470, 64
      %v2149 = vpop.permute.xlu0 %2148
      %2150 = vrot.lane.b32.xlu0 %v1471, 64
      %v2151 = vpop.permute.xlu0 %2150
      %2152 = vrot.lane.b32.xlu0 %v1472, 64
      %v2153 = vpop.permute.xlu0 %2152
      %2154 = vrot.lane.b32.xlu0 %v1473, 64
      %v2155 = vpop.permute.xlu0 %2154
      %2156 = vrot.lane.b32.xlu0 %v1474, 64
      %v2157 = vpop.permute.xlu0 %2156
      %2158 = vrot.lane.b32.xlu0 %v1475, 64
      %v2159 = vpop.permute.xlu0 %2158
      %2160 = vrot.lane.b32.xlu0 %v1476, 64
      %v2161 = vpop.permute.xlu0 %2160
      %2162 = vrot.lane.b32.xlu0 %v1477, 64
      %v2163 = vpop.permute.xlu0 %2162
      %2164 = vrot.lane.b32.xlu0 %v1478, 64
      %v2165 = vpop.permute.xlu0 %2164
      %2166 = vrot.lane.b32.xlu0 %v1479, 64
      %v2167 = vpop.permute.xlu0 %2166
      %2168 = vrot.lane.b32.xlu0 %v1480, 64
      %v2169 = vpop.permute.xlu0 %2168
      %2170 = vrot.lane.b32.xlu0 %v1481, 64
      %v2171 = vpop.permute.xlu0 %2170
      %2172 = vrot.lane.b32.xlu0 %v1482, 64
      %v2173 = vpop.permute.xlu0 %2172
      %2174 = vrot.lane.b32.xlu0 %v1483, 64
      %v2175 = vpop.permute.xlu0 %2174
      %2176 = vrot.lane.b32.xlu0 %v1484, 64
      %v2177 = vpop.permute.xlu0 %2176
      %2178 = vrot.lane.b32.xlu0 %v1485, 64
      %v2179 = vpop.permute.xlu0 %2178
      %2180 = vrot.lane.b32.xlu0 %v1486, 64
      %v2181 = vpop.permute.xlu0 %2180
      %2182 = vrot.lane.b32.xlu0 %v1487, 64
      %v2183 = vpop.permute.xlu0 %2182
      %2184 = vrot.lane.b32.xlu0 %v1488, 64
      %v2185 = vpop.permute.xlu0 %2184
      %2186 = vrot.lane.b32.xlu0 %v1489, 64
      %v2187 = vpop.permute.xlu0 %2186
      %2188 = vrot.lane.b32.xlu0 %v1490, 64
      %v2189 = vpop.permute.xlu0 %2188
      %2190 = vrot.lane.b32.xlu0 %v1491, 64
      %v2191 = vpop.permute.xlu0 %2190
      %2192 = vrot.lane.b32.xlu0 %v1492, 64
      %v2193 = vpop.permute.xlu0 %2192
      %2194 = vrot.lane.b32.xlu0 %v1493, 64
      %v2195 = vpop.permute.xlu0 %2194
      %2196 = vrot.lane.b32.xlu0 %v1494, 64
      %v2197 = vpop.permute.xlu0 %2196
      %2198 = vrot.lane.b32.xlu0 %v1495, 64
      %v2199 = vpop.permute.xlu0 %2198
      %2200 = vrot.lane.b32.xlu0 %v1496, 64
      %v2201 = vpop.permute.xlu0 %2200
      %2202 = vrot.lane.b32.xlu0 %v1497, 64
      %v2203 = vpop.permute.xlu0 %2202
      %2204 = vrot.lane.b32.xlu0 %v1498, 64
      %v2205 = vpop.permute.xlu0 %2204
      %2206 = vrot.lane.b32.xlu0 %v1499, 64
      %v2207 = vpop.permute.xlu0 %2206
      %2208 = vrot.lane.b32.xlu0 0.0, 64
      %v2209 = vpop.permute.xlu0 %2208
      %v2242 = vsel %vm1534, %v1953, %v1535
      %2243 = vrot.lane.b32.xlu0 %v1544, 96
      %v2244 = vpop.permute.xlu0 %2243
      %2245 = vrot.lane.b32.xlu0 %v1546, 96
      %v2246 = vpop.permute.xlu0 %2245
      %2247 = vrot.lane.b32.xlu0 %v1548, 96
      %v2248 = vpop.permute.xlu0 %2247
      %2249 = vrot.lane.b32.xlu0 %v1550, 96
      %v2250 = vpop.permute.xlu0 %2249
      %2251 = vrot.lane.b32.xlu0 %v1552, 96
      %v2252 = vpop.permute.xlu0 %2251
      %2253 = vrot.lane.b32.xlu0 %v1554, 96
      %v2254 = vpop.permute.xlu0 %2253
      %2255 = vrot.lane.b32.xlu0 %v1556, 96
      %v2256 = vpop.permute.xlu0 %2255
      %2257 = vrot.lane.b32.xlu0 %v1558, 96
      %v2258 = vpop.permute.xlu0 %2257
      %2259 = vrot.lane.b32.xlu0 %v1560, 96
      %v2260 = vpop.permute.xlu0 %2259
      %2261 = vrot.lane.b32.xlu0 %v1562, 96
      %v2262 = vpop.permute.xlu0 %2261
      %2263 = vrot.lane.b32.xlu0 %v1564, 96
      %v2264 = vpop.permute.xlu0 %2263
      %2265 = vrot.lane.b32.xlu0 %v1566, 96
      %v2266 = vpop.permute.xlu0 %2265
      %2267 = vrot.lane.b32.xlu0 %v1568, 96
      %v2268 = vpop.permute.xlu0 %2267
      %2269 = vrot.lane.b32.xlu0 %v1570, 96
      %v2270 = vpop.permute.xlu0 %2269
      %2271 = vrot.lane.b32.xlu0 %v1572, 96
      %v2272 = vpop.permute.xlu0 %2271
      %2273 = vrot.lane.b32.xlu0 %v1574, 96
      %v2274 = vpop.permute.xlu0 %2273
      %2275 = vrot.lane.b32.xlu0 %v1576, 96
      %v2276 = vpop.permute.xlu0 %2275
      %2277 = vrot.lane.b32.xlu0 %v1578, 96
      %v2278 = vpop.permute.xlu0 %2277
      %2279 = vrot.lane.b32.xlu0 %v1580, 96
      %v2280 = vpop.permute.xlu0 %2279
      %2281 = vrot.lane.b32.xlu0 %v1582, 96
      %v2282 = vpop.permute.xlu0 %2281
      %2283 = vrot.lane.b32.xlu0 %v1584, 96
      %v2284 = vpop.permute.xlu0 %2283
      %2285 = vrot.lane.b32.xlu0 %v1586, 96
      %v2286 = vpop.permute.xlu0 %2285
      %2287 = vrot.lane.b32.xlu0 %v1588, 96
      %v2288 = vpop.permute.xlu0 %2287
      %2289 = vrot.lane.b32.xlu0 %v1590, 96
      %v2290 = vpop.permute.xlu0 %2289
      %2291 = vrot.lane.b32.xlu0 %v1592, 96
      %v2292 = vpop.permute.xlu0 %2291
      %2293 = vrot.lane.b32.xlu0 %v1594, 96
      %v2294 = vpop.permute.xlu0 %2293
      %2295 = vrot.lane.b32.xlu0 %v1596, 96
      %v2296 = vpop.permute.xlu0 %2295
      %2297 = vrot.lane.b32.xlu0 %v1598, 96
      %v2298 = vpop.permute.xlu0 %2297
      %2299 = vrot.lane.b32.xlu0 %v1952, 96
      %v2300 = vpop.permute.xlu0 %2299
      %2301 = vrot.lane.b32.xlu0 %v1954, 96
      %v2302 = vpop.permute.xlu0 %2301
      %2303 = vrot.lane.b32.xlu0 %v2242, 96
      %v2304 = vpop.permute.xlu0 %2303
      %2305 = vrot.lane.b32.xlu0 %v1536, 96
      %v2306 = vpop.permute.xlu0 %2305
      %vm2339 = vcmask 261120
      %v2340 = vsel %vm2339, 0.0, %v1600
      %v2341 = vsel %vm2339, 0.0, %v1602
      %v2342 = vsel %vm2339, %v1206, %v1604
      %v2343 = vsel %vm2339, %v1207, %v1606
      %v2344 = vsel %vm2339, %v1208, %v1608
      %v2345 = vsel %vm2339, %v1209, %v1610
      %v2346 = vsel %vm2339, %v1210, %v1612
      %v2347 = vsel %vm2339, %v1211, %v1614
      %v2348 = vsel %vm2339, %v1212, %v1616
      %v2349 = vsel %vm2339, %v1213, %v1618
      %v2350 = vsel %vm2339, %v1214, %v1620
      %v2351 = vsel %vm2339, %v1215, %v1622
      %v2352 = vsel %vm2339, %v1216, %v1624
      %v2353 = vsel %vm2339, %v1217, %v1626
      %v2354 = vsel %vm2339, %v1218, %v1628
      %v2355 = vsel %vm2339, %v1219, %v1630
      %v2356 = vsel %vm2339, %v1220, %v1632
      %v2357 = vsel %vm2339, %v1221, %v1634
      %v2358 = vsel %vm2339, %v1222, %v1636
      %v2359 = vsel %vm2339, %v1223, %v1638
      %v2360 = vsel %vm2339, %v1224, %v1640
      %v2361 = vsel %vm2339, %v1225, %v1642
      %v2362 = vsel %vm2339, %v1226, %v1644
      %v2363 = vsel %vm2339, %v1227, %v1646
      %v2364 = vsel %vm2339, %v1228, %v1648
      %v2365 = vsel %vm2339, %v1229, %v1650
      %v2366 = vsel %vm2339, %v1230, %v1652
      %v2367 = vsel %vm2339, %v1231, %v1654
      %v2368 = vsel %vm2339, %v1232, %v1656
      %v2369 = vsel %vm2339, %v1233, %v1658
      %v2370 = vsel %vm2339, %v1234, %v1660
      %v2371 = vsel %vm2339, %v1235, %v1662
      %vm2372 = vcmask 523264
      %v2373 = vsel %vm2372, %v2340, %v1728
      %v2374 = vsel %vm2372, %v2341, %v1730
      %v2375 = vsel %vm2372, %v2342, %v1732
      %v2376 = vsel %vm2372, %v2343, %v1734
      %v2377 = vsel %vm2372, %v2344, %v1736
      %v2378 = vsel %vm2372, %v2345, %v1738
      %v2379 = vsel %vm2372, %v2346, %v1740
      %v2380 = vsel %vm2372, %v2347, %v1742
      %v2381 = vsel %vm2372, %v2348, %v1744
      %v2382 = vsel %vm2372, %v2349, %v1746
      %v2383 = vsel %vm2372, %v2350, %v1748
      %v2384 = vsel %vm2372, %v2351, %v1750
      %v2385 = vsel %vm2372, %v2352, %v1752
      %v2386 = vsel %vm2372, %v2353, %v1754
      %v2387 = vsel %vm2372, %v2354, %v1756
      %v2388 = vsel %vm2372, %v2355, %v1758
      %v2389 = vsel %vm2372, %v2356, %v1760
      %v2390 = vsel %vm2372, %v2357, %v1762
      %v2391 = vsel %vm2372, %v2358, %v1764
      %v2392 = vsel %vm2372, %v2359, %v1766
      %v2393 = vsel %vm2372, %v2360, %v1768
      %v2394 = vsel %vm2372, %v2361, %v1770
      %v2395 = vsel %vm2372, %v2362, %v1772
      %v2396 = vsel %vm2372, %v2363, %v1774
      %v2397 = vsel %vm2372, %v2364, %v1776
      %v2398 = vsel %vm2372, %v2365, %v1778
      %v2399 = vsel %vm2372, %v2366, %v1780
      %v2400 = vsel %vm2372, %v2367, %v1782
      %v2401 = vsel %vm2372, %v2368, %v1784
      %v2402 = vsel %vm2372, %v2369, %v1786
      %v2403 = vsel %vm2372, %v2370, %v1788
      %v2404 = vsel %vm2372, %v2371, %v1790
      %vm2405 = vcmask 785408
      %v2406 = vsel %vm2405, %v2373, %v1856
      %v2407 = vsel %vm2405, %v2374, %v1858
      %v2408 = vsel %vm2405, %v2375, %v1860
      %v2409 = vsel %vm2405, %v2376, %v1862
      %v2410 = vsel %vm2405, %v2377, %v1864
      %v2411 = vsel %vm2405, %v2378, %v1866
      %v2412 = vsel %vm2405, %v2379, %v1868
      %v2413 = vsel %vm2405, %v2380, %v1870
      %v2414 = vsel %vm2405, %v2381, %v1872
      %v2415 = vsel %vm2405, %v2382, %v1874
      %v2416 = vsel %vm2405, %v2383, %v1876
      %v2417 = vsel %vm2405, %v2384, %v1878
      %v2418 = vsel %vm2405, %v2385, %v1880
      %v2419 = vsel %vm2405, %v2386, %v1882
      %v2420 = vsel %vm2405, %v2387, %v1884
      %v2421 = vsel %vm2405, %v2388, %v1886
      %v2422 = vsel %vm2405, %v2389, %v1888
      %v2423 = vsel %vm2405, %v2390, %v1890
      %v2424 = vsel %vm2405, %v2391, %v1892
      %v2425 = vsel %vm2405, %v2392, %v1894
      %v2426 = vsel %vm2405, %v2393, %v1896
      %v2427 = vsel %vm2405, %v2394, %v1898
      %v2428 = vsel %vm2405, %v2395, %v1900
      %v2429 = vsel %vm2405, %v2396, %v1902
      %v2430 = vsel %vm2405, %v2397, %v1904
      %v2431 = vsel %vm2405, %v2398, %v1906
      %v2432 = vsel %vm2405, %v2399, %v1908
      %v2433 = vsel %vm2405, %v2400, %v1910
      %v2434 = vsel %vm2405, %v2401, %v1912
      %v2435 = vsel %vm2405, %v2402, %v1914
      %v2436 = vsel %vm2405, %v2403, %v1916
      %v2437 = vsel %vm2405, %v2404, %v1918
      %v2438 = vsel %vm2339, %v1540, %v2020
      %v2439 = vsel %vm2339, %v1542, %v2022
      %v2440 = vsel %vm2339, %v1544, %v2024
      %v2441 = vsel %vm2339, %v1546, %v2026
      %v2442 = vsel %vm2339, %v1548, %v2028
      %v2443 = vsel %vm2339, %v1550, %v2030
      %v2444 = vsel %vm2339, %v1552, %v2032
      %v2445 = vsel %vm2339, %v1554, %v2034
      %v2446 = vsel %vm2339, %v1556, %v2036
      %v2447 = vsel %vm2339, %v1558, %v2038
      %v2448 = vsel %vm2339, %v1560, %v2040
      %v2449 = vsel %vm2339, %v1562, %v2042
      %v2450 = vsel %vm2339, %v1564, %v2044
      %v2451 = vsel %vm2339, %v1566, %v2046
      %v2452 = vsel %vm2339, %v1568, %v2048
      %v2453 = vsel %vm2339, %v1570, %v2050
      %v2454 = vsel %vm2339, %v1572, %v2052
      %v2455 = vsel %vm2339, %v1574, %v2054
      %v2456 = vsel %vm2339, %v1576, %v2056
      %v2457 = vsel %vm2339, %v1578, %v2058
      %v2458 = vsel %vm2339, %v1580, %v2060
      %v2459 = vsel %vm2339, %v1582, %v2062
      %v2460 = vsel %vm2339, %v1584, %v2064
      %v2461 = vsel %vm2339, %v1586, %v2066
      %v2462 = vsel %vm2339, %v1588, %v2068
      %v2463 = vsel %vm2339, %v1590, %v2070
      %v2464 = vsel %vm2339, %v1592, %v2072
      %v2465 = vsel %vm2339, %v1594, %v2074
      %v2466 = vsel %vm2339, %v1596, %v2076
      %v2467 = vsel %vm2339, %v1598, %v2078
      %v2468 = vsel %vm2339, %v1952, %v2080
      %v2469 = vsel %vm2339, %v1954, %v2082
      %v2470 = vsel %vm2372, %v2438, %v2147
      %v2471 = vsel %vm2372, %v2439, %v2149
      %v2472 = vsel %vm2372, %v2440, %v2151
      %v2473 = vsel %vm2372, %v2441, %v2153
      %v2474 = vsel %vm2372, %v2442, %v2155
      %v2475 = vsel %vm2372, %v2443, %v2157
      %v2476 = vsel %vm2372, %v2444, %v2159
      %v2477 = vsel %vm2372, %v2445, %v2161
      %v2478 = vsel %vm2372, %v2446, %v2163
      %v2479 = vsel %vm2372, %v2447, %v2165
      %v2480 = vsel %vm2372, %v2448, %v2167
      %v2481 = vsel %vm2372, %v2449, %v2169
      %v2482 = vsel %vm2372, %v2450, %v2171
      %v2483 = vsel %vm2372, %v2451, %v2173
      %v2484 = vsel %vm2372, %v2452, %v2175
      %v2485 = vsel %vm2372, %v2453, %v2177
      %v2486 = vsel %vm2372, %v2454, %v2179
      %v2487 = vsel %vm2372, %v2455, %v2181
      %v2488 = vsel %vm2372, %v2456, %v2183
      %v2489 = vsel %vm2372, %v2457, %v2185
      %v2490 = vsel %vm2372, %v2458, %v2187
      %v2491 = vsel %vm2372, %v2459, %v2189
      %v2492 = vsel %vm2372, %v2460, %v2191
      %v2493 = vsel %vm2372, %v2461, %v2193
      %v2494 = vsel %vm2372, %v2462, %v2195
      %v2495 = vsel %vm2372, %v2463, %v2197
      %v2496 = vsel %vm2372, %v2464, %v2199
      %v2497 = vsel %vm2372, %v2465, %v2201
      %v2498 = vsel %vm2372, %v2466, %v2203
      %v2499 = vsel %vm2372, %v2467, %v2205
      %v2500 = vsel %vm2372, %v2468, %v2207
      %v2501 = vsel %vm2372, %v2469, %v2209
      %v2502 = vsel %vm2405, %v2470, %v2244
      %v2503 = vsel %vm2405, %v2471, %v2246
      %v2504 = vsel %vm2405, %v2472, %v2248
      %v2505 = vsel %vm2405, %v2473, %v2250
      %v2506 = vsel %vm2405, %v2474, %v2252
      %v2507 = vsel %vm2405, %v2475, %v2254
      %v2508 = vsel %vm2405, %v2476, %v2256
      %v2509 = vsel %vm2405, %v2477, %v2258
      %v2510 = vsel %vm2405, %v2478, %v2260
      %v2511 = vsel %vm2405, %v2479, %v2262
      %v2512 = vsel %vm2405, %v2480, %v2264
      %v2513 = vsel %vm2405, %v2481, %v2266
      %v2514 = vsel %vm2405, %v2482, %v2268
      %v2515 = vsel %vm2405, %v2483, %v2270
      %v2516 = vsel %vm2405, %v2484, %v2272
      %v2517 = vsel %vm2405, %v2485, %v2274
      %v2518 = vsel %vm2405, %v2486, %v2276
      %v2519 = vsel %vm2405, %v2487, %v2278
      %v2520 = vsel %vm2405, %v2488, %v2280
      %v2521 = vsel %vm2405, %v2489, %v2282
      %v2522 = vsel %vm2405, %v2490, %v2284
      %v2523 = vsel %vm2405, %v2491, %v2286
      %v2524 = vsel %vm2405, %v2492, %v2288
      %v2525 = vsel %vm2405, %v2493, %v2290
      %v2526 = vsel %vm2405, %v2494, %v2292
      %v2527 = vsel %vm2405, %v2495, %v2294
      %v2528 = vsel %vm2405, %v2496, %v2296
      %v2529 = vsel %vm2405, %v2497, %v2298
      %v2530 = vsel %vm2405, %v2498, %v2300
      %v2531 = vsel %vm2405, %v2499, %v2302
      %v2532 = vsel %vm2405, %v2500, %v2304
      %v2533 = vsel %vm2405, %v2501, %v2306
      %v2534 = vpack.c.bf16 %v2407, %v2406
      %v2535 = vpack.c.bf16 %v2503, %v2502
      %v2536 = vpack.c.bf16 %v1503, %v1502
      %v2537 = vpack.c.bf16 %v2409, %v2408
      %v2538 = vpack.c.bf16 %v2505, %v2504
      %v2539 = vpack.c.bf16 %v1505, %v1504
      %v2540 = vpack.c.bf16 %v2411, %v2410
      %v2541 = vpack.c.bf16 %v2507, %v2506
      %v2542 = vpack.c.bf16 %v1507, %v1506
      %v2543 = vpack.c.bf16 %v2413, %v2412
      %v2544 = vpack.c.bf16 %v2509, %v2508
      %v2545 = vpack.c.bf16 %v1509, %v1508
      %v2546 = vpack.c.bf16 %v2415, %v2414
      %v2547 = vpack.c.bf16 %v2511, %v2510
      %v2548 = vpack.c.bf16 %v1511, %v1510
      %v2549 = vpack.c.bf16 %v2417, %v2416
      %v2550 = vpack.c.bf16 %v2513, %v2512
      %v2551 = vpack.c.bf16 %v1513, %v1512
      %v2552 = vpack.c.bf16 %v2419, %v2418
      %v2553 = vpack.c.bf16 %v2515, %v2514
      %v2554 = vpack.c.bf16 %v1515, %v1514
      %v2555 = vpack.c.bf16 %v2421, %v2420
      %v2556 = vpack.c.bf16 %v2517, %v2516
      %v2557 = vpack.c.bf16 %v1517, %v1516
      %v2558 = vpack.c.bf16 %v2423, %v2422
      %v2559 = vpack.c.bf16 %v2519, %v2518
      %v2560 = vpack.c.bf16 %v1519, %v1518
      %v2561 = vpack.c.bf16 %v2425, %v2424
      %v2562 = vpack.c.bf16 %v2521, %v2520
      %v2563 = vpack.c.bf16 %v1521, %v1520
      %v2564 = vpack.c.bf16 %v2427, %v2426
      %v2565 = vpack.c.bf16 %v2523, %v2522
      %v2566 = vpack.c.bf16 %v1523, %v1522
      %v2567 = vpack.c.bf16 %v2429, %v2428
      %v2568 = vpack.c.bf16 %v2525, %v2524
      %v2569 = vpack.c.bf16 %v1525, %v1524
      %v2570 = vpack.c.bf16 %v2431, %v2430
      %v2571 = vpack.c.bf16 %v2527, %v2526
      %v2572 = vpack.c.bf16 %v1527, %v1526
      %v2573 = vpack.c.bf16 %v2433, %v2432
      %v2574 = vpack.c.bf16 %v2529, %v2528
      %v2575 = vpack.c.bf16 %v1529, %v1528
      %v2576 = vpack.c.bf16 %v2435, %v2434
      %v2577 = vpack.c.bf16 %v2531, %v2530
      %v2578 = vpack.c.bf16 %v1531, %v1530
      %v2579 = vpack.c.bf16 %v2437, %v2436
      %v2580 = vpack.c.bf16 %v2533, %v2532
      %v2581 = vpack.c.bf16 %v1533, %v1532
      %v2582 = vld [vmem:[%s3] sm:$0xf]
      %v2583 = vld [vmem:[%s3 + $0x4] sm:$0xf]
      %v2584 = vld [vmem:[%s3 + $0x8] sm:$0xf]
      %v2585 = vld [vmem:[%s3 + $0xc] sm:$0xf]
      %v2586 = vld [vmem:[%s3 + $0x10] sm:$0xf]
      %v2587 = vld [vmem:[%s3 + $0x14] sm:$0xf]
      %v2588 = vld [vmem:[%s3 + $0x18] sm:$0xf]
      %v2589 = vld [vmem:[%s3 + $0x1c] sm:$0xf]
      %v2590 = vld [vmem:[%s3 + $0x20] sm:$0xf]
      %v2591 = vld [vmem:[%s3 + $0x24] sm:$0xf]
      %v2592 = vld [vmem:[%s3 + $0x28] sm:$0xf]
      %v2593 = vld [vmem:[%s3 + $0x2c] sm:$0xf]
      %v2594 = vld [vmem:[%s3 + $0x30] sm:$0xf]
      %v2595 = vld [vmem:[%s3 + $0x34] sm:$0xf]
      %v2596 = vld [vmem:[%s3 + $0x38] sm:$0xf]
      %v2597 = vld [vmem:[%s3 + $0x3c] sm:$0xf]
      %v2598 = vld [vmem:[%s3 + $0x40] sm:$0xf]
      %v2599 = vld [vmem:[%s3 + $0x44] sm:$0xf]
      %v2600 = vld [vmem:[%s3 + $0x48] sm:$0xf]
      %v2601 = vld [vmem:[%s3 + $0x4c] sm:$0xf]
      %v2602 = vld [vmem:[%s3 + $0x50] sm:$0xf]
      %v2603 = vld [vmem:[%s3 + $0x54] sm:$0xf]
      %v2604 = vld [vmem:[%s3 + $0x58] sm:$0xf]
      %v2605 = vld [vmem:[%s3 + $0x5c] sm:$0xf]
      %v2606 = vld [vmem:[%s3 + $0x60] sm:$0xf]
      %v2607 = vld [vmem:[%s3 + $0x64] sm:$0xf]
      %v2608 = vld [vmem:[%s3 + $0x68] sm:$0xf]
      %v2609 = vld [vmem:[%s3 + $0x6c] sm:$0xf]
      %v2610 = vld [vmem:[%s3 + $0x70] sm:$0xf]
      %v2611 = vld [vmem:[%s3 + $0x74] sm:$0xf]
      %v2612 = vld [vmem:[%s3 + $0x78] sm:$0xf]
      %v2613 = vld [vmem:[%s3 + $0x7c] sm:$0xf]
      %v2614 = vld [vmem:[%s3 + $0x80] sm:$0xf]
      %v2615 = vld [vmem:[%s3 + $0x84] sm:$0xf]
      %v2616 = vld [vmem:[%s3 + $0x88] sm:$0xf]
      %v2617 = vld [vmem:[%s3 + $0x8c] sm:$0xf]
      %v2618 = vld [vmem:[%s4] sm:$0x1]
      %v2620 = vperm.slane %v2618, 0
      %v2658 = vunpack.c.l.b16 %v2582
      %v2659 = vunpack.c.l.b16 %v2583
      %v2660 = vunpack.c.l.b16 %v2584
      %v2661 = vunpack.c.l.b16 %v2585
      %v2662 = vunpack.c.l.b16 %v2586
      %v2663 = vunpack.c.l.b16 %v2587
      %v2664 = vunpack.c.l.b16 %v2588
      %v2665 = vunpack.c.l.b16 %v2589
      %v2666 = vunpack.c.l.b16 %v2590
      %v2667 = vunpack.c.l.b16 %v2591
      %v2668 = vunpack.c.l.b16 %v2592
      %v2669 = vunpack.c.l.b16 %v2593
      %v2670 = vunpack.c.l.b16 %v2594
      %v2671 = vunpack.c.l.b16 %v2595
      %v2672 = vunpack.c.l.b16 %v2596
      %v2673 = vunpack.c.l.b16 %v2597
      %v2674 = vunpack.c.l.b16 %v2598
      %v2675 = vunpack.c.l.b16 %v2599
      %v2676 = vunpack.c.l.b16 %v2600
      %v2677 = vunpack.c.l.b16 %v2601
      %v2678 = vunpack.c.l.b16 %v2602
      %v2679 = vunpack.c.l.b16 %v2603
      %v2680 = vunpack.c.l.b16 %v2604
      %v2681 = vunpack.c.l.b16 %v2605
      %v2682 = vunpack.c.l.b16 %v2606
      %v2683 = vunpack.c.l.b16 %v2607
      %v2684 = vunpack.c.l.b16 %v2608
      %v2685 = vunpack.c.l.b16 %v2609
      %v2686 = vunpack.c.l.b16 %v2610
      %v2687 = vunpack.c.l.b16 %v2611
      %v2688 = vunpack.c.l.b16 %v2612
      %v2689 = vunpack.c.l.b16 %v2613
      %v2690 = vunpack.c.l.b16 %v2614
      %v2691 = vunpack.c.l.b16 %v2615
      %v2692 = vunpack.c.l.b16 %v2616
      %v2693 = vunpack.c.l.b16 %v2617
      %v2694 = vpack.c.b16 %v2659, %v2658
      %v2695 = vpack.c.b16 %v2661, %v2660
      %v2696 = vpack.c.b16 %v2663, %v2662
      %v2697 = vpack.c.b16 %v2665, %v2664
      %v2698 = vpack.c.b16 %v2667, %v2666
      %v2699 = vpack.c.b16 %v2669, %v2668
      %v2700 = vpack.c.b16 %v2671, %v2670
      %v2701 = vpack.c.b16 %v2673, %v2672
      %v2702 = vpack.c.b16 %v2675, %v2674
      %v2703 = vpack.c.b16 %v2677, %v2676
      %v2704 = vpack.c.b16 %v2679, %v2678
      %v2705 = vpack.c.b16 %v2681, %v2680
      %v2706 = vpack.c.b16 %v2683, %v2682
      %v2707 = vpack.c.b16 %v2685, %v2684
      %v2708 = vpack.c.b16 %v2687, %v2686
      %v2709 = vpack.c.b16 %v2689, %v2688
      %v2710 = vpack.c.b16 %v2691, %v2690
      %v2711 = vpack.c.b16 %v2693, %v2692
      %v2731 = vsel %vm2339, %v2536, 0
      %v2734 = vsel %vm2339, %v2539, 0
      %v2737 = vsel %vm2339, %v2542, 0
      %v2740 = vsel %vm2339, %v2545, 0
      %v2743 = vsel %vm2339, %v2548, 0
      %v2746 = vsel %vm2339, %v2551, 0
      %v2749 = vsel %vm2339, %v2554, 0
      %v2752 = vsel %vm2339, %v2557, 0
      %v2755 = vsel %vm2339, %v2560, 0
      %v2758 = vsel %vm2339, %v2563, 0
      %v2761 = vsel %vm2339, %v2566, 0
      %v2764 = vsel %vm2339, %v2569, 0
      %v2767 = vsel %vm2339, %v2572, 0
      %v2770 = vsel %vm2339, %v2575, 0
      %v2773 = vsel %vm2339, %v2578, 0
      %v2776 = vsel %vm2339, %v2581, 0
      %2778 = vmatpush.bf16.msra.mxu0 %v2701
      %2779 = vmatpush.bf16.msra.mxu0 %v2700
      %2780 = vmatpush.bf16.msra.mxu0 %v2699
      %2781 = vmatpush.bf16.msra.mxu0 %v2698
      %2782 = vmatpush.bf16.msra.mxu0 %v2697
      %2783 = vmatpush.bf16.msra.mxu0 %v2696
      %2784 = vmatpush.bf16.msra.mxu0 %v2695
      %2785 = vmatpush.bf16.msra.mxu0 %v2694
      %2786 = vmatmul.bf16.gmra.mxu0 %v2534
      %v2787 = vpop.f32.mrf.mxu0
      %v2788 = vadd.f32 %v2620, %v2787
      %v2789 = vpop.f32.mrf.mxu0
      %v2790 = vadd.f32 %v2620, %v2789
      %2791 = vmatmul.bf16.gmra.mxu0 %v2537
      %v2792 = vpop.f32.mrf.mxu0
      %v2793 = vadd.f32 %v2620, %v2792
      %v2794 = vpop.f32.mrf.mxu0
      %v2795 = vadd.f32 %v2620, %v2794
      %2796 = vmatmul.bf16.gmra.mxu0 %v2540
      %v2797 = vpop.f32.mrf.mxu0
      %v2798 = vadd.f32 %v2620, %v2797
      %v2799 = vpop.f32.mrf.mxu0
      %v2800 = vadd.f32 %v2620, %v2799
      %2801 = vmatmul.bf16.gmra.mxu0 %v2543
      %v2802 = vpop.f32.mrf.mxu0
      %v2803 = vadd.f32 %v2620, %v2802
      %v2804 = vpop.f32.mrf.mxu0
      %v2805 = vadd.f32 %v2620, %v2804
      %2806 = vmatmul.bf16.gmra.mxu0 %v2546
      %v2807 = vpop.f32.mrf.mxu0
      %v2808 = vadd.f32 %v2620, %v2807
      %v2809 = vpop.f32.mrf.mxu0
      %v2810 = vadd.f32 %v2620, %v2809
      %2811 = vmatmul.bf16.gmra.mxu0 %v2549
      %v2812 = vpop.f32.mrf.mxu0
      %v2813 = vadd.f32 %v2620, %v2812
      %v2814 = vpop.f32.mrf.mxu0
      %v2815 = vadd.f32 %v2620, %v2814
      %2816 = vmatmul.bf16.gmra.mxu0 %v2552
      %v2817 = vpop.f32.mrf.mxu0
      %v2818 = vadd.f32 %v2620, %v2817
      %v2819 = vpop.f32.mrf.mxu0
      %v2820 = vadd.f32 %v2620, %v2819
      %2821 = vmatmul.bf16.gmra.mxu0 %v2555
      %v2822 = vpop.f32.mrf.mxu0
      %v2823 = vadd.f32 %v2620, %v2822
      %v2824 = vpop.f32.mrf.mxu0
      %v2825 = vadd.f32 %v2620, %v2824
      %2826 = vmatmul.bf16.gmra.mxu0 %v2558
      %v2827 = vpop.f32.mrf.mxu0
      %v2828 = vadd.f32 %v2620, %v2827
      %v2829 = vpop.f32.mrf.mxu0
      %v2830 = vadd.f32 %v2620, %v2829
      %2831 = vmatmul.bf16.gmra.mxu0 %v2561
      %v2832 = vpop.f32.mrf.mxu0
      %v2833 = vadd.f32 %v2620, %v2832
      %v2834 = vpop.f32.mrf.mxu0
      %v2835 = vadd.f32 %v2620, %v2834
      %2836 = vmatmul.bf16.gmra.mxu0 %v2564
      %v2837 = vpop.f32.mrf.mxu0
      %v2838 = vadd.f32 %v2620, %v2837
      %v2839 = vpop.f32.mrf.mxu0
      %v2840 = vadd.f32 %v2620, %v2839
      %2841 = vmatmul.bf16.gmra.mxu0 %v2567
      %v2842 = vpop.f32.mrf.mxu0
      %v2843 = vadd.f32 %v2620, %v2842
      %v2844 = vpop.f32.mrf.mxu0
      %v2845 = vadd.f32 %v2620, %v2844
      %2846 = vmatmul.bf16.gmra.mxu0 %v2570
      %v2847 = vpop.f32.mrf.mxu0
      %v2848 = vadd.f32 %v2620, %v2847
      %v2849 = vpop.f32.mrf.mxu0
      %v2850 = vadd.f32 %v2620, %v2849
      %2851 = vmatmul.bf16.gmra.mxu0 %v2573
      %v2852 = vpop.f32.mrf.mxu0
      %v2853 = vadd.f32 %v2620, %v2852
      %v2854 = vpop.f32.mrf.mxu0
      %v2855 = vadd.f32 %v2620, %v2854
      %2856 = vmatmul.bf16.gmra.mxu0 %v2576
      %v2857 = vpop.f32.mrf.mxu0
      %v2858 = vadd.f32 %v2620, %v2857
      %v2859 = vpop.f32.mrf.mxu0
      %v2860 = vadd.f32 %v2620, %v2859
      %2861 = vmatmul.bf16.gmra.mxu0 %v2579
      %v2862 = vpop.f32.mrf.mxu0
      %v2863 = vadd.f32 %v2620, %v2862
      %v2864 = vpop.f32.mrf.mxu0
      %v2865 = vadd.f32 %v2620, %v2864
      %2866 = vdwg.mxu0
      %2867 = vmatpush.bf16.msra.mxu0 %v2709
      %2868 = vmatpush.bf16.msra.mxu0 %v2708
      %2869 = vmatpush.bf16.msra.mxu0 %v2707
      %2870 = vmatpush.bf16.msra.mxu0 %v2706
      %2871 = vmatpush.bf16.msra.mxu0 %v2705
      %2872 = vmatpush.bf16.msra.mxu0 %v2704
      %2873 = vmatpush.bf16.msra.mxu0 %v2703
      %2874 = vmatpush.bf16.msra.mxu0 %v2702
      %2875 = vmatmul.bf16.gmra.mxu0 %v2535
      %v2876 = vpop.f32.mrf.mxu0
      %v2877 = vadd.f32 %v2788, %v2876
      %v2878 = vpop.f32.mrf.mxu0
      %v2879 = vadd.f32 %v2790, %v2878
      %2880 = vmatmul.bf16.gmra.mxu0 %v2538
      %v2881 = vpop.f32.mrf.mxu0
      %v2882 = vadd.f32 %v2793, %v2881
      %v2883 = vpop.f32.mrf.mxu0
      %v2884 = vadd.f32 %v2795, %v2883
      %2885 = vmatmul.bf16.gmra.mxu0 %v2541
      %v2886 = vpop.f32.mrf.mxu0
      %v2887 = vadd.f32 %v2798, %v2886
      %v2888 = vpop.f32.mrf.mxu0
      %v2889 = vadd.f32 %v2800, %v2888
      %2890 = vmatmul.bf16.gmra.mxu0 %v2544
      %v2891 = vpop.f32.mrf.mxu0
      %v2892 = vadd.f32 %v2803, %v2891
      %v2893 = vpop.f32.mrf.mxu0
      %v2894 = vadd.f32 %v2805, %v2893
      %2895 = vmatmul.bf16.gmra.mxu0 %v2547
      %v2896 = vpop.f32.mrf.mxu0
      %v2897 = vadd.f32 %v2808, %v2896
      %v2898 = vpop.f32.mrf.mxu0
      %v2899 = vadd.f32 %v2810, %v2898
      %2900 = vmatmul.bf16.gmra.mxu0 %v2550
      %v2901 = vpop.f32.mrf.mxu0
      %v2902 = vadd.f32 %v2813, %v2901
      %v2903 = vpop.f32.mrf.mxu0
      %v2904 = vadd.f32 %v2815, %v2903
      %2905 = vmatmul.bf16.gmra.mxu0 %v2553
      %v2906 = vpop.f32.mrf.mxu0
      %v2907 = vadd.f32 %v2818, %v2906
      %v2908 = vpop.f32.mrf.mxu0
      %v2909 = vadd.f32 %v2820, %v2908
      %2910 = vmatmul.bf16.gmra.mxu0 %v2556
      %v2911 = vpop.f32.mrf.mxu0
      %v2912 = vadd.f32 %v2823, %v2911
      %v2913 = vpop.f32.mrf.mxu0
      %v2914 = vadd.f32 %v2825, %v2913
      %2915 = vmatmul.bf16.gmra.mxu0 %v2559
      %v2916 = vpop.f32.mrf.mxu0
      %v2917 = vadd.f32 %v2828, %v2916
      %v2918 = vpop.f32.mrf.mxu0
      %v2919 = vadd.f32 %v2830, %v2918
      %2920 = vmatmul.bf16.gmra.mxu0 %v2562
      %v2921 = vpop.f32.mrf.mxu0
      %v2922 = vadd.f32 %v2833, %v2921
      %v2923 = vpop.f32.mrf.mxu0
      %v2924 = vadd.f32 %v2835, %v2923
      %2925 = vmatmul.bf16.gmra.mxu0 %v2565
      %v2926 = vpop.f32.mrf.mxu0
      %v2927 = vadd.f32 %v2838, %v2926
      %v2928 = vpop.f32.mrf.mxu0
      %v2929 = vadd.f32 %v2840, %v2928
      %2930 = vmatmul.bf16.gmra.mxu0 %v2568
      %v2931 = vpop.f32.mrf.mxu0
      %v2932 = vadd.f32 %v2843, %v2931
      %v2933 = vpop.f32.mrf.mxu0
      %v2934 = vadd.f32 %v2845, %v2933
      %2935 = vmatmul.bf16.gmra.mxu0 %v2571
      %v2936 = vpop.f32.mrf.mxu0
      %v2937 = vadd.f32 %v2848, %v2936
      %v2938 = vpop.f32.mrf.mxu0
      %v2939 = vadd.f32 %v2850, %v2938
      %2940 = vmatmul.bf16.gmra.mxu0 %v2574
      %v2941 = vpop.f32.mrf.mxu0
      %v2942 = vadd.f32 %v2853, %v2941
      %v2943 = vpop.f32.mrf.mxu0
      %v2944 = vadd.f32 %v2855, %v2943
      %2945 = vmatmul.bf16.gmra.mxu0 %v2577
      %v2946 = vpop.f32.mrf.mxu0
      %v2947 = vadd.f32 %v2858, %v2946
      %v2948 = vpop.f32.mrf.mxu0
      %v2949 = vadd.f32 %v2860, %v2948
      %2950 = vmatmul.bf16.gmra.mxu0 %v2580
      %v2951 = vpop.f32.mrf.mxu0
      %v2952 = vadd.f32 %v2863, %v2951
      %v2953 = vpop.f32.mrf.mxu0
      %v2954 = vadd.f32 %v2865, %v2953
      %2955 = vdwg.mxu0
      %2956 = vmatpush.bf16.msra.mxu0 0
      %2957 = vmatpush.bf16.msra.mxu0 0
      %2958 = vmatpush.bf16.msra.mxu0 0
      %2959 = vmatpush.bf16.msra.mxu0 0
      %2960 = vmatpush.bf16.msra.mxu0 0
      %2961 = vmatpush.bf16.msra.mxu0 0
      %2962 = vmatpush.bf16.msra.mxu0 %v2711
      %2963 = vmatpush.bf16.msra.mxu0 %v2710
      %2964 = vmatmul.bf16.gmra.mxu0 %v2731
      %v2965 = vpop.f32.mrf.mxu0
      %v2966 = vadd.f32 %v2877, %v2965
      %v2967 = vpop.f32.mrf.mxu0
      %v2968 = vadd.f32 %v2879, %v2967
      %2969 = vmatmul.bf16.gmra.mxu0 %v2734
      %v2970 = vpop.f32.mrf.mxu0
      %v2971 = vadd.f32 %v2882, %v2970
      %v2972 = vpop.f32.mrf.mxu0
      %v2973 = vadd.f32 %v2884, %v2972
      %2974 = vmatmul.bf16.gmra.mxu0 %v2737
      %v2975 = vpop.f32.mrf.mxu0
      %v2976 = vadd.f32 %v2887, %v2975
      %v2977 = vpop.f32.mrf.mxu0
      %v2978 = vadd.f32 %v2889, %v2977
      %2979 = vmatmul.bf16.gmra.mxu0 %v2740
      %v2980 = vpop.f32.mrf.mxu0
      %v2981 = vadd.f32 %v2892, %v2980
      %v2982 = vpop.f32.mrf.mxu0
      %v2983 = vadd.f32 %v2894, %v2982
      %2984 = vmatmul.bf16.gmra.mxu0 %v2743
      %v2985 = vpop.f32.mrf.mxu0
      %v2986 = vadd.f32 %v2897, %v2985
      %v2987 = vpop.f32.mrf.mxu0
      %v2988 = vadd.f32 %v2899, %v2987
      %2989 = vmatmul.bf16.gmra.mxu0 %v2746
      %v2990 = vpop.f32.mrf.mxu0
      %v2991 = vadd.f32 %v2902, %v2990
      %v2992 = vpop.f32.mrf.mxu0
      %v2993 = vadd.f32 %v2904, %v2992
      %2994 = vmatmul.bf16.gmra.mxu0 %v2749
      %v2995 = vpop.f32.mrf.mxu0
      %v2996 = vadd.f32 %v2907, %v2995
      %v2997 = vpop.f32.mrf.mxu0
      %v2998 = vadd.f32 %v2909, %v2997
      %2999 = vmatmul.bf16.gmra.mxu0 %v2752
      %v3000 = vpop.f32.mrf.mxu0
      %v3001 = vadd.f32 %v2912, %v3000
      %v3002 = vpop.f32.mrf.mxu0
      %v3003 = vadd.f32 %v2914, %v3002
      %3004 = vmatmul.bf16.gmra.mxu0 %v2755
      %v3005 = vpop.f32.mrf.mxu0
      %v3006 = vadd.f32 %v2917, %v3005
      %v3007 = vpop.f32.mrf.mxu0
      %v3008 = vadd.f32 %v2919, %v3007
      %3009 = vmatmul.bf16.gmra.mxu0 %v2758
      %v3010 = vpop.f32.mrf.mxu0
      %v3011 = vadd.f32 %v2922, %v3010
      %v3012 = vpop.f32.mrf.mxu0
      %v3013 = vadd.f32 %v2924, %v3012
      %3014 = vmatmul.bf16.gmra.mxu0 %v2761
      %v3015 = vpop.f32.mrf.mxu0
      %v3016 = vadd.f32 %v2927, %v3015
      %v3017 = vpop.f32.mrf.mxu0
      %v3018 = vadd.f32 %v2929, %v3017
      %3019 = vmatmul.bf16.gmra.mxu0 %v2764
      %v3020 = vpop.f32.mrf.mxu0
      %v3021 = vadd.f32 %v2932, %v3020
      %v3022 = vpop.f32.mrf.mxu0
      %v3023 = vadd.f32 %v2934, %v3022
      %3024 = vmatmul.bf16.gmra.mxu0 %v2767
      %v3025 = vpop.f32.mrf.mxu0
      %v3026 = vadd.f32 %v2937, %v3025
      %v3027 = vpop.f32.mrf.mxu0
      %v3028 = vadd.f32 %v2939, %v3027
      %3029 = vmatmul.bf16.gmra.mxu0 %v2770
      %v3030 = vpop.f32.mrf.mxu0
      %v3031 = vadd.f32 %v2942, %v3030
      %v3032 = vpop.f32.mrf.mxu0
      %v3033 = vadd.f32 %v2944, %v3032
      %3034 = vmatmul.bf16.gmra.mxu0 %v2773
      %v3035 = vpop.f32.mrf.mxu0
      %v3036 = vadd.f32 %v2947, %v3035
      %v3037 = vpop.f32.mrf.mxu0
      %v3038 = vadd.f32 %v2949, %v3037
      %3039 = vmatmul.bf16.gmra.mxu0 %v2776
      %v3040 = vpop.f32.mrf.mxu0
      %v3041 = vadd.f32 %v2952, %v3040
      %v3042 = vpop.f32.mrf.mxu0
      %v3043 = vadd.f32 %v2954, %v3042
      %3044 = vdwg.mxu0
      %v3045 = vmax.f32 %v2966, 0.0
      %v3046 = vmax.f32 %v2968, 0.0
      %v3047 = vmax.f32 %v2971, 0.0
      %v3048 = vmax.f32 %v2973, 0.0
      %v3049 = vmax.f32 %v2976, 0.0
      %v3050 = vmax.f32 %v2978, 0.0
      %v3051 = vmax.f32 %v2981, 0.0
      %v3052 = vmax.f32 %v2983, 0.0
      %v3053 = vmax.f32 %v2986, 0.0
      %v3054 = vmax.f32 %v2988, 0.0
      %v3055 = vmax.f32 %v2991, 0.0
      %v3056 = vmax.f32 %v2993, 0.0
      %v3057 = vmax.f32 %v2996, 0.0
      %v3058 = vmax.f32 %v2998, 0.0
      %v3059 = vmax.f32 %v3001, 0.0
      %v3060 = vmax.f32 %v3003, 0.0
      %v3061 = vmax.f32 %v3006, 0.0
      %v3062 = vmax.f32 %v3008, 0.0
      %v3063 = vmax.f32 %v3011, 0.0
      %v3064 = vmax.f32 %v3013, 0.0
      %v3065 = vmax.f32 %v3016, 0.0
      %v3066 = vmax.f32 %v3018, 0.0
      %v3067 = vmax.f32 %v3021, 0.0
      %v3068 = vmax.f32 %v3023, 0.0
      %v3069 = vmax.f32 %v3026, 0.0
      %v3070 = vmax.f32 %v3028, 0.0
      %v3071 = vmax.f32 %v3031, 0.0
      %v3072 = vmax.f32 %v3033, 0.0
      %v3073 = vmax.f32 %v3036, 0.0
      %v3074 = vmax.f32 %v3038, 0.0
      %v3075 = vmax.f32 %v3041, 0.0
      %v3076 = vmax.f32 %v3043, 0.0
      %v3077 = vpack.c.bf16 %v3046, %v3045
      %v3078 = vpack.c.bf16 %v3048, %v3047
      %v3079 = vpack.c.bf16 %v3050, %v3049
      %v3080 = vpack.c.bf16 %v3052, %v3051
      %v3081 = vpack.c.bf16 %v3054, %v3053
      %v3082 = vpack.c.bf16 %v3056, %v3055
      %v3083 = vpack.c.bf16 %v3058, %v3057
      %v3084 = vpack.c.bf16 %v3060, %v3059
      %v3085 = vpack.c.bf16 %v3062, %v3061
      %v3086 = vpack.c.bf16 %v3064, %v3063
      %v3087 = vpack.c.bf16 %v3066, %v3065
      %v3088 = vpack.c.bf16 %v3068, %v3067
      %v3089 = vpack.c.bf16 %v3070, %v3069
      %v3090 = vpack.c.bf16 %v3072, %v3071
      %v3091 = vpack.c.bf16 %v3074, %v3073
      %v3092 = vpack.c.bf16 %v3076, %v3075
      %v3093 = vld [vmem:[%s5] sm:$0xf]
      %v3094 = vld [vmem:[%s5 + $0x4] sm:$0xf]
      %v3095 = vld [vmem:[%s5 + $0x8] sm:$0xf]
      %v3096 = vld [vmem:[%s5 + $0xc] sm:$0xf]
      %v3097 = vld [vmem:[%s5 + $0x10] sm:$0xf]
      %v3098 = vld [vmem:[%s5 + $0x14] sm:$0xf]
      %v3099 = vld [vmem:[%s5 + $0x18] sm:$0xf]
      %v3100 = vld [vmem:[%s5 + $0x1c] sm:$0xf]
      %v3101 = vld [vmem:[%s5 + $0x20] sm:$0xf]
      %v3102 = vld [vmem:[%s5 + $0x24] sm:$0xf]
      %v3103 = vld [vmem:[%s5 + $0x28] sm:$0xf]
      %v3104 = vld [vmem:[%s5 + $0x2c] sm:$0xf]
      %v3105 = vld [vmem:[%s6] sm:$0x1]
      %v3107 = vperm.slane %v3105, 0
      %v3121 = vunpack.c.l.b16 %v3093
      %v3122 = vunpack.c.l.b16 %v3094
      %v3123 = vunpack.c.l.b16 %v3095
      %v3124 = vunpack.c.l.b16 %v3096
      %v3125 = vunpack.c.l.b16 %v3097
      %v3126 = vunpack.c.l.b16 %v3098
      %v3127 = vunpack.c.l.b16 %v3099
      %v3128 = vunpack.c.l.b16 %v3100
      %v3129 = vunpack.c.l.b16 %v3101
      %v3130 = vunpack.c.l.b16 %v3102
      %v3131 = vunpack.c.l.b16 %v3103
      %v3132 = vunpack.c.l.b16 %v3104
      %v3133 = vpack.c.b16 %v3122, %v3121
      %v3134 = vpack.c.b16 %v3124, %v3123
      %v3135 = vpack.c.b16 %v3126, %v3125
      %v3136 = vpack.c.b16 %v3128, %v3127
      %v3137 = vpack.c.b16 %v3130, %v3129
      %v3138 = vpack.c.b16 %v3132, %v3131
      %v3146 = vsel %vm2405, %v3077, 0
      %v3149 = vsel %vm2405, %v3078, 0
      %v3152 = vsel %vm2405, %v3079, 0
      %v3155 = vsel %vm2405, %v3080, 0
      %v3158 = vsel %vm2405, %v3081, 0
      %v3161 = vsel %vm2405, %v3082, 0
      %v3164 = vsel %vm2405, %v3083, 0
      %v3167 = vsel %vm2405, %v3084, 0
      %v3170 = vsel %vm2405, %v3085, 0
      %v3173 = vsel %vm2405, %v3086, 0
      %v3176 = vsel %vm2405, %v3087, 0
      %v3179 = vsel %vm2405, %v3088, 0
      %v3182 = vsel %vm2405, %v3089, 0
      %v3185 = vsel %vm2405, %v3090, 0
      %v3188 = vsel %vm2405, %v3091, 0
      %v3191 = vsel %vm2405, %v3092, 0
      %3193 = vmatpush.bf16.msra.mxu0 0
      %3194 = vmatpush.bf16.msra.mxu0 0
      %3195 = vmatpush.bf16.msra.mxu0 %v3138
      %3196 = vmatpush.bf16.msra.mxu0 %v3137
      %3197 = vmatpush.bf16.msra.mxu0 %v3136
      %3198 = vmatpush.bf16.msra.mxu0 %v3135
      %3199 = vmatpush.bf16.msra.mxu0 %v3134
      %3200 = vmatpush.bf16.msra.mxu0 %v3133
      %3201 = vmatmul.bf16.gmra.mxu0 %v3146
      %v3202 = vpop.f32.mrf.mxu0
      %v3203 = vadd.f32 %v3107, %v3202
      %v3204 = vpop.f32.mrf.mxu0
      %v3205 = vadd.f32 %v3107, %v3204
      %3206 = vmatmul.bf16.gmra.mxu0 %v3149
      %v3207 = vpop.f32.mrf.mxu0
      %v3208 = vadd.f32 %v3107, %v3207
      %v3209 = vpop.f32.mrf.mxu0
      %v3210 = vadd.f32 %v3107, %v3209
      %3211 = vmatmul.bf16.gmra.mxu0 %v3152
      %v3212 = vpop.f32.mrf.mxu0
      %v3213 = vadd.f32 %v3107, %v3212
      %v3214 = vpop.f32.mrf.mxu0
      %v3215 = vadd.f32 %v3107, %v3214
      %3216 = vmatmul.bf16.gmra.mxu0 %v3155
      %v3217 = vpop.f32.mrf.mxu0
      %v3218 = vadd.f32 %v3107, %v3217
      %v3219 = vpop.f32.mrf.mxu0
      %v3220 = vadd.f32 %v3107, %v3219
      %3221 = vmatmul.bf16.gmra.mxu0 %v3158
      %v3222 = vpop.f32.mrf.mxu0
      %v3223 = vadd.f32 %v3107, %v3222
      %v3224 = vpop.f32.mrf.mxu0
      %v3225 = vadd.f32 %v3107, %v3224
      %3226 = vmatmul.bf16.gmra.mxu0 %v3161
      %v3227 = vpop.f32.mrf.mxu0
      %v3228 = vadd.f32 %v3107, %v3227
      %v3229 = vpop.f32.mrf.mxu0
      %v3230 = vadd.f32 %v3107, %v3229
      %3231 = vmatmul.bf16.gmra.mxu0 %v3164
      %v3232 = vpop.f32.mrf.mxu0
      %v3233 = vadd.f32 %v3107, %v3232
      %v3234 = vpop.f32.mrf.mxu0
      %v3235 = vadd.f32 %v3107, %v3234
      %3236 = vmatmul.bf16.gmra.mxu0 %v3167
      %v3237 = vpop.f32.mrf.mxu0
      %v3238 = vadd.f32 %v3107, %v3237
      %v3239 = vpop.f32.mrf.mxu0
      %v3240 = vadd.f32 %v3107, %v3239
      %3241 = vmatmul.bf16.gmra.mxu0 %v3170
      %v3242 = vpop.f32.mrf.mxu0
      %v3243 = vadd.f32 %v3107, %v3242
      %v3244 = vpop.f32.mrf.mxu0
      %v3245 = vadd.f32 %v3107, %v3244
      %3246 = vmatmul.bf16.gmra.mxu0 %v3173
      %v3247 = vpop.f32.mrf.mxu0
      %v3248 = vadd.f32 %v3107, %v3247
      %v3249 = vpop.f32.mrf.mxu0
      %v3250 = vadd.f32 %v3107, %v3249
      %3251 = vmatmul.bf16.gmra.mxu0 %v3176
      %v3252 = vpop.f32.mrf.mxu0
      %v3253 = vadd.f32 %v3107, %v3252
      %v3254 = vpop.f32.mrf.mxu0
      %v3255 = vadd.f32 %v3107, %v3254
      %3256 = vmatmul.bf16.gmra.mxu0 %v3179
      %v3257 = vpop.f32.mrf.mxu0
      %v3258 = vadd.f32 %v3107, %v3257
      %v3259 = vpop.f32.mrf.mxu0
      %v3260 = vadd.f32 %v3107, %v3259
      %3261 = vmatmul.bf16.gmra.mxu0 %v3182
      %v3262 = vpop.f32.mrf.mxu0
      %v3263 = vadd.f32 %v3107, %v3262
      %v3264 = vpop.f32.mrf.mxu0
      %v3265 = vadd.f32 %v3107, %v3264
      %3266 = vmatmul.bf16.gmra.mxu0 %v3185
      %v3267 = vpop.f32.mrf.mxu0
      %v3268 = vadd.f32 %v3107, %v3267
      %v3269 = vpop.f32.mrf.mxu0
      %v3270 = vadd.f32 %v3107, %v3269
      %3271 = vmatmul.bf16.gmra.mxu0 %v3188
      %v3272 = vpop.f32.mrf.mxu0
      %v3273 = vadd.f32 %v3107, %v3272
      %v3274 = vpop.f32.mrf.mxu0
      %v3275 = vadd.f32 %v3107, %v3274
      %3276 = vmatmul.bf16.gmra.mxu0 %v3191
      %v3277 = vpop.f32.mrf.mxu0
      %v3278 = vadd.f32 %v3107, %v3277
      %v3279 = vpop.f32.mrf.mxu0
      %v3280 = vadd.f32 %v3107, %v3279
      %3281 = vdwg.mxu0
      %v3282 = vlaneseq
      %v3283 = vand.u32 %v3282, 127
      %vm3284 = vcmp.eq.s32.totalorder %v3283, 19
      %v3285 = vxor.u32 %v3203, 2147483648
      %v3286 = vxor.u32 %v3205, 2147483648
      %v3287 = vxor.u32 %v3208, 2147483648
      %v3288 = vxor.u32 %v3210, 2147483648
      %v3289 = vxor.u32 %v3213, 2147483648
      %v3290 = vxor.u32 %v3215, 2147483648
      %v3291 = vxor.u32 %v3218, 2147483648
      %v3292 = vxor.u32 %v3220, 2147483648
      %v3293 = vxor.u32 %v3223, 2147483648
      %v3294 = vxor.u32 %v3225, 2147483648
      %v3295 = vxor.u32 %v3228, 2147483648
      %v3296 = vxor.u32 %v3230, 2147483648
      %v3297 = vxor.u32 %v3233, 2147483648
      %v3298 = vxor.u32 %v3235, 2147483648
      %v3299 = vxor.u32 %v3238, 2147483648
      %v3300 = vxor.u32 %v3240, 2147483648
      %v3301 = vxor.u32 %v3243, 2147483648
      %v3302 = vxor.u32 %v3245, 2147483648
      %v3303 = vxor.u32 %v3248, 2147483648
      %v3304 = vxor.u32 %v3250, 2147483648
      %v3305 = vxor.u32 %v3253, 2147483648
      %v3306 = vxor.u32 %v3255, 2147483648
      %v3307 = vxor.u32 %v3258, 2147483648
      %v3308 = vxor.u32 %v3260, 2147483648
      %v3309 = vxor.u32 %v3263, 2147483648
      %v3310 = vxor.u32 %v3265, 2147483648
      %v3311 = vxor.u32 %v3268, 2147483648
      %v3312 = vxor.u32 %v3270, 2147483648
      %v3313 = vxor.u32 %v3273, 2147483648
      %v3314 = vxor.u32 %v3275, 2147483648
      %v3315 = vxor.u32 %v3278, 2147483648
      %v3316 = vxor.u32 %v3280, 2147483648
      %v3317 = vmul.f32 %v3285, 1.442695
      %v3318 = vpow.pop %v3317
      %v3319 = vmul.f32 %v3286, 1.442695
      %v3320 = vpow.pop %v3319
      %v3321 = vmul.f32 %v3287, 1.442695
      %v3322 = vpow.pop %v3321
      %v3323 = vmul.f32 %v3288, 1.442695
      %v3324 = vpow.pop %v3323
      %v3325 = vmul.f32 %v3289, 1.442695
      %v3326 = vpow.pop %v3325
      %v3327 = vmul.f32 %v3290, 1.442695
      %v3328 = vpow.pop %v3327
      %v3329 = vmul.f32 %v3291, 1.442695
      %v3330 = vpow.pop %v3329
      %v3331 = vmul.f32 %v3292, 1.442695
      %v3332 = vpow.pop %v3331
      %v3333 = vmul.f32 %v3293, 1.442695
      %v3334 = vpow.pop %v3333
      %v3335 = vmul.f32 %v3294, 1.442695
      %v3336 = vpow.pop %v3335
      %v3337 = vmul.f32 %v3295, 1.442695
      %v3338 = vpow.pop %v3337
      %v3339 = vmul.f32 %v3296, 1.442695
      %v3340 = vpow.pop %v3339
      %v3341 = vmul.f32 %v3297, 1.442695
      %v3342 = vpow.pop %v3341
      %v3343 = vmul.f32 %v3298, 1.442695
      %v3344 = vpow.pop %v3343
      %v3345 = vmul.f32 %v3299, 1.442695
      %v3346 = vpow.pop %v3345
      %v3347 = vmul.f32 %v3300, 1.442695
      %v3348 = vpow.pop %v3347
      %v3349 = vmul.f32 %v3301, 1.442695
      %v3350 = vpow.pop %v3349
      %v3351 = vmul.f32 %v3302, 1.442695
      %v3352 = vpow.pop %v3351
      %v3353 = vmul.f32 %v3303, 1.442695
      %v3354 = vpow.pop %v3353
      %v3355 = vmul.f32 %v3304, 1.442695
      %v3356 = vpow.pop %v3355
      %v3357 = vmul.f32 %v3305, 1.442695
      %v3358 = vpow.pop %v3357
      %v3359 = vmul.f32 %v3306, 1.442695
      %v3360 = vpow.pop %v3359
      %v3361 = vmul.f32 %v3307, 1.442695
      %v3362 = vpow.pop %v3361
      %v3363 = vmul.f32 %v3308, 1.442695
      %v3364 = vpow.pop %v3363
      %v3365 = vmul.f32 %v3309, 1.442695
      %v3366 = vpow.pop %v3365
      %v3367 = vmul.f32 %v3310, 1.442695
      %v3368 = vpow.pop %v3367
      %v3369 = vmul.f32 %v3311, 1.442695
      %v3370 = vpow.pop %v3369
      %v3371 = vmul.f32 %v3312, 1.442695
      %v3372 = vpow.pop %v3371
      %v3373 = vmul.f32 %v3313, 1.442695
      %v3374 = vpow.pop %v3373
      %v3375 = vmul.f32 %v3314, 1.442695
      %v3376 = vpow.pop %v3375
      %v3377 = vmul.f32 %v3315, 1.442695
      %v3378 = vpow.pop %v3377
      %v3379 = vmul.f32 %v3316, 1.442695
      %v3380 = vpow.pop %v3379
      %v3381 = vadd.f32 %v3318, 1.0
      %v3382 = vadd.f32 %v3320, 1.0
      %v3383 = vadd.f32 %v3322, 1.0
      %v3384 = vadd.f32 %v3324, 1.0
      %v3385 = vadd.f32 %v3326, 1.0
      %v3386 = vadd.f32 %v3328, 1.0
      %v3387 = vadd.f32 %v3330, 1.0
      %v3388 = vadd.f32 %v3332, 1.0
      %v3389 = vadd.f32 %v3334, 1.0
      %v3390 = vadd.f32 %v3336, 1.0
      %v3391 = vadd.f32 %v3338, 1.0
      %v3392 = vadd.f32 %v3340, 1.0
      %v3393 = vadd.f32 %v3342, 1.0
      %v3394 = vadd.f32 %v3344, 1.0
      %v3395 = vadd.f32 %v3346, 1.0
      %v3396 = vadd.f32 %v3348, 1.0
      %v3397 = vadd.f32 %v3350, 1.0
      %v3398 = vadd.f32 %v3352, 1.0
      %v3399 = vadd.f32 %v3354, 1.0
      %v3400 = vadd.f32 %v3356, 1.0
      %v3401 = vadd.f32 %v3358, 1.0
      %v3402 = vadd.f32 %v3360, 1.0
      %v3403 = vadd.f32 %v3362, 1.0
      %v3404 = vadd.f32 %v3364, 1.0
      %v3405 = vadd.f32 %v3366, 1.0
      %v3406 = vadd.f32 %v3368, 1.0
      %v3407 = vadd.f32 %v3370, 1.0
      %v3408 = vadd.f32 %v3372, 1.0
      %v3409 = vadd.f32 %v3374, 1.0
      %v3410 = vadd.f32 %v3376, 1.0
      %v3411 = vadd.f32 %v3378, 1.0
      %v3412 = vadd.f32 %v3380, 1.0
      %v3413 = vrcp.pop %v3381
      %v3414 = vmul.f32 %v3381, %v3413
      %v3415 = vsub.f32 1.0, %v3414
      %v3416 = vmul.f32 %v3413, %v3415
      %v3417 = vadd.f32 %v3413, %v3416
      %vm3418 = vweird.f32 %v3381
      %vm3419 = vweird.f32 %v3413
      %vm3420 = vmor %vm3418, %vm3419
      %v3421 = vsel %vm3420, %v3413, %v3417
      %v3422 = vand.u32 2147483647, %v3381
      %vm3423 = vcmp.eq.f32.partialorder %v3422, 8.507059e+37
      %v3424 = vand.u32 %v3381, 2147483648
      %v3425 = vor.u32 1.1754944e-38, %v3424
      %v3426 = vsel %vm3423, %v3425, %v3421
      %v3427 = vmul.f32 1.0, %v3426
      %v3428 = vrcp.pop %v3382
      %v3429 = vmul.f32 %v3382, %v3428
      %v3430 = vsub.f32 1.0, %v3429
      %v3431 = vmul.f32 %v3428, %v3430
      %v3432 = vadd.f32 %v3428, %v3431
      %vm3433 = vweird.f32 %v3382
      %vm3434 = vweird.f32 %v3428
      %vm3435 = vmor %vm3433, %vm3434
      %v3436 = vsel %vm3435, %v3428, %v3432
      %v3437 = vand.u32 2147483647, %v3382
      %vm3438 = vcmp.eq.f32.partialorder %v3437, 8.507059e+37
      %v3439 = vand.u32 %v3382, 2147483648
      %v3440 = vor.u32 1.1754944e-38, %v3439
      %v3441 = vsel %vm3438, %v3440, %v3436
      %v3442 = vmul.f32 1.0, %v3441
      %v3443 = vrcp.pop %v3383
      %v3444 = vmul.f32 %v3383, %v3443
      %v3445 = vsub.f32 1.0, %v3444
      %v3446 = vmul.f32 %v3443, %v3445
      %v3447 = vadd.f32 %v3443, %v3446
      %vm3448 = vweird.f32 %v3383
      %vm3449 = vweird.f32 %v3443
      %vm3450 = vmor %vm3448, %vm3449
      %v3451 = vsel %vm3450, %v3443, %v3447
      %v3452 = vand.u32 2147483647, %v3383
      %vm3453 = vcmp.eq.f32.partialorder %v3452, 8.507059e+37
      %v3454 = vand.u32 %v3383, 2147483648
      %v3455 = vor.u32 1.1754944e-38, %v3454
      %v3456 = vsel %vm3453, %v3455, %v3451
      %v3457 = vmul.f32 1.0, %v3456
      %v3458 = vrcp.pop %v3384
      %v3459 = vmul.f32 %v3384, %v3458
      %v3460 = vsub.f32 1.0, %v3459
      %v3461 = vmul.f32 %v3458, %v3460
      %v3462 = vadd.f32 %v3458, %v3461
      %vm3463 = vweird.f32 %v3384
      %vm3464 = vweird.f32 %v3458
      %vm3465 = vmor %vm3463, %vm3464
      %v3466 = vsel %vm3465, %v3458, %v3462
      %v3467 = vand.u32 2147483647, %v3384
      %vm3468 = vcmp.eq.f32.partialorder %v3467, 8.507059e+37
      %v3469 = vand.u32 %v3384, 2147483648
      %v3470 = vor.u32 1.1754944e-38, %v3469
      %v3471 = vsel %vm3468, %v3470, %v3466
      %v3472 = vmul.f32 1.0, %v3471
      %v3473 = vrcp.pop %v3385
      %v3474 = vmul.f32 %v3385, %v3473
      %v3475 = vsub.f32 1.0, %v3474
      %v3476 = vmul.f32 %v3473, %v3475
      %v3477 = vadd.f32 %v3473, %v3476
      %vm3478 = vweird.f32 %v3385
      %vm3479 = vweird.f32 %v3473
      %vm3480 = vmor %vm3478, %vm3479
      %v3481 = vsel %vm3480, %v3473, %v3477
      %v3482 = vand.u32 2147483647, %v3385
      %vm3483 = vcmp.eq.f32.partialorder %v3482, 8.507059e+37
      %v3484 = vand.u32 %v3385, 2147483648
      %v3485 = vor.u32 1.1754944e-38, %v3484
      %v3486 = vsel %vm3483, %v3485, %v3481
      %v3487 = vmul.f32 1.0, %v3486
      %v3488 = vrcp.pop %v3386
      %v3489 = vmul.f32 %v3386, %v3488
      %v3490 = vsub.f32 1.0, %v3489
      %v3491 = vmul.f32 %v3488, %v3490
      %v3492 = vadd.f32 %v3488, %v3491
      %vm3493 = vweird.f32 %v3386
      %vm3494 = vweird.f32 %v3488
      %vm3495 = vmor %vm3493, %vm3494
      %v3496 = vsel %vm3495, %v3488, %v3492
      %v3497 = vand.u32 2147483647, %v3386
      %vm3498 = vcmp.eq.f32.partialorder %v3497, 8.507059e+37
      %v3499 = vand.u32 %v3386, 2147483648
      %v3500 = vor.u32 1.1754944e-38, %v3499
      %v3501 = vsel %vm3498, %v3500, %v3496
      %v3502 = vmul.f32 1.0, %v3501
      %v3503 = vrcp.pop %v3387
      %v3504 = vmul.f32 %v3387, %v3503
      %v3505 = vsub.f32 1.0, %v3504
      %v3506 = vmul.f32 %v3503, %v3505
      %v3507 = vadd.f32 %v3503, %v3506
      %vm3508 = vweird.f32 %v3387
      %vm3509 = vweird.f32 %v3503
      %vm3510 = vmor %vm3508, %vm3509
      %v3511 = vsel %vm3510, %v3503, %v3507
      %v3512 = vand.u32 2147483647, %v3387
      %vm3513 = vcmp.eq.f32.partialorder %v3512, 8.507059e+37
      %v3514 = vand.u32 %v3387, 2147483648
      %v3515 = vor.u32 1.1754944e-38, %v3514
      %v3516 = vsel %vm3513, %v3515, %v3511
      %v3517 = vmul.f32 1.0, %v3516
      %v3518 = vrcp.pop %v3388
      %v3519 = vmul.f32 %v3388, %v3518
      %v3520 = vsub.f32 1.0, %v3519
      %v3521 = vmul.f32 %v3518, %v3520
      %v3522 = vadd.f32 %v3518, %v3521
      %vm3523 = vweird.f32 %v3388
      %vm3524 = vweird.f32 %v3518
      %vm3525 = vmor %vm3523, %vm3524
      %v3526 = vsel %vm3525, %v3518, %v3522
      %v3527 = vand.u32 2147483647, %v3388
      %vm3528 = vcmp.eq.f32.partialorder %v3527, 8.507059e+37
      %v3529 = vand.u32 %v3388, 2147483648
      %v3530 = vor.u32 1.1754944e-38, %v3529
      %v3531 = vsel %vm3528, %v3530, %v3526
      %v3532 = vmul.f32 1.0, %v3531
      %v3533 = vrcp.pop %v3389
      %v3534 = vmul.f32 %v3389, %v3533
      %v3535 = vsub.f32 1.0, %v3534
      %v3536 = vmul.f32 %v3533, %v3535
      %v3537 = vadd.f32 %v3533, %v3536
      %vm3538 = vweird.f32 %v3389
      %vm3539 = vweird.f32 %v3533
      %vm3540 = vmor %vm3538, %vm3539
      %v3541 = vsel %vm3540, %v3533, %v3537
      %v3542 = vand.u32 2147483647, %v3389
      %vm3543 = vcmp.eq.f32.partialorder %v3542, 8.507059e+37
      %v3544 = vand.u32 %v3389, 2147483648
      %v3545 = vor.u32 1.1754944e-38, %v3544
      %v3546 = vsel %vm3543, %v3545, %v3541
      %v3547 = vmul.f32 1.0, %v3546
      %v3548 = vrcp.pop %v3390
      %v3549 = vmul.f32 %v3390, %v3548
      %v3550 = vsub.f32 1.0, %v3549
      %v3551 = vmul.f32 %v3548, %v3550
      %v3552 = vadd.f32 %v3548, %v3551
      %vm3553 = vweird.f32 %v3390
      %vm3554 = vweird.f32 %v3548
      %vm3555 = vmor %vm3553, %vm3554
      %v3556 = vsel %vm3555, %v3548, %v3552
      %v3557 = vand.u32 2147483647, %v3390
      %vm3558 = vcmp.eq.f32.partialorder %v3557, 8.507059e+37
      %v3559 = vand.u32 %v3390, 2147483648
      %v3560 = vor.u32 1.1754944e-38, %v3559
      %v3561 = vsel %vm3558, %v3560, %v3556
      %v3562 = vmul.f32 1.0, %v3561
      %v3563 = vrcp.pop %v3391
      %v3564 = vmul.f32 %v3391, %v3563
      %v3565 = vsub.f32 1.0, %v3564
      %v3566 = vmul.f32 %v3563, %v3565
      %v3567 = vadd.f32 %v3563, %v3566
      %vm3568 = vweird.f32 %v3391
      %vm3569 = vweird.f32 %v3563
      %vm3570 = vmor %vm3568, %vm3569
      %v3571 = vsel %vm3570, %v3563, %v3567
      %v3572 = vand.u32 2147483647, %v3391
      %vm3573 = vcmp.eq.f32.partialorder %v3572, 8.507059e+37
      %v3574 = vand.u32 %v3391, 2147483648
      %v3575 = vor.u32 1.1754944e-38, %v3574
      %v3576 = vsel %vm3573, %v3575, %v3571
      %v3577 = vmul.f32 1.0, %v3576
      %v3578 = vrcp.pop %v3392
      %v3579 = vmul.f32 %v3392, %v3578
      %v3580 = vsub.f32 1.0, %v3579
      %v3581 = vmul.f32 %v3578, %v3580
      %v3582 = vadd.f32 %v3578, %v3581
      %vm3583 = vweird.f32 %v3392
      %vm3584 = vweird.f32 %v3578
      %vm3585 = vmor %vm3583, %vm3584
      %v3586 = vsel %vm3585, %v3578, %v3582
      %v3587 = vand.u32 2147483647, %v3392
      %vm3588 = vcmp.eq.f32.partialorder %v3587, 8.507059e+37
      %v3589 = vand.u32 %v3392, 2147483648
      %v3590 = vor.u32 1.1754944e-38, %v3589
      %v3591 = vsel %vm3588, %v3590, %v3586
      %v3592 = vmul.f32 1.0, %v3591
      %v3593 = vrcp.pop %v3393
      %v3594 = vmul.f32 %v3393, %v3593
      %v3595 = vsub.f32 1.0, %v3594
      %v3596 = vmul.f32 %v3593, %v3595
      %v3597 = vadd.f32 %v3593, %v3596
      %vm3598 = vweird.f32 %v3393
      %vm3599 = vweird.f32 %v3593
      %vm3600 = vmor %vm3598, %vm3599
      %v3601 = vsel %vm3600, %v3593, %v3597
      %v3602 = vand.u32 2147483647, %v3393
      %vm3603 = vcmp.eq.f32.partialorder %v3602, 8.507059e+37
      %v3604 = vand.u32 %v3393, 2147483648
      %v3605 = vor.u32 1.1754944e-38, %v3604
      %v3606 = vsel %vm3603, %v3605, %v3601
      %v3607 = vmul.f32 1.0, %v3606
      %v3608 = vrcp.pop %v3394
      %v3609 = vmul.f32 %v3394, %v3608
      %v3610 = vsub.f32 1.0, %v3609
      %v3611 = vmul.f32 %v3608, %v3610
      %v3612 = vadd.f32 %v3608, %v3611
      %vm3613 = vweird.f32 %v3394
      %vm3614 = vweird.f32 %v3608
      %vm3615 = vmor %vm3613, %vm3614
      %v3616 = vsel %vm3615, %v3608, %v3612
      %v3617 = vand.u32 2147483647, %v3394
      %vm3618 = vcmp.eq.f32.partialorder %v3617, 8.507059e+37
      %v3619 = vand.u32 %v3394, 2147483648
      %v3620 = vor.u32 1.1754944e-38, %v3619
      %v3621 = vsel %vm3618, %v3620, %v3616
      %v3622 = vmul.f32 1.0, %v3621
      %v3623 = vrcp.pop %v3395
      %v3624 = vmul.f32 %v3395, %v3623
      %v3625 = vsub.f32 1.0, %v3624
      %v3626 = vmul.f32 %v3623, %v3625
      %v3627 = vadd.f32 %v3623, %v3626
      %vm3628 = vweird.f32 %v3395
      %vm3629 = vweird.f32 %v3623
      %vm3630 = vmor %vm3628, %vm3629
      %v3631 = vsel %vm3630, %v3623, %v3627
      %v3632 = vand.u32 2147483647, %v3395
      %vm3633 = vcmp.eq.f32.partialorder %v3632, 8.507059e+37
      %v3634 = vand.u32 %v3395, 2147483648
      %v3635 = vor.u32 1.1754944e-38, %v3634
      %v3636 = vsel %vm3633, %v3635, %v3631
      %v3637 = vmul.f32 1.0, %v3636
      %v3638 = vrcp.pop %v3396
      %v3639 = vmul.f32 %v3396, %v3638
      %v3640 = vsub.f32 1.0, %v3639
      %v3641 = vmul.f32 %v3638, %v3640
      %v3642 = vadd.f32 %v3638, %v3641
      %vm3643 = vweird.f32 %v3396
      %vm3644 = vweird.f32 %v3638
      %vm3645 = vmor %vm3643, %vm3644
      %v3646 = vsel %vm3645, %v3638, %v3642
      %v3647 = vand.u32 2147483647, %v3396
      %vm3648 = vcmp.eq.f32.partialorder %v3647, 8.507059e+37
      %v3649 = vand.u32 %v3396, 2147483648
      %v3650 = vor.u32 1.1754944e-38, %v3649
      %v3651 = vsel %vm3648, %v3650, %v3646
      %v3652 = vmul.f32 1.0, %v3651
      %v3653 = vrcp.pop %v3397
      %v3654 = vmul.f32 %v3397, %v3653
      %v3655 = vsub.f32 1.0, %v3654
      %v3656 = vmul.f32 %v3653, %v3655
      %v3657 = vadd.f32 %v3653, %v3656
      %vm3658 = vweird.f32 %v3397
      %vm3659 = vweird.f32 %v3653
      %vm3660 = vmor %vm3658, %vm3659
      %v3661 = vsel %vm3660, %v3653, %v3657
      %v3662 = vand.u32 2147483647, %v3397
      %vm3663 = vcmp.eq.f32.partialorder %v3662, 8.507059e+37
      %v3664 = vand.u32 %v3397, 2147483648
      %v3665 = vor.u32 1.1754944e-38, %v3664
      %v3666 = vsel %vm3663, %v3665, %v3661
      %v3667 = vmul.f32 1.0, %v3666
      %v3668 = vrcp.pop %v3398
      %v3669 = vmul.f32 %v3398, %v3668
      %v3670 = vsub.f32 1.0, %v3669
      %v3671 = vmul.f32 %v3668, %v3670
      %v3672 = vadd.f32 %v3668, %v3671
      %vm3673 = vweird.f32 %v3398
      %vm3674 = vweird.f32 %v3668
      %vm3675 = vmor %vm3673, %vm3674
      %v3676 = vsel %vm3675, %v3668, %v3672
      %v3677 = vand.u32 2147483647, %v3398
      %vm3678 = vcmp.eq.f32.partialorder %v3677, 8.507059e+37
      %v3679 = vand.u32 %v3398, 2147483648
      %v3680 = vor.u32 1.1754944e-38, %v3679
      %v3681 = vsel %vm3678, %v3680, %v3676
      %v3682 = vmul.f32 1.0, %v3681
      %v3683 = vrcp.pop %v3399
      %v3684 = vmul.f32 %v3399, %v3683
      %v3685 = vsub.f32 1.0, %v3684
      %v3686 = vmul.f32 %v3683, %v3685
      %v3687 = vadd.f32 %v3683, %v3686
      %vm3688 = vweird.f32 %v3399
      %vm3689 = vweird.f32 %v3683
      %vm3690 = vmor %vm3688, %vm3689
      %v3691 = vsel %vm3690, %v3683, %v3687
      %v3692 = vand.u32 2147483647, %v3399
      %vm3693 = vcmp.eq.f32.partialorder %v3692, 8.507059e+37
      %v3694 = vand.u32 %v3399, 2147483648
      %v3695 = vor.u32 1.1754944e-38, %v3694
      %v3696 = vsel %vm3693, %v3695, %v3691
      %v3697 = vmul.f32 1.0, %v3696
      %v3698 = vrcp.pop %v3400
      %v3699 = vmul.f32 %v3400, %v3698
      %v3700 = vsub.f32 1.0, %v3699
      %v3701 = vmul.f32 %v3698, %v3700
      %v3702 = vadd.f32 %v3698, %v3701
      %vm3703 = vweird.f32 %v3400
      %vm3704 = vweird.f32 %v3698
      %vm3705 = vmor %vm3703, %vm3704
      %v3706 = vsel %vm3705, %v3698, %v3702
      %v3707 = vand.u32 2147483647, %v3400
      %vm3708 = vcmp.eq.f32.partialorder %v3707, 8.507059e+37
      %v3709 = vand.u32 %v3400, 2147483648
      %v3710 = vor.u32 1.1754944e-38, %v3709
      %v3711 = vsel %vm3708, %v3710, %v3706
      %v3712 = vmul.f32 1.0, %v3711
      %v3713 = vrcp.pop %v3401
      %v3714 = vmul.f32 %v3401, %v3713
      %v3715 = vsub.f32 1.0, %v3714
      %v3716 = vmul.f32 %v3713, %v3715
      %v3717 = vadd.f32 %v3713, %v3716
      %vm3718 = vweird.f32 %v3401
      %vm3719 = vweird.f32 %v3713
      %vm3720 = vmor %vm3718, %vm3719
      %v3721 = vsel %vm3720, %v3713, %v3717
      %v3722 = vand.u32 2147483647, %v3401
      %vm3723 = vcmp.eq.f32.partialorder %v3722, 8.507059e+37
      %v3724 = vand.u32 %v3401, 2147483648
      %v3725 = vor.u32 1.1754944e-38, %v3724
      %v3726 = vsel %vm3723, %v3725, %v3721
      %v3727 = vmul.f32 1.0, %v3726
      %v3728 = vrcp.pop %v3402
      %v3729 = vmul.f32 %v3402, %v3728
      %v3730 = vsub.f32 1.0, %v3729
      %v3731 = vmul.f32 %v3728, %v3730
      %v3732 = vadd.f32 %v3728, %v3731
      %vm3733 = vweird.f32 %v3402
      %vm3734 = vweird.f32 %v3728
      %vm3735 = vmor %vm3733, %vm3734
      %v3736 = vsel %vm3735, %v3728, %v3732
      %v3737 = vand.u32 2147483647, %v3402
      %vm3738 = vcmp.eq.f32.partialorder %v3737, 8.507059e+37
      %v3739 = vand.u32 %v3402, 2147483648
      %v3740 = vor.u32 1.1754944e-38, %v3739
      %v3741 = vsel %vm3738, %v3740, %v3736
      %v3742 = vmul.f32 1.0, %v3741
      %v3743 = vrcp.pop %v3403
      %v3744 = vmul.f32 %v3403, %v3743
      %v3745 = vsub.f32 1.0, %v3744
      %v3746 = vmul.f32 %v3743, %v3745
      %v3747 = vadd.f32 %v3743, %v3746
      %vm3748 = vweird.f32 %v3403
      %vm3749 = vweird.f32 %v3743
      %vm3750 = vmor %vm3748, %vm3749
      %v3751 = vsel %vm3750, %v3743, %v3747
      %v3752 = vand.u32 2147483647, %v3403
      %vm3753 = vcmp.eq.f32.partialorder %v3752, 8.507059e+37
      %v3754 = vand.u32 %v3403, 2147483648
      %v3755 = vor.u32 1.1754944e-38, %v3754
      %v3756 = vsel %vm3753, %v3755, %v3751
      %v3757 = vmul.f32 1.0, %v3756
      %v3758 = vrcp.pop %v3404
      %v3759 = vmul.f32 %v3404, %v3758
      %v3760 = vsub.f32 1.0, %v3759
      %v3761 = vmul.f32 %v3758, %v3760
      %v3762 = vadd.f32 %v3758, %v3761
      %vm3763 = vweird.f32 %v3404
      %vm3764 = vweird.f32 %v3758
      %vm3765 = vmor %vm3763, %vm3764
      %v3766 = vsel %vm3765, %v3758, %v3762
      %v3767 = vand.u32 2147483647, %v3404
      %vm3768 = vcmp.eq.f32.partialorder %v3767, 8.507059e+37
      %v3769 = vand.u32 %v3404, 2147483648
      %v3770 = vor.u32 1.1754944e-38, %v3769
      %v3771 = vsel %vm3768, %v3770, %v3766
      %v3772 = vmul.f32 1.0, %v3771
      %v3773 = vrcp.pop %v3405
      %v3774 = vmul.f32 %v3405, %v3773
      %v3775 = vsub.f32 1.0, %v3774
      %v3776 = vmul.f32 %v3773, %v3775
      %v3777 = vadd.f32 %v3773, %v3776
      %vm3778 = vweird.f32 %v3405
      %vm3779 = vweird.f32 %v3773
      %vm3780 = vmor %vm3778, %vm3779
      %v3781 = vsel %vm3780, %v3773, %v3777
      %v3782 = vand.u32 2147483647, %v3405
      %vm3783 = vcmp.eq.f32.partialorder %v3782, 8.507059e+37
      %v3784 = vand.u32 %v3405, 2147483648
      %v3785 = vor.u32 1.1754944e-38, %v3784
      %v3786 = vsel %vm3783, %v3785, %v3781
      %v3787 = vmul.f32 1.0, %v3786
      %v3788 = vrcp.pop %v3406
      %v3789 = vmul.f32 %v3406, %v3788
      %v3790 = vsub.f32 1.0, %v3789
      %v3791 = vmul.f32 %v3788, %v3790
      %v3792 = vadd.f32 %v3788, %v3791
      %vm3793 = vweird.f32 %v3406
      %vm3794 = vweird.f32 %v3788
      %vm3795 = vmor %vm3793, %vm3794
      %v3796 = vsel %vm3795, %v3788, %v3792
      %v3797 = vand.u32 2147483647, %v3406
      %vm3798 = vcmp.eq.f32.partialorder %v3797, 8.507059e+37
      %v3799 = vand.u32 %v3406, 2147483648
      %v3800 = vor.u32 1.1754944e-38, %v3799
      %v3801 = vsel %vm3798, %v3800, %v3796
      %v3802 = vmul.f32 1.0, %v3801
      %v3803 = vrcp.pop %v3407
      %v3804 = vmul.f32 %v3407, %v3803
      %v3805 = vsub.f32 1.0, %v3804
      %v3806 = vmul.f32 %v3803, %v3805
      %v3807 = vadd.f32 %v3803, %v3806
      %vm3808 = vweird.f32 %v3407
      %vm3809 = vweird.f32 %v3803
      %vm3810 = vmor %vm3808, %vm3809
      %v3811 = vsel %vm3810, %v3803, %v3807
      %v3812 = vand.u32 2147483647, %v3407
      %vm3813 = vcmp.eq.f32.partialorder %v3812, 8.507059e+37
      %v3814 = vand.u32 %v3407, 2147483648
      %v3815 = vor.u32 1.1754944e-38, %v3814
      %v3816 = vsel %vm3813, %v3815, %v3811
      %v3817 = vmul.f32 1.0, %v3816
      %v3818 = vrcp.pop %v3408
      %v3819 = vmul.f32 %v3408, %v3818
      %v3820 = vsub.f32 1.0, %v3819
      %v3821 = vmul.f32 %v3818, %v3820
      %v3822 = vadd.f32 %v3818, %v3821
      %vm3823 = vweird.f32 %v3408
      %vm3824 = vweird.f32 %v3818
      %vm3825 = vmor %vm3823, %vm3824
      %v3826 = vsel %vm3825, %v3818, %v3822
      %v3827 = vand.u32 2147483647, %v3408
      %vm3828 = vcmp.eq.f32.partialorder %v3827, 8.507059e+37
      %v3829 = vand.u32 %v3408, 2147483648
      %v3830 = vor.u32 1.1754944e-38, %v3829
      %v3831 = vsel %vm3828, %v3830, %v3826
      %v3832 = vmul.f32 1.0, %v3831
      %v3833 = vrcp.pop %v3409
      %v3834 = vmul.f32 %v3409, %v3833
      %v3835 = vsub.f32 1.0, %v3834
      %v3836 = vmul.f32 %v3833, %v3835
      %v3837 = vadd.f32 %v3833, %v3836
      %vm3838 = vweird.f32 %v3409
      %vm3839 = vweird.f32 %v3833
      %vm3840 = vmor %vm3838, %vm3839
      %v3841 = vsel %vm3840, %v3833, %v3837
      %v3842 = vand.u32 2147483647, %v3409
      %vm3843 = vcmp.eq.f32.partialorder %v3842, 8.507059e+37
      %v3844 = vand.u32 %v3409, 2147483648
      %v3845 = vor.u32 1.1754944e-38, %v3844
      %v3846 = vsel %vm3843, %v3845, %v3841
      %v3847 = vmul.f32 1.0, %v3846
      %v3848 = vrcp.pop %v3410
      %v3849 = vmul.f32 %v3410, %v3848
      %v3850 = vsub.f32 1.0, %v3849
      %v3851 = vmul.f32 %v3848, %v3850
      %v3852 = vadd.f32 %v3848, %v3851
      %vm3853 = vweird.f32 %v3410
      %vm3854 = vweird.f32 %v3848
      %vm3855 = vmor %vm3853, %vm3854
      %v3856 = vsel %vm3855, %v3848, %v3852
      %v3857 = vand.u32 2147483647, %v3410
      %vm3858 = vcmp.eq.f32.partialorder %v3857, 8.507059e+37
      %v3859 = vand.u32 %v3410, 2147483648
      %v3860 = vor.u32 1.1754944e-38, %v3859
      %v3861 = vsel %vm3858, %v3860, %v3856
      %v3862 = vmul.f32 1.0, %v3861
      %v3863 = vrcp.pop %v3411
      %v3864 = vmul.f32 %v3411, %v3863
      %v3865 = vsub.f32 1.0, %v3864
      %v3866 = vmul.f32 %v3863, %v3865
      %v3867 = vadd.f32 %v3863, %v3866
      %vm3868 = vweird.f32 %v3411
      %vm3869 = vweird.f32 %v3863
      %vm3870 = vmor %vm3868, %vm3869
      %v3871 = vsel %vm3870, %v3863, %v3867
      %v3872 = vand.u32 2147483647, %v3411
      %vm3873 = vcmp.eq.f32.partialorder %v3872, 8.507059e+37
      %v3874 = vand.u32 %v3411, 2147483648
      %v3875 = vor.u32 1.1754944e-38, %v3874
      %v3876 = vsel %vm3873, %v3875, %v3871
      %v3877 = vmul.f32 1.0, %v3876
      %v3878 = vrcp.pop %v3412
      %v3879 = vmul.f32 %v3412, %v3878
      %v3880 = vsub.f32 1.0, %v3879
      %v3881 = vmul.f32 %v3878, %v3880
      %v3882 = vadd.f32 %v3878, %v3881
      %vm3883 = vweird.f32 %v3412
      %vm3884 = vweird.f32 %v3878
      %vm3885 = vmor %vm3883, %vm3884
      %v3886 = vsel %vm3885, %v3878, %v3882
      %v3887 = vand.u32 2147483647, %v3412
      %vm3888 = vcmp.eq.f32.partialorder %v3887, 8.507059e+37
      %v3889 = vand.u32 %v3412, 2147483648
      %v3890 = vor.u32 1.1754944e-38, %v3889
      %v3891 = vsel %vm3888, %v3890, %v3886
      %v3892 = vmul.f32 1.0, %v3891
      %v3893 = vsel %vm3284, %v3427, %v3203
      %v3894 = vsel %vm3284, %v3442, %v3205
      %v3895 = vsel %vm3284, %v3457, %v3208
      %v3896 = vsel %vm3284, %v3472, %v3210
      %v3897 = vsel %vm3284, %v3487, %v3213
      %v3898 = vsel %vm3284, %v3502, %v3215
      %v3899 = vsel %vm3284, %v3517, %v3218
      %v3900 = vsel %vm3284, %v3532, %v3220
      %v3901 = vsel %vm3284, %v3547, %v3223
      %v3902 = vsel %vm3284, %v3562, %v3225
      %v3903 = vsel %vm3284, %v3577, %v3228
      %v3904 = vsel %vm3284, %v3592, %v3230
      %v3905 = vsel %vm3284, %v3607, %v3233
      %v3906 = vsel %vm3284, %v3622, %v3235
      %v3907 = vsel %vm3284, %v3637, %v3238
      %v3908 = vsel %vm3284, %v3652, %v3240
      %v3909 = vsel %vm3284, %v3667, %v3243
      %v3910 = vsel %vm3284, %v3682, %v3245
      %v3911 = vsel %vm3284, %v3697, %v3248
      %v3912 = vsel %vm3284, %v3712, %v3250
      %v3913 = vsel %vm3284, %v3727, %v3253
      %v3914 = vsel %vm3284, %v3742, %v3255
      %v3915 = vsel %vm3284, %v3757, %v3258
      %v3916 = vsel %vm3284, %v3772, %v3260
      %v3917 = vsel %vm3284, %v3787, %v3263
      %v3918 = vsel %vm3284, %v3802, %v3265
      %v3919 = vsel %vm3284, %v3817, %v3268
      %v3920 = vsel %vm3284, %v3832, %v3270
      %v3921 = vsel %vm3284, %v3847, %v3273
      %v3922 = vsel %vm3284, %v3862, %v3275
      %v3923 = vsel %vm3284, %v3877, %v3278
      %v3924 = vsel %vm3284, %v3892, %v3280
      %3925 = vxpose.xlu0.b32.start [1/16] %v3893, 128
      %3926 = vxpose.xlu0.b32.cont [2/16] %v3894, 128
      %3927 = vxpose.xlu0.b32.cont [3/16] %v3895, 128
      %3928 = vxpose.xlu0.b32.cont [4/16] %v3896, 128
      %3929 = vxpose.xlu0.b32.cont [5/16] %v3897, 128
      %3930 = vxpose.xlu0.b32.cont [6/16] %v3898, 128
      %3931 = vxpose.xlu0.b32.cont [7/16] %v3899, 128
      %3932 = vxpose.xlu0.b32.cont [8/16] %v3900, 128
      %3933 = vxpose.xlu0.b32.cont [9/16] %v3901, 128
      %3934 = vxpose.xlu0.b32.cont [10/16] %v3902, 128
      %3935 = vxpose.xlu0.b32.cont [11/16] %v3903, 128
      %3936 = vxpose.xlu0.b32.cont [12/16] %v3904, 128
      %3937 = vxpose.xlu0.b32.cont [13/16] %v3905, 128
      %3938 = vxpose.xlu0.b32.cont [14/16] %v3906, 128
      %3939 = vxpose.xlu0.b32.cont [15/16] %v3907, 128
      %3940 = vxpose.xlu0.b32.end [16/16] %v3908, 128
      %v3941 = vpop.trf.xlu0
      %v3942 = vpop.trf.xlu0
      %v3943 = vpop.trf.xlu0
      %v3944 = vpop.trf.xlu0
      %v3945 = vpop.trf.xlu0
      %v3946 = vpop.trf.xlu0
      %v3947 = vpop.trf.xlu0
      %v3948 = vpop.trf.xlu0
      %v3949 = vpop.trf.xlu0
      %v3950 = vpop.trf.xlu0
      %v3951 = vpop.trf.xlu0
      %v3952 = vpop.trf.xlu0
      %v3953 = vpop.trf.xlu0
      %v3954 = vpop.trf.xlu0
      %v3955 = vpop.trf.xlu0
      %v3956 = vpop.trf.xlu0
      %3957 = vxpose.xlu0.b32.start [1/16] %v3909, 128
      %3958 = vxpose.xlu0.b32.cont [2/16] %v3910, 128
      %3959 = vxpose.xlu0.b32.cont [3/16] %v3911, 128
      %3960 = vxpose.xlu0.b32.cont [4/16] %v3912, 128
      %3961 = vxpose.xlu0.b32.cont [5/16] %v3913, 128
      %3962 = vxpose.xlu0.b32.cont [6/16] %v3914, 128
      %3963 = vxpose.xlu0.b32.cont [7/16] %v3915, 128
      %3964 = vxpose.xlu0.b32.cont [8/16] %v3916, 128
      %3965 = vxpose.xlu0.b32.cont [9/16] %v3917, 128
      %3966 = vxpose.xlu0.b32.cont [10/16] %v3918, 128
      %3967 = vxpose.xlu0.b32.cont [11/16] %v3919, 128
      %3968 = vxpose.xlu0.b32.cont [12/16] %v3920, 128
      %3969 = vxpose.xlu0.b32.cont [13/16] %v3921, 128
      %3970 = vxpose.xlu0.b32.cont [14/16] %v3922, 128
      %3971 = vxpose.xlu0.b32.cont [15/16] %v3923, 128
      %3972 = vxpose.xlu0.b32.end [16/16] %v3924, 128
      %v3973 = vpop.trf.xlu0
      %v3974 = vpop.trf.xlu0
      %v3975 = vpop.trf.xlu0
      %v3976 = vpop.trf.xlu0
      %v3977 = vpop.trf.xlu0
      %v3978 = vpop.trf.xlu0
      %v3979 = vpop.trf.xlu0
      %v3980 = vpop.trf.xlu0
      %v3981 = vpop.trf.xlu0
      %v3982 = vpop.trf.xlu0
      %v3983 = vpop.trf.xlu0
      %v3984 = vpop.trf.xlu0
      %v3985 = vpop.trf.xlu0
      %v3986 = vpop.trf.xlu0
      %v3987 = vpop.trf.xlu0
      %v3988 = vpop.trf.xlu0
      %3989 = vst [vmem:[%s312] sm:$0xff] %v3941
      %3990 = vst [vmem:[%s312 + $0x8] sm:$0xff] %v3973
      %3991 = vst [vmem:[%s312 + $0x10] sm:$0xff] %v3942
      %3992 = vst [vmem:[%s312 + $0x18] sm:$0xff] %v3974
      %3993 = vst [vmem:[%s312 + $0x20] sm:$0x3f] %v3943
      %3994 = vst [vmem:[%s312 + $0x28] sm:$0x3f] %v3975
      %vm3995 = vcmask 1042432
      %v3996 = vsel %vm3995, %v3943, -inf
      %v3997 = vmax.f32 %v3941, %v3996
      %v3998 = vmax.f32 %v3997, %v3942
      %v3999 = vrot.slane %v3998, 4
      %v4000 = vmax.f32 %v3998, %v3999
      %v4001 = vrot.slane %v4000, 2
      %v4002 = vmax.f32 %v4000, %v4001
      %v4003 = vrot.slane %v4002, 1
      %v4004 = vmax.f32 %v4002, %v4003
      %v4005 = vsel %vm3995, %v3975, -inf
      %v4006 = vmax.f32 %v3973, %v4005
      %v4007 = vmax.f32 %v4006, %v3974
      %v4008 = vrot.slane %v4007, 4
      %v4009 = vmax.f32 %v4007, %v4008
      %v4010 = vrot.slane %v4009, 2
      %v4011 = vmax.f32 %v4009, %v4010
      %v4012 = vrot.slane %v4011, 1
      %v4013 = vmax.f32 %v4011, %v4012
      %vm4014 = vcmp.eq.f32.partialorder %v3941, %v4004
      %vm4015 = vcmp.eq.f32.partialorder %v3973, %v4013
      %vm4016 = vcmp.eq.f32.partialorder %v3942, %v4004
      %vm4017 = vcmp.eq.f32.partialorder %v3974, %v4013
      %vm4018 = vcmp.eq.f32.partialorder %v3943, %v4004
      %vm4019 = vcmp.eq.f32.partialorder %v3975, %v4013
      %v4020 = vsel %vm4014, %v758, 19
      %v4021 = vsel %vm4015, %v758, 19
      %v4022 = vsel %vm4016, %v759, 19
      %v4023 = vsel %vm4017, %v759, 19
      %v4024 = vsel %vm4018, %v760, 19
      %v4025 = vsel %vm4019, %v760, 19
      %v4026 = vsel %vm3995, %v4024, 2147483647
      %vm4027 = vcmp.lt.s32.totalorder %v4020, %v4026
      %v4028 = vsel %vm4027, %v4020, %v4026
      %vm4029 = vcmp.lt.s32.totalorder %v4028, %v4022
      %v4030 = vsel %vm4029, %v4028, %v4022
      %v4031 = vrot.slane %v4030, 4
      %vm4032 = vcmp.lt.s32.totalorder %v4030, %v4031
      %v4033 = vsel %vm4032, %v4030, %v4031
      %v4034 = vrot.slane %v4033, 2
      %vm4035 = vcmp.lt.s32.totalorder %v4033, %v4034
      %v4036 = vsel %vm4035, %v4033, %v4034
      %v4037 = vrot.slane %v4036, 1
      %vm4038 = vcmp.lt.s32.totalorder %v4036, %v4037
      %v4039 = vsel %vm4038, %v4036, %v4037
      %v4040 = vsel %vm3995, %v4025, 2147483647
      %vm4041 = vcmp.lt.s32.totalorder %v4021, %v4040
      %v4042 = vsel %vm4041, %v4021, %v4040
      %vm4043 = vcmp.lt.s32.totalorder %v4042, %v4023
      %v4044 = vsel %vm4043, %v4042, %v4023
      %v4045 = vrot.slane %v4044, 4
      %vm4046 = vcmp.lt.s32.totalorder %v4044, %v4045
      %v4047 = vsel %vm4046, %v4044, %v4045
      %v4048 = vrot.slane %v4047, 2
      %vm4049 = vcmp.lt.s32.totalorder %v4047, %v4048
      %v4050 = vsel %vm4049, %v4047, %v4048
      %v4051 = vrot.slane %v4050, 1
      %vm4052 = vcmp.lt.s32.totalorder %v4050, %v4051
      %v4053 = vsel %vm4052, %v4050, %v4051
      %v4054 = vrot.slane %v4053, 7
      %v4055 = vsel %vm658, %v4039, %v4054
      %v4056 = vlaneseq
      %vm4057 = vcmp.ge.s32.totalorder %v4056, 0
      %vm4058 = vcmp.lt.s32.totalorder %v4056, 256
      %vm4059 = vmand %vm4057, %vm4058
      %4060 = vst.msk [vmem:[%s316] sm:$0x3] %vm4059, %v4055
      %p4061 = scmp.lt.s32.totalorder %s20, 1
      %s4062 = scalar_select %p4061, %s20, 1
      %s4063 = smul.addr %s4062, 6
      %s4064 = smul.addr %s4063, 8
      %s4065 = scalar_lea.vmem %s7, %s4064
      %p4066 = scmp.lt.s32.totalorder %s20, 1
      %s4067 = scalar_select %p4066, %s20, 1
      %s4068 = smul.addr %s4067, 2
      %s4069 = scalar_lea.vmem %s8, %s4068
      // Predicated region
      $region49: #{run.1} parent=47 // pred_check
        %p4070 = pneg %p190
      $region50: #{run.1} parent=47 // pred_check_branch
        %4072 = sbr.rel (%p4070) target = $region52
      $region51: #{run.1} parent=47 // pred_region
        _
      $region52: #{run.1} parent=47 // pred_fallthru
        _
      // Predicated region
      $region53: #{run.1} parent=47 // pred_check
        %p4073 = pneg %p216
      $region54: #{run.1} parent=47 // pred_check_branch
        %4075 = sbr.rel (%p4073) target = $region56
      $region55: #{run.1} parent=47 // pred_region
        _
      $region56: #{run.1} parent=47 // pred_fallthru
        _
    $region48: #{run.1} parent=5 // pred_fallthru
      _
    %p4076 = scmp.le.s32.totalorder 2, %s15
    // Predicated region
    $region57: #{run.1} parent=5 // pred_check
      %p4077 = pneg %p4076
    $region58: #{run.1} parent=5 // pred_check_branch
      %4079 = sbr.rel (%p4077) target = $region60
    $region59: #{run.1} parent=5 // pred_region
      %s4080 = ssub.s32 %s15, 2
      // Predicated region
      $region61: #{run.1} parent=59 // pred_check
        %p4081 = pneg %p196
      $region62: #{run.1} parent=59 // pred_check_branch
        %4083 = sbr.rel (%p4081) target = $region64
      $region63: #{run.1} parent=59 // pred_region
        %p4084 = scmp.lt.s32.totalorder %s21, 1
        %s4085 = scalar_select %p4084, %s21, 1
        %s4086 = smul.addr %s4085, 6
        %s4087 = smul.addr %s4086, 8
        %s4088 = scalar_lea.vmem %s7, %s4087
      $region64: #{run.1} parent=59 // pred_fallthru
        _
      // Predicated region
      $region65: #{run.1} parent=59 // pred_check
        %p4089 = pneg %p222
      $region66: #{run.1} parent=59 // pred_check_branch
        %4091 = sbr.rel (%p4089) target = $region68
      $region67: #{run.1} parent=59 // pred_region
        %p4092 = scmp.lt.s32.totalorder %s21, 1
        %s4093 = scalar_select %p4092, %s21, 1
        %s4094 = smul.addr %s4093, 2
        %s4095 = scalar_lea.vmem %s8, %s4094
      $region68: #{run.1} parent=59 // pred_fallthru
        _
    $region60: #{run.1} parent=5 // pred_fallthru
      _
  $region6: #{run.1} parent=0 // loop_footer
    %s19 = sadd.s32 1, %s15
  $region7: #{run.1} parent=0 // loop_footer_branch
    %14 = sbr.rel target = $region3
  $region8: #{run.1} parent=0 // loop_exit
    _

</llo_original>
